<compile_context>
chip_gen: v6e
topology: v6e:2x2x1
jax: 0.10.0
libtpu: 0.0.40
codegen_flags: <defaults>
</compile_context>

<pallas_src>
import functools

import numpy as np
import jax
import jax.numpy as jnp
from jax import lax
from jax.experimental import pallas as pl
from jax.experimental.pallas import tpu as pltpu

ALPHA = 0.5
WIN_SIZE = 11
WIN_SIGMA = 1.5
K1, K2 = 0.01, 0.03
DATA_RANGE = 1.0
C1 = (K1 * DATA_RANGE) ** 2
C2 = (K2 * DATA_RANGE) ** 2

MAX_IMG_UNROLL = 8   # cap on images per grid step (bounds in-kernel unrolled code)


def _gaussian_1d(size, sigma):
    coords = np.arange(size, dtype=np.float64) - size // 2
    g = np.exp(-(coords ** 2) / (2.0 * sigma ** 2))
    g /= g.sum()
    return g


@functools.lru_cache(maxsize=None)
def _filters(H, W):
    """Separable gaussian filter matrices (cached per (H, W)).

    wcol : (W, Wo_pad)       right-multiply -> 'valid' filtering along W
    wrt  : (Ho_pad, H_pad)   left-multiply  -> 'valid' filtering along H
    Padded columns of wcol and padded rows/cols of wrt are EXACT zeros; the kernel's
    mask-free SSIM accumulation (sum of ssim - 1) relies on this invariant.
    """
    g = _gaussian_1d(WIN_SIZE, WIN_SIGMA)
    Ho, Wo = H - WIN_SIZE + 1, W - WIN_SIZE + 1
    H_pad = -(-H // 8) * 8
    Ho_pad = -(-Ho // 8) * 8          # sublane-aligned
    Wo_pad = -(-Wo // 128) * 128      # lane-dense

    wcol = np.zeros((W, Wo_pad), np.float32)
    for o in range(Wo):
        wcol[o:o + WIN_SIZE, o] = g
    wrt = np.zeros((Ho_pad, H_pad), np.float32)
    for p in range(Ho):
        wrt[p, p:p + WIN_SIZE] = g
    return jnp.asarray(wcol), jnp.asarray(wrt), H_pad, Ho, Wo, Ho_pad, Wo_pad


def _vmem_budget():
    """(per-step working-set target, vmem_limit_bytes), generation-aware."""
    try:
        cap = pltpu.get_tpu_info().vmem_capacity_bytes
    except Exception:
        cap = 64 << 20                  # unknown -> be conservative (v7x-class)
    if cap >= (100 << 20):              # v5e / v6e: 128 MiB physical VMEM
        return 40 << 20, 96 << 20
    return 20 << 20, 48 << 20           # v7x-class: 64 MiB physical VMEM


def _per_step_bytes(tb, H_pad, W, Ho_pad, Wo_pad):
    """Honest per-grid-step VMEM footprint estimate (f32 everywhere)."""
    inp = 2 * 2 * tb * H_pad * W              # x, y tiles (double-buffered)
    tmp = 2 * tb * H_pad * W                  # product temporaries feeding the dots
    cf = 5 * tb * H_pad * Wo_pad              # five column-filtered maps
    ssim = 12 * Ho_pad * Wo_pad               # per-image row-filtered maps + SSIM temps
    filt = 2 * (W * Wo_pad + Ho_pad * H_pad)  # filter constants (count double-buffered)
    acc = 8 * W + 8 * Wo_pad                  # partial-sum accumulators
    return 4 * (inp + tmp + cf + ssim + filt + acc)


def _pick_tile(b_per, H_pad, W, Ho_pad, Wo_pad, budget):
    for cand in range(min(b_per, MAX_IMG_UNROLL), 0, -1):
        if b_per % cand == 0 and _per_step_bytes(cand, H_pad, W, Ho_pad, Wo_pad) <= budget:
            return cand
    return 1


def _combined_loss_kernel(x_ref, y_ref, wcol_ref, wrt_ref, out_ref,
                          mse_acc, ssim_acc, *, tb, H_pad, W, Ho_pad, Wo_pad):
    i = pl.program_id(1)

    @pl.when(i == 0)
    def _init():
        mse_acc[...] = jnp.zeros_like(mse_acc)
        ssim_acc[...] = jnp.zeros_like(ssim_acc)

    x = x_ref[...].reshape(tb * H_pad, W)       # layout-preserving (H_pad % 8 == 0)
    y = y_ref[...].reshape(tb * H_pad, W)
    wcol = wcol_ref[...]                        # (W, Wo_pad)
    wrt = wrt_ref[...]                          # (Ho_pad, H_pad)

    # ---------------- MSE partial (VALU-only fold into (8, W)) ----------------
    d = x - y
    mse_acc[...] += jnp.sum((d * d).reshape(tb * H_pad // 8, 8, W), axis=0)

    # ---------------- SSIM: separable gaussian, column filter first -----------
    # Five plain 2D MXU matmuls sharing the same RHS (no stacked-concat copy).
    cf_x = jnp.dot(x, wcol, preferred_element_type=jnp.float32)
    cf_y = jnp.dot(y, wcol, preferred_element_type=jnp.float32)
    cf_xx = jnp.dot(x * x, wcol, preferred_element_type=jnp.float32)
    cf_yy = jnp.dot(y * y, wcol, preferred_element_type=jnp.float32)
    cf_xy = jnp.dot(x * y, wcol, preferred_element_type=jnp.float32)

    # Row filter + SSIM map per image (short unrolled loop of plain 2D matmuls).
    ssim_part = jnp.zeros((8, Wo_pad), jnp.float32)
    for z in range(tb):
        r0, r1 = z * H_pad, (z + 1) * H_pad     # sublane-aligned static slice
        mu1 = jnp.dot(wrt, cf_x[r0:r1], preferred_element_type=jnp.float32)
        mu2 = jnp.dot(wrt, cf_y[r0:r1], preferred_element_type=jnp.float32)
        exx = jnp.dot(wrt, cf_xx[r0:r1], preferred_element_type=jnp.float32)
        eyy = jnp.dot(wrt, cf_yy[r0:r1], preferred_element_type=jnp.float32)
        exy = jnp.dot(wrt, cf_xy[r0:r1], preferred_element_type=jnp.float32)

        mu1_sq = mu1 * mu1
        mu2_sq = mu2 * mu2
        mu12 = mu1 * mu2
        s1 = exx - mu1_sq
        s2 = eyy - mu2_sq
        s12 = exy - mu12

        num = (2.0 * mu12 + C1) * (2.0 * s12 + C2)
        den = (mu1_sq + mu2_sq + C1) * (s1 + s2 + C2)
        r = pl.reciprocal(den, approx=True)     # EUP slot
        r = r * (2.0 - den * r)                 # one Newton refinement step
        # Padded filter rows/cols are exact zeros -> num == den there -> ssim == 1,
        # so accumulating (ssim - 1) needs no masking and no pad-count correction.
        smap_m1 = num * r - 1.0                 # (Ho_pad, Wo_pad)
        ssim_part = ssim_part + jnp.sum(
            smap_m1.reshape(Ho_pad // 8, 8, Wo_pad), axis=0)
    ssim_acc[...] += ssim_part

    @pl.when(i == pl.num_programs(1) - 1)
    def _finalize():
        mse_sum = jnp.sum(mse_acc[...])
        ssim_sum = jnp.sum(ssim_acc[...])       # = sum(ssim) - (#valid entries)
        lane = lax.broadcasted_iota(jnp.int32, (1, 8, 128), 2)
        out_ref[...] = (jnp.where(lane == 0, mse_sum, 0.0)
                        + jnp.where(lane == 1, ssim_sum, 0.0))


def combined_loss(y_pred, y_true):
    """y_pred, y_true: (N, C, H, W) float32 in [0, 1]. Returns scalar loss."""
    N, C, H, W = y_pred.shape
    assert H >= WIN_SIZE and W >= WIN_SIZE, "spatial dims must be >= win_size (11)"

    wcol, wrt, H_pad, Ho, Wo, Ho_pad, Wo_pad = _filters(H, W)
    B = N * C
    x3 = y_pred.reshape(B, H, W).astype(jnp.float32)
    y3 = y_true.reshape(B, H, W).astype(jnp.float32)
    if H_pad != H:
        # Zero rows: contribute 0 to the MSE sum and hit only zero filter columns.
        pad = ((0, 0), (0, H_pad - H), (0, 0))
        x3 = jnp.pad(x3, pad)
        y3 = jnp.pad(y3, pad)

    budget, vmem_limit = _vmem_budget()
    n_par = 2 if (B % 2 == 0 and B >= 2) else 1     # v7x: one slice per TensorCore
    b_per = B // n_par
    tb = _pick_tile(b_per, H_pad, W, Ho_pad, Wo_pad, budget)
    steps = b_per // tb

    kernel = functools.partial(
        _combined_loss_kernel, tb=tb, H_pad=H_pad, W=W, Ho_pad=Ho_pad, Wo_pad=Wo_pad)

    def make_call(single_buffer_filters):
        filt_kw = ({"pipeline_mode": pl.Buffered(1)} if single_buffer_filters else {})
        return pl.pallas_call(
            kernel,
            out_shape=jax.ShapeDtypeStruct((n_par, 8, 128), jnp.float32),
            grid_spec=pltpu.PrefetchScalarGridSpec(
                num_scalar_prefetch=0,
                grid=(n_par, steps),
                in_specs=[
                    pl.BlockSpec((tb, H_pad, W), lambda c, i: (c * steps + i, 0, 0)),
                    pl.BlockSpec((tb, H_pad, W), lambda c, i: (c * steps + i, 0, 0)),
                    pl.BlockSpec((W, Wo_pad), lambda c, i: (0, 0), **filt_kw),
                    pl.BlockSpec((Ho_pad, H_pad), lambda c, i: (0, 0), **filt_kw),
                ],
                out_specs=pl.BlockSpec((1, 8, 128), lambda c, i: (c, 0, 0)),
                scratch_shapes=[pltpu.VMEM((8, W), jnp.float32),         # mse partials
                                pltpu.VMEM((8, Wo_pad), jnp.float32)],   # (ssim-1) partials
            ),
            compiler_params=pltpu.CompilerParams(
                dimension_semantics=("parallel", "arbitrary"),
                vmem_limit_bytes=vmem_limit),
        )

    try:
        parts = make_call(True)(x3, y3, wcol, wrt)
    except Exception:
        # Backend rejected single-buffered constant operands; use default buffering.
        parts = make_call(False)(x3, y3, wcol, wrt)

    mse = jnp.sum(parts[:, 0, 0]) / float(B * H * W)
    one_minus_ssim = -jnp.sum(parts[:, 0, 1]) / float(B * Ho * Wo)
    return ALPHA * mse + (1.0 - ALPHA) * one_minus_ssim


# ------------------------- pure-JAX reference (for validation only) -----------------
def _combined_loss_ref(y_pred, y_true):
    N, C, H, W = y_pred.shape
    w1 = _gaussian_1d(WIN_SIZE, WIN_SIGMA)
    k2d = np.outer(w1, w1).astype(np.float32)
    kern = jnp.asarray(np.tile(k2d[None, None], (C, 1, 1, 1)))   # (C,1,11,11)

    def depthwise(z):
        return lax.conv_general_dilated(
            z, kern, window_strides=(1, 1), padding="VALID",
            dimension_numbers=("NCHW", "OIHW", "NCHW"),
            feature_group_count=C)

    mu1 = depthwise(y_pred)
    mu2 = depthwise(y_true)
    mu1_sq, mu2_sq, mu1_mu2 = mu1 * mu1, mu2 * mu2, mu1 * mu2
    sigma1_sq = depthwise(y_pred * y_pred) - mu1_sq
    sigma2_sq = depthwise(y_true * y_true) - mu2_sq
    sigma12 = depthwise(y_pred * y_true) - mu1_mu2
    ssim_map = ((2 * mu1_mu2 + C1) * (2 * sigma12 + C2)) / (
        (mu1_sq + mu2_sq + C1) * (sigma1_sq + sigma2_sq + C2))
    ssim_val = jnp.mean(ssim_map)
    mse = jnp.mean((y_pred - y_true) ** 2)
    return ALPHA * mse + (1.0 - ALPHA) * (1.0 - ssim_val)


if __name__ == "__main__":
    key = jax.random.PRNGKey(0)
    k1, k2 = jax.random.split(key)
    # Small image-like inputs in [0, 1] (data_range=1): N=2, C=4, H=W=16
    y_pred = jax.random.uniform(k1, (2, 4, 16, 16), dtype=jnp.float32)
    y_true = jax.random.uniform(k2, (2, 4, 16, 16), dtype=jnp.float32)

    loss = jax.block_until_ready(combined_loss(y_pred, y_true))
    ref = jax.block_until_ready(_combined_loss_ref(y_pred, y_true))

    assert np.isfinite(float(loss))
    np.testing.assert_allclose(float(loss), float(ref), rtol=1e-4, atol=1e-5)
    print("KERNEL_OK")
</pallas_src>

<mosaic_0001>
module attributes {stable_mosaic.version = 11 : i64} {
  func.func @_combined_loss_kernel(%arg0: i32, %arg1: i32, %arg2: memref<4x16x16xf32, #tpu.memory_space<vmem>>, %arg3: memref<4x16x16xf32, #tpu.memory_space<vmem>>, %arg4: memref<16x128xf32, #tpu.memory_space<vmem>>, %arg5: memref<8x16xf32, #tpu.memory_space<vmem>>, %arg6: memref<1x8x128xf32, #tpu.memory_space<vmem>>, %arg7: memref<8x16xf32, #tpu.memory_space<vmem>>, %arg8: memref<8x128xf32, #tpu.memory_space<vmem>>) attributes {dimension_semantics = [#tpu.dimension_semantics<parallel>, #tpu.dimension_semantics<arbitrary>], iteration_bounds = array<i64: 2, 1>, scalar_prefetch = 0 : i64, scratch_operands = 2 : i64, tpu.core_type = #tpu.core_type<tc>, window_params = [{transform_indices = @transform_0, window_bounds = array<i64: 4, 16, 16>}, {transform_indices = @transform_1, window_bounds = array<i64: 4, 16, 16>}, {pipeline_mode = #tpu.pipeline_mode<synchronous>, transform_indices = @transform_2, window_bounds = array<i64: 16, 128>}, {pipeline_mode = #tpu.pipeline_mode<synchronous>, transform_indices = @transform_3, window_bounds = array<i64: 8, 16>}, {transform_indices = @transform_4, window_bounds = array<i64: 1, 8, 128>}]} {
    %c0_i32 = arith.constant 0 : i32
    %0 = arith.cmpi eq, %arg1, %c0_i32 : i32
    %1 = arith.extui %0 : i1 to i32
    %c0_i32_0 = arith.constant 0 : i32
    %2 = arith.cmpi ne, %1, %c0_i32_0 : i32
    scf.if %2 {
      %cst_82 = arith.constant 0.000000e+00 : f32
      %203 = vector.broadcast %cst_82 : f32 to vector<8x16xf32>
      %c0_83 = arith.constant 0 : index
      %c0_84 = arith.constant 0 : index
      %204 = vector.load %arg7[%c0_83, %c0_84] : memref<8x16xf32, #tpu.memory_space<vmem>>, vector<8x16xf32>
      tpu.vector_store %arg7[%c0_83, %c0_84], %203 {strides = array<i32>} : memref<8x16xf32, #tpu.memory_space<vmem>>, vector<8x16xf32>,
      %cst_85 = arith.constant 0.000000e+00 : f32
      %205 = vector.broadcast %cst_85 : f32 to vector<8x128xf32>
      %c0_86 = arith.constant 0 : index
      %c0_87 = arith.constant 0 : index
      %206 = vector.load %arg8[%c0_86, %c0_87] : memref<8x128xf32, #tpu.memory_space<vmem>>, vector<8x128xf32>
      tpu.vector_store %arg8[%c0_86, %c0_87], %205 {strides = array<i32>} : memref<8x128xf32, #tpu.memory_space<vmem>>, vector<8x128xf32>,
    } else {
    }
    %c0 = arith.constant 0 : index
    %c0_1 = arith.constant 0 : index
    %c0_2 = arith.constant 0 : index
    %3 = vector.load %arg2[%c0, %c0_1, %c0_2] : memref<4x16x16xf32, #tpu.memory_space<vmem>>, vector<4x16x16xf32>
    %4 = vector.shape_cast %3 : vector<4x16x16xf32> to vector<64x16xf32>
    %c0_3 = arith.constant 0 : index
    %c0_4 = arith.constant 0 : index
    %c0_5 = arith.constant 0 : index
    %5 = vector.load %arg3[%c0_3, %c0_4, %c0_5] : memref<4x16x16xf32, #tpu.memory_space<vmem>>, vector<4x16x16xf32>
    %6 = vector.shape_cast %5 : vector<4x16x16xf32> to vector<64x16xf32>
    %c0_6 = arith.constant 0 : index
    %c0_7 = arith.constant 0 : index
    %7 = vector.load %arg4[%c0_6, %c0_7] : memref<16x128xf32, #tpu.memory_space<vmem>>, vector<16x128xf32>
    %c0_8 = arith.constant 0 : index
    %c0_9 = arith.constant 0 : index
    %8 = vector.load %arg5[%c0_8, %c0_9] : memref<8x16xf32, #tpu.memory_space<vmem>>, vector<8x16xf32>
    %9 = arith.subf %4, %6 : vector<64x16xf32>
    %c0_10 = arith.constant 0 : index
    %c0_11 = arith.constant 0 : index
    %10 = vector.load %arg7[%c0_10, %c0_11] : memref<8x16xf32, #tpu.memory_space<vmem>>, vector<8x16xf32>
    %11 = arith.mulf %9, %9 : vector<64x16xf32>
    %12 = vector.shape_cast %11 : vector<64x16xf32> to vector<8x8x16xf32>
    %cst = arith.constant dense<0.000000e+00> : vector<8x16xf32>
    %13 = vector.multi_reduction <add>, %12, %cst [0] : vector<8x8x16xf32> to vector<8x16xf32>
    %14 = arith.addf %10, %13 : vector<8x16xf32>
    %c0_12 = arith.constant 0 : index
    %c0_13 = arith.constant 0 : index
    %15 = vector.load %arg7[%c0_12, %c0_13] : memref<8x16xf32, #tpu.memory_space<vmem>>, vector<8x16xf32>
    tpu.vector_store %arg7[%c0_12, %c0_13], %14 {strides = array<i32>} : memref<8x16xf32, #tpu.memory_space<vmem>>, vector<8x16xf32>,
    %cst_14 = arith.constant dense<0.000000e+00> : vector<64x128xf32>
    %16 = tpu.matmul %4, %7, %cst_14 {dimension_numbers = #tpu.dot_dimension_numbers<[1], [0], [0], [1], [0, 0, 1, 1], [], []>} : vector<64x16xf32>, vector<16x128xf32>, vector<64x128xf32> -> vector<64x128xf32>
    %cst_15 = arith.constant dense<0.000000e+00> : vector<64x128xf32>
    %17 = tpu.matmul %6, %7, %cst_15 {dimension_numbers = #tpu.dot_dimension_numbers<[1], [0], [0], [1], [0, 0, 1, 1], [], []>} : vector<64x16xf32>, vector<16x128xf32>, vector<64x128xf32> -> vector<64x128xf32>
    %18 = arith.mulf %4, %4 : vector<64x16xf32>
    %cst_16 = arith.constant dense<0.000000e+00> : vector<64x128xf32>
    %19 = tpu.matmul %18, %7, %cst_16 {dimension_numbers = #tpu.dot_dimension_numbers<[1], [0], [0], [1], [0, 0, 1, 1], [], []>} : vector<64x16xf32>, vector<16x128xf32>, vector<64x128xf32> -> vector<64x128xf32>
    %20 = arith.mulf %6, %6 : vector<64x16xf32>
    %cst_17 = arith.constant dense<0.000000e+00> : vector<64x128xf32>
    %21 = tpu.matmul %20, %7, %cst_17 {dimension_numbers = #tpu.dot_dimension_numbers<[1], [0], [0], [1], [0, 0, 1, 1], [], []>} : vector<64x16xf32>, vector<16x128xf32>, vector<64x128xf32> -> vector<64x128xf32>
    %22 = arith.mulf %4, %6 : vector<64x16xf32>
    %cst_18 = arith.constant dense<0.000000e+00> : vector<64x128xf32>
    %23 = tpu.matmul %22, %7, %cst_18 {dimension_numbers = #tpu.dot_dimension_numbers<[1], [0], [0], [1], [0, 0, 1, 1], [], []>} : vector<64x16xf32>, vector<16x128xf32>, vector<64x128xf32> -> vector<64x128xf32>
    %cst_19 = arith.constant 0.000000e+00 : f32
    %24 = vector.broadcast %cst_19 : f32 to vector<8x128xf32>
    %25 = vector.extract_strided_slice %16 {offsets = [0, 0], sizes = [16, 128], strides = [1, 1]} : vector<64x128xf32> to vector<16x128xf32>
    %cst_20 = arith.constant dense<0.000000e+00> : vector<8x128xf32>
    %26 = tpu.matmul %8, %25, %cst_20 {dimension_numbers = #tpu.dot_dimension_numbers<[1], [0], [0], [1], [0, 0, 1, 1], [], []>} : vector<8x16xf32>, vector<16x128xf32>, vector<8x128xf32> -> vector<8x128xf32>
    %27 = vector.extract_strided_slice %17 {offsets = [0, 0], sizes = [16, 128], strides = [1, 1]} : vector<64x128xf32> to vector<16x128xf32>
    %cst_21 = arith.constant dense<0.000000e+00> : vector<8x128xf32>
    %28 = tpu.matmul %8, %27, %cst_21 {dimension_numbers = #tpu.dot_dimension_numbers<[1], [0], [0], [1], [0, 0, 1, 1], [], []>} : vector<8x16xf32>, vector<16x128xf32>, vector<8x128xf32> -> vector<8x128xf32>
    %29 = vector.extract_strided_slice %19 {offsets = [0, 0], sizes = [16, 128], strides = [1, 1]} : vector<64x128xf32> to vector<16x128xf32>
    %cst_22 = arith.constant dense<0.000000e+00> : vector<8x128xf32>
    %30 = tpu.matmul %8, %29, %cst_22 {dimension_numbers = #tpu.dot_dimension_numbers<[1], [0], [0], [1], [0, 0, 1, 1], [], []>} : vector<8x16xf32>, vector<16x128xf32>, vector<8x128xf32> -> vector<8x128xf32>
    %31 = vector.extract_strided_slice %21 {offsets = [0, 0], sizes = [16, 128], strides = [1, 1]} : vector<64x128xf32> to vector<16x128xf32>
    %cst_23 = arith.constant dense<0.000000e+00> : vector<8x128xf32>
    %32 = tpu.matmul %8, %31, %cst_23 {dimension_numbers = #tpu.dot_dimension_numbers<[1], [0], [0], [1], [0, 0, 1, 1], [], []>} : vector<8x16xf32>, vector<16x128xf32>, vector<8x128xf32> -> vector<8x128xf32>
    %33 = vector.extract_strided_slice %23 {offsets = [0, 0], sizes = [16, 128], strides = [1, 1]} : vector<64x128xf32> to vector<16x128xf32>
    %cst_24 = arith.constant dense<0.000000e+00> : vector<8x128xf32>
    %34 = tpu.matmul %8, %33, %cst_24 {dimension_numbers = #tpu.dot_dimension_numbers<[1], [0], [0], [1], [0, 0, 1, 1], [], []>} : vector<8x16xf32>, vector<16x128xf32>, vector<8x128xf32> -> vector<8x128xf32>
    %35 = arith.mulf %26, %26 : vector<8x128xf32>
    %36 = arith.mulf %28, %28 : vector<8x128xf32>
    %37 = arith.mulf %26, %28 : vector<8x128xf32>
    %38 = arith.subf %30, %35 : vector<8x128xf32>
    %39 = arith.subf %32, %36 : vector<8x128xf32>
    %40 = arith.subf %34, %37 : vector<8x128xf32>
    %cst_25 = arith.constant 2.000000e+00 : f32
    %41 = vector.broadcast %cst_25 : f32 to vector<8x128xf32>
    %42 = arith.mulf %41, %37 : vector<8x128xf32>
    %cst_26 = arith.constant 9.99999974E-5 : f32
    %43 = vector.broadcast %cst_26 : f32 to vector<8x128xf32>
    %44 = arith.addf %42, %43 : vector<8x128xf32>
    %cst_27 = arith.constant 2.000000e+00 : f32
    %45 = vector.broadcast %cst_27 : f32 to vector<8x128xf32>
    %46 = arith.mulf %45, %40 : vector<8x128xf32>
    %cst_28 = arith.constant 8.99999984E-4 : f32
    %47 = vector.broadcast %cst_28 : f32 to vector<8x128xf32>
    %48 = arith.addf %46, %47 : vector<8x128xf32>
    %49 = arith.mulf %44, %48 : vector<8x128xf32>
    %50 = arith.addf %35, %36 : vector<8x128xf32>
    %cst_29 = arith.constant 9.99999974E-5 : f32
    %51 = vector.broadcast %cst_29 : f32 to vector<8x128xf32>
    %52 = arith.addf %50, %51 : vector<8x128xf32>
    %53 = arith.addf %38, %39 : vector<8x128xf32>
    %cst_30 = arith.constant 8.99999984E-4 : f32
    %54 = vector.broadcast %cst_30 : f32 to vector<8x128xf32>
    %55 = arith.addf %53, %54 : vector<8x128xf32>
    %56 = arith.mulf %52, %55 : vector<8x128xf32>
    %57 = tpu.reciprocal %56 {approx = true} : vector<8x128xf32> -> vector<8x128xf32>
    %58 = arith.mulf %56, %57 : vector<8x128xf32>
    %cst_31 = arith.constant 2.000000e+00 : f32
    %59 = vector.broadcast %cst_31 : f32 to vector<8x128xf32>
    %60 = arith.subf %59, %58 : vector<8x128xf32>
    %61 = arith.mulf %57, %60 : vector<8x128xf32>
    %62 = arith.mulf %49, %61 : vector<8x128xf32>
    %cst_32 = arith.constant 1.000000e+00 : f32
    %63 = vector.broadcast %cst_32 : f32 to vector<8x128xf32>
    %64 = arith.subf %62, %63 : vector<8x128xf32>
    %65 = vector.shape_cast %64 : vector<8x128xf32> to vector<1x8x128xf32>
    %cst_33 = arith.constant dense<0.000000e+00> : vector<8x128xf32>
    %66 = vector.multi_reduction <add>, %65, %cst_33 [0] : vector<1x8x128xf32> to vector<8x128xf32>
    %67 = arith.addf %24, %66 : vector<8x128xf32>
    %68 = vector.extract_strided_slice %16 {offsets = [16, 0], sizes = [16, 128], strides = [1, 1]} : vector<64x128xf32> to vector<16x128xf32>
    %cst_34 = arith.constant dense<0.000000e+00> : vector<8x128xf32>
    %69 = tpu.matmul %8, %68, %cst_34 {dimension_numbers = #tpu.dot_dimension_numbers<[1], [0], [0], [1], [0, 0, 1, 1], [], []>} : vector<8x16xf32>, vector<16x128xf32>, vector<8x128xf32> -> vector<8x128xf32>
    %70 = vector.extract_strided_slice %17 {offsets = [16, 0], sizes = [16, 128], strides = [1, 1]} : vector<64x128xf32> to vector<16x128xf32>
    %cst_35 = arith.constant dense<0.000000e+00> : vector<8x128xf32>
    %71 = tpu.matmul %8, %70, %cst_35 {dimension_numbers = #tpu.dot_dimension_numbers<[1], [0], [0], [1], [0, 0, 1, 1], [], []>} : vector<8x16xf32>, vector<16x128xf32>, vector<8x128xf32> -> vector<8x128xf32>
    %72 = vector.extract_strided_slice %19 {offsets = [16, 0], sizes = [16, 128], strides = [1, 1]} : vector<64x128xf32> to vector<16x128xf32>
    %cst_36 = arith.constant dense<0.000000e+00> : vector<8x128xf32>
    %73 = tpu.matmul %8, %72, %cst_36 {dimension_numbers = #tpu.dot_dimension_numbers<[1], [0], [0], [1], [0, 0, 1, 1], [], []>} : vector<8x16xf32>, vector<16x128xf32>, vector<8x128xf32> -> vector<8x128xf32>
    %74 = vector.extract_strided_slice %21 {offsets = [16, 0], sizes = [16, 128], strides = [1, 1]} : vector<64x128xf32> to vector<16x128xf32>
    %cst_37 = arith.constant dense<0.000000e+00> : vector<8x128xf32>
    %75 = tpu.matmul %8, %74, %cst_37 {dimension_numbers = #tpu.dot_dimension_numbers<[1], [0], [0], [1], [0, 0, 1, 1], [], []>} : vector<8x16xf32>, vector<16x128xf32>, vector<8x128xf32> -> vector<8x128xf32>
    %76 = vector.extract_strided_slice %23 {offsets = [16, 0], sizes = [16, 128], strides = [1, 1]} : vector<64x128xf32> to vector<16x128xf32>
    %cst_38 = arith.constant dense<0.000000e+00> : vector<8x128xf32>
    %77 = tpu.matmul %8, %76, %cst_38 {dimension_numbers = #tpu.dot_dimension_numbers<[1], [0], [0], [1], [0, 0, 1, 1], [], []>} : vector<8x16xf32>, vector<16x128xf32>, vector<8x128xf32> -> vector<8x128xf32>
    %78 = arith.mulf %69, %69 : vector<8x128xf32>
    %79 = arith.mulf %71, %71 : vector<8x128xf32>
    %80 = arith.mulf %69, %71 : vector<8x128xf32>
    %81 = arith.subf %73, %78 : vector<8x128xf32>
    %82 = arith.subf %75, %79 : vector<8x128xf32>
    %83 = arith.subf %77, %80 : vector<8x128xf32>
    %cst_39 = arith.constant 2.000000e+00 : f32
    %84 = vector.broadcast %cst_39 : f32 to vector<8x128xf32>
    %85 = arith.mulf %84, %80 : vector<8x128xf32>
    %cst_40 = arith.constant 9.99999974E-5 : f32
    %86 = vector.broadcast %cst_40 : f32 to vector<8x128xf32>
    %87 = arith.addf %85, %86 : vector<8x128xf32>
    %cst_41 = arith.constant 2.000000e+00 : f32
    %88 = vector.broadcast %cst_41 : f32 to vector<8x128xf32>
    %89 = arith.mulf %88, %83 : vector<8x128xf32>
    %cst_42 = arith.constant 8.99999984E-4 : f32
    %90 = vector.broadcast %cst_42 : f32 to vector<8x128xf32>
    %91 = arith.addf %89, %90 : vector<8x128xf32>
    %92 = arith.mulf %87, %91 : vector<8x128xf32>
    %93 = arith.addf %78, %79 : vector<8x128xf32>
    %cst_43 = arith.constant 9.99999974E-5 : f32
    %94 = vector.broadcast %cst_43 : f32 to vector<8x128xf32>
    %95 = arith.addf %93, %94 : vector<8x128xf32>
    %96 = arith.addf %81, %82 : vector<8x128xf32>
    %cst_44 = arith.constant 8.99999984E-4 : f32
    %97 = vector.broadcast %cst_44 : f32 to vector<8x128xf32>
    %98 = arith.addf %96, %97 : vector<8x128xf32>
    %99 = arith.mulf %95, %98 : vector<8x128xf32>
    %100 = tpu.reciprocal %99 {approx = true} : vector<8x128xf32> -> vector<8x128xf32>
    %101 = arith.mulf %99, %100 : vector<8x128xf32>
    %cst_45 = arith.constant 2.000000e+00 : f32
    %102 = vector.broadcast %cst_45 : f32 to vector<8x128xf32>
    %103 = arith.subf %102, %101 : vector<8x128xf32>
    %104 = arith.mulf %100, %103 : vector<8x128xf32>
    %105 = arith.mulf %92, %104 : vector<8x128xf32>
    %cst_46 = arith.constant 1.000000e+00 : f32
    %106 = vector.broadcast %cst_46 : f32 to vector<8x128xf32>
    %107 = arith.subf %105, %106 : vector<8x128xf32>
    %108 = vector.shape_cast %107 : vector<8x128xf32> to vector<1x8x128xf32>
    %cst_47 = arith.constant dense<0.000000e+00> : vector<8x128xf32>
    %109 = vector.multi_reduction <add>, %108, %cst_47 [0] : vector<1x8x128xf32> to vector<8x128xf32>
    %110 = arith.addf %67, %109 : vector<8x128xf32>
    %111 = vector.extract_strided_slice %16 {offsets = [32, 0], sizes = [16, 128], strides = [1, 1]} : vector<64x128xf32> to vector<16x128xf32>
    %cst_48 = arith.constant dense<0.000000e+00> : vector<8x128xf32>
    %112 = tpu.matmul %8, %111, %cst_48 {dimension_numbers = #tpu.dot_dimension_numbers<[1], [0], [0], [1], [0, 0, 1, 1], [], []>} : vector<8x16xf32>, vector<16x128xf32>, vector<8x128xf32> -> vector<8x128xf32>
    %113 = vector.extract_strided_slice %17 {offsets = [32, 0], sizes = [16, 128], strides = [1, 1]} : vector<64x128xf32> to vector<16x128xf32>
    %cst_49 = arith.constant dense<0.000000e+00> : vector<8x128xf32>
    %114 = tpu.matmul %8, %113, %cst_49 {dimension_numbers = #tpu.dot_dimension_numbers<[1], [0], [0], [1], [0, 0, 1, 1], [], []>} : vector<8x16xf32>, vector<16x128xf32>, vector<8x128xf32> -> vector<8x128xf32>
    %115 = vector.extract_strided_slice %19 {offsets = [32, 0], sizes = [16, 128], strides = [1, 1]} : vector<64x128xf32> to vector<16x128xf32>
    %cst_50 = arith.constant dense<0.000000e+00> : vector<8x128xf32>
    %116 = tpu.matmul %8, %115, %cst_50 {dimension_numbers = #tpu.dot_dimension_numbers<[1], [0], [0], [1], [0, 0, 1, 1], [], []>} : vector<8x16xf32>, vector<16x128xf32>, vector<8x128xf32> -> vector<8x128xf32>
    %117 = vector.extract_strided_slice %21 {offsets = [32, 0], sizes = [16, 128], strides = [1, 1]} : vector<64x128xf32> to vector<16x128xf32>
    %cst_51 = arith.constant dense<0.000000e+00> : vector<8x128xf32>
    %118 = tpu.matmul %8, %117, %cst_51 {dimension_numbers = #tpu.dot_dimension_numbers<[1], [0], [0], [1], [0, 0, 1, 1], [], []>} : vector<8x16xf32>, vector<16x128xf32>, vector<8x128xf32> -> vector<8x128xf32>
    %119 = vector.extract_strided_slice %23 {offsets = [32, 0], sizes = [16, 128], strides = [1, 1]} : vector<64x128xf32> to vector<16x128xf32>
    %cst_52 = arith.constant dense<0.000000e+00> : vector<8x128xf32>
    %120 = tpu.matmul %8, %119, %cst_52 {dimension_numbers = #tpu.dot_dimension_numbers<[1], [0], [0], [1], [0, 0, 1, 1], [], []>} : vector<8x16xf32>, vector<16x128xf32>, vector<8x128xf32> -> vector<8x128xf32>
    %121 = arith.mulf %112, %112 : vector<8x128xf32>
    %122 = arith.mulf %114, %114 : vector<8x128xf32>
    %123 = arith.mulf %112, %114 : vector<8x128xf32>
    %124 = arith.subf %116, %121 : vector<8x128xf32>
    %125 = arith.subf %118, %122 : vector<8x128xf32>
    %126 = arith.subf %120, %123 : vector<8x128xf32>
    %cst_53 = arith.constant 2.000000e+00 : f32
    %127 = vector.broadcast %cst_53 : f32 to vector<8x128xf32>
    %128 = arith.mulf %127, %123 : vector<8x128xf32>
    %cst_54 = arith.constant 9.99999974E-5 : f32
    %129 = vector.broadcast %cst_54 : f32 to vector<8x128xf32>
    %130 = arith.addf %128, %129 : vector<8x128xf32>
    %cst_55 = arith.constant 2.000000e+00 : f32
    %131 = vector.broadcast %cst_55 : f32 to vector<8x128xf32>
    %132 = arith.mulf %131, %126 : vector<8x128xf32>
    %cst_56 = arith.constant 8.99999984E-4 : f32
    %133 = vector.broadcast %cst_56 : f32 to vector<8x128xf32>
    %134 = arith.addf %132, %133 : vector<8x128xf32>
    %135 = arith.mulf %130, %134 : vector<8x128xf32>
    %136 = arith.addf %121, %122 : vector<8x128xf32>
    %cst_57 = arith.constant 9.99999974E-5 : f32
    %137 = vector.broadcast %cst_57 : f32 to vector<8x128xf32>
    %138 = arith.addf %136, %137 : vector<8x128xf32>
    %139 = arith.addf %124, %125 : vector<8x128xf32>
    %cst_58 = arith.constant 8.99999984E-4 : f32
    %140 = vector.broadcast %cst_58 : f32 to vector<8x128xf32>
    %141 = arith.addf %139, %140 : vector<8x128xf32>
    %142 = arith.mulf %138, %141 : vector<8x128xf32>
    %143 = tpu.reciprocal %142 {approx = true} : vector<8x128xf32> -> vector<8x128xf32>
    %144 = arith.mulf %142, %143 : vector<8x128xf32>
    %cst_59 = arith.constant 2.000000e+00 : f32
    %145 = vector.broadcast %cst_59 : f32 to vector<8x128xf32>
    %146 = arith.subf %145, %144 : vector<8x128xf32>
    %147 = arith.mulf %143, %146 : vector<8x128xf32>
    %148 = arith.mulf %135, %147 : vector<8x128xf32>
    %cst_60 = arith.constant 1.000000e+00 : f32
    %149 = vector.broadcast %cst_60 : f32 to vector<8x128xf32>
    %150 = arith.subf %148, %149 : vector<8x128xf32>
    %151 = vector.shape_cast %150 : vector<8x128xf32> to vector<1x8x128xf32>
    %cst_61 = arith.constant dense<0.000000e+00> : vector<8x128xf32>
    %152 = vector.multi_reduction <add>, %151, %cst_61 [0] : vector<1x8x128xf32> to vector<8x128xf32>
    %153 = arith.addf %110, %152 : vector<8x128xf32>
    %154 = vector.extract_strided_slice %16 {offsets = [48, 0], sizes = [16, 128], strides = [1, 1]} : vector<64x128xf32> to vector<16x128xf32>
    %cst_62 = arith.constant dense<0.000000e+00> : vector<8x128xf32>
    %155 = tpu.matmul %8, %154, %cst_62 {dimension_numbers = #tpu.dot_dimension_numbers<[1], [0], [0], [1], [0, 0, 1, 1], [], []>} : vector<8x16xf32>, vector<16x128xf32>, vector<8x128xf32> -> vector<8x128xf32>
    %156 = vector.extract_strided_slice %17 {offsets = [48, 0], sizes = [16, 128], strides = [1, 1]} : vector<64x128xf32> to vector<16x128xf32>
    %cst_63 = arith.constant dense<0.000000e+00> : vector<8x128xf32>
    %157 = tpu.matmul %8, %156, %cst_63 {dimension_numbers = #tpu.dot_dimension_numbers<[1], [0], [0], [1], [0, 0, 1, 1], [], []>} : vector<8x16xf32>, vector<16x128xf32>, vector<8x128xf32> -> vector<8x128xf32>
    %158 = vector.extract_strided_slice %19 {offsets = [48, 0], sizes = [16, 128], strides = [1, 1]} : vector<64x128xf32> to vector<16x128xf32>
    %cst_64 = arith.constant dense<0.000000e+00> : vector<8x128xf32>
    %159 = tpu.matmul %8, %158, %cst_64 {dimension_numbers = #tpu.dot_dimension_numbers<[1], [0], [0], [1], [0, 0, 1, 1], [], []>} : vector<8x16xf32>, vector<16x128xf32>, vector<8x128xf32> -> vector<8x128xf32>
    %160 = vector.extract_strided_slice %21 {offsets = [48, 0], sizes = [16, 128], strides = [1, 1]} : vector<64x128xf32> to vector<16x128xf32>
    %cst_65 = arith.constant dense<0.000000e+00> : vector<8x128xf32>
    %161 = tpu.matmul %8, %160, %cst_65 {dimension_numbers = #tpu.dot_dimension_numbers<[1], [0], [0], [1], [0, 0, 1, 1], [], []>} : vector<8x16xf32>, vector<16x128xf32>, vector<8x128xf32> -> vector<8x128xf32>
    %162 = vector.extract_strided_slice %23 {offsets = [48, 0], sizes = [16, 128], strides = [1, 1]} : vector<64x128xf32> to vector<16x128xf32>
    %cst_66 = arith.constant dense<0.000000e+00> : vector<8x128xf32>
    %163 = tpu.matmul %8, %162, %cst_66 {dimension_numbers = #tpu.dot_dimension_numbers<[1], [0], [0], [1], [0, 0, 1, 1], [], []>} : vector<8x16xf32>, vector<16x128xf32>, vector<8x128xf32> -> vector<8x128xf32>
    %164 = arith.mulf %155, %155 : vector<8x128xf32>
    %165 = arith.mulf %157, %157 : vector<8x128xf32>
    %166 = arith.mulf %155, %157 : vector<8x128xf32>
    %167 = arith.subf %159, %164 : vector<8x128xf32>
    %168 = arith.subf %161, %165 : vector<8x128xf32>
    %169 = arith.subf %163, %166 : vector<8x128xf32>
    %cst_67 = arith.constant 2.000000e+00 : f32
    %170 = vector.broadcast %cst_67 : f32 to vector<8x128xf32>
    %171 = arith.mulf %170, %166 : vector<8x128xf32>
    %cst_68 = arith.constant 9.99999974E-5 : f32
    %172 = vector.broadcast %cst_68 : f32 to vector<8x128xf32>
    %173 = arith.addf %171, %172 : vector<8x128xf32>
    %cst_69 = arith.constant 2.000000e+00 : f32
    %174 = vector.broadcast %cst_69 : f32 to vector<8x128xf32>
    %175 = arith.mulf %174, %169 : vector<8x128xf32>
    %cst_70 = arith.constant 8.99999984E-4 : f32
    %176 = vector.broadcast %cst_70 : f32 to vector<8x128xf32>
    %177 = arith.addf %175, %176 : vector<8x128xf32>
    %178 = arith.mulf %173, %177 : vector<8x128xf32>
    %179 = arith.addf %164, %165 : vector<8x128xf32>
    %cst_71 = arith.constant 9.99999974E-5 : f32
    %180 = vector.broadcast %cst_71 : f32 to vector<8x128xf32>
    %181 = arith.addf %179, %180 : vector<8x128xf32>
    %182 = arith.addf %167, %168 : vector<8x128xf32>
    %cst_72 = arith.constant 8.99999984E-4 : f32
    %183 = vector.broadcast %cst_72 : f32 to vector<8x128xf32>
    %184 = arith.addf %182, %183 : vector<8x128xf32>
    %185 = arith.mulf %181, %184 : vector<8x128xf32>
    %186 = tpu.reciprocal %185 {approx = true} : vector<8x128xf32> -> vector<8x128xf32>
    %187 = arith.mulf %185, %186 : vector<8x128xf32>
    %cst_73 = arith.constant 2.000000e+00 : f32
    %188 = vector.broadcast %cst_73 : f32 to vector<8x128xf32>
    %189 = arith.subf %188, %187 : vector<8x128xf32>
    %190 = arith.mulf %186, %189 : vector<8x128xf32>
    %191 = arith.mulf %178, %190 : vector<8x128xf32>
    %cst_74 = arith.constant 1.000000e+00 : f32
    %192 = vector.broadcast %cst_74 : f32 to vector<8x128xf32>
    %193 = arith.subf %191, %192 : vector<8x128xf32>
    %194 = vector.shape_cast %193 : vector<8x128xf32> to vector<1x8x128xf32>
    %cst_75 = arith.constant dense<0.000000e+00> : vector<8x128xf32>
    %195 = vector.multi_reduction <add>, %194, %cst_75 [0] : vector<1x8x128xf32> to vector<8x128xf32>
    %196 = arith.addf %153, %195 : vector<8x128xf32>
    %c0_76 = arith.constant 0 : index
    %c0_77 = arith.constant 0 : index
    %197 = vector.load %arg8[%c0_76, %c0_77] : memref<8x128xf32, #tpu.memory_space<vmem>>, vector<8x128xf32>
    %198 = arith.addf %197, %196 : vector<8x128xf32>
    %c0_78 = arith.constant 0 : index
    %c0_79 = arith.constant 0 : index
    %199 = vector.load %arg8[%c0_78, %c0_79] : memref<8x128xf32, #tpu.memory_space<vmem>>, vector<8x128xf32>
    tpu.vector_store %arg8[%c0_78, %c0_79], %198 {strides = array<i32>} : memref<8x128xf32, #tpu.memory_space<vmem>>, vector<8x128xf32>,
    %c0_i32_80 = arith.constant 0 : i32
    %200 = arith.cmpi eq, %arg1, %c0_i32_80 : i32
    %201 = arith.extui %200 : i1 to i32
    %c0_i32_81 = arith.constant 0 : i32
    %202 = arith.cmpi ne, %201, %c0_i32_81 : i32
    scf.if %202 {
      %c0_82 = arith.constant 0 : index
      %c0_83 = arith.constant 0 : index
      %203 = vector.load %arg7[%c0_82, %c0_83] : memref<8x16xf32, #tpu.memory_space<vmem>>, vector<8x16xf32>
      %204 = vector.shape_cast %203 : vector<8x16xf32> to vector<1x8x16xf32>
      %cst_84 = arith.constant dense<0.000000e+00> : vector<1xf32>
      %205 = vector.multi_reduction <add>, %204, %cst_84 [1, 2] : vector<1x8x16xf32> to vector<1xf32>
      %206 = vector.shape_cast %205 : vector<1xf32> to vector<1x1x1xf32>
      %207 = vector.extract %206[0, 0, 0] : f32 from vector<1x1x1xf32>
      %c0_85 = arith.constant 0 : index
      %c0_86 = arith.constant 0 : index
      %208 = vector.load %arg8[%c0_85, %c0_86] : memref<8x128xf32, #tpu.memory_space<vmem>>, vector<8x128xf32>
      %209 = vector.shape_cast %208 : vector<8x128xf32> to vector<1x8x128xf32>
      %cst_87 = arith.constant dense<0.000000e+00> : vector<1xf32>
      %210 = vector.multi_reduction <add>, %209, %cst_87 [1, 2] : vector<1x8x128xf32> to vector<1xf32>
      %211 = vector.shape_cast %210 : vector<1xf32> to vector<1x1x1xf32>
      %212 = vector.extract %211[0, 0, 0] : f32 from vector<1x1x1xf32>
      %213 = tpu.iota {dimensions = array<i32: 2>} : vector<1x8x128xi32>
      %c0_i32_88 = arith.constant 0 : i32
      %214 = vector.broadcast %c0_i32_88 : i32 to vector<1x8x128xi32>
      %215 = arith.cmpi eq, %213, %214 : vector<1x8x128xi32>
      %cst_89 = arith.constant 0.000000e+00 : f32
      %216 = vector.broadcast %207 : f32 to vector<1x8x128xf32>
      %217 = vector.broadcast %cst_89 : f32 to vector<1x8x128xf32>
      %218 = arith.select %215, %216, %217 : vector<1x8x128xi1>, vector<1x8x128xf32>
      %c1_i32 = arith.constant 1 : i32
      %219 = vector.broadcast %c1_i32 : i32 to vector<1x8x128xi32>
      %220 = arith.cmpi eq, %213, %219 : vector<1x8x128xi32>
      %cst_90 = arith.constant 0.000000e+00 : f32
      %221 = vector.broadcast %212 : f32 to vector<1x8x128xf32>
      %222 = vector.broadcast %cst_90 : f32 to vector<1x8x128xf32>
      %223 = arith.select %220, %221, %222 : vector<1x8x128xi1>, vector<1x8x128xf32>
      %224 = arith.addf %218, %223 : vector<1x8x128xf32>
      %c0_91 = arith.constant 0 : index
      %c0_92 = arith.constant 0 : index
      %c0_93 = arith.constant 0 : index
      %225 = vector.load %arg6[%c0_91, %c0_92, %c0_93] : memref<1x8x128xf32, #tpu.memory_space<vmem>>, vector<1x8x128xf32>
      tpu.vector_store %arg6[%c0_91, %c0_92, %c0_93], %224 {strides = array<i32>} : memref<1x8x128xf32, #tpu.memory_space<vmem>>, vector<1x8x128xf32>,
    } else {
    }
    return
  }
  func.func @transform_0(%arg0: i32, %arg1: i32) -> (i32, i32, i32) {
    %c1_i32 = arith.constant 1 : i32
    %0 = arith.muli %arg0, %c1_i32 : i32
    %1 = arith.addi %0, %arg1 : i32
    %c0_i32 = arith.constant 0 : i32
    %c0_i32_0 = arith.constant 0 : i32
    %c0_i32_1 = arith.constant 0 : i32
    return %1, %c0_i32, %c0_i32_0 : i32, i32, i32
  }
  func.func @transform_1(%arg0: i32, %arg1: i32) -> (i32, i32, i32) {
    %c1_i32 = arith.constant 1 : i32
    %0 = arith.muli %arg0, %c1_i32 : i32
    %1 = arith.addi %0, %arg1 : i32
    %c0_i32 = arith.constant 0 : i32
    %c0_i32_0 = arith.constant 0 : i32
    %c0_i32_1 = arith.constant 0 : i32
    return %1, %c0_i32, %c0_i32_0 : i32, i32, i32
  }
  func.func @transform_2(%arg0: i32, %arg1: i32) -> (i32, i32) {
    %c0_i32 = arith.constant 0 : i32
    %c0_i32_0 = arith.constant 0 : i32
    %c0_i32_1 = arith.constant 0 : i32
    return %c0_i32, %c0_i32_0 : i32, i32
  }
  func.func @transform_3(%arg0: i32, %arg1: i32) -> (i32, i32) {
    %c0_i32 = arith.constant 0 : i32
    %c0_i32_0 = arith.constant 0 : i32
    %c0_i32_1 = arith.constant 0 : i32
    return %c0_i32, %c0_i32_0 : i32, i32
  }
  func.func @transform_4(%arg0: i32, %arg1: i32) -> (i32, i32, i32) {
    %c0_i32 = arith.constant 0 : i32
    %c0_i32_0 = arith.constant 0 : i32
    %c0_i32_1 = arith.constant 0 : i32
    return %arg0, %c0_i32, %c0_i32_0 : i32, i32, i32
  }
}

module attributes {stable_mosaic.version = 11 : i64} {
  func.func @_combined_loss_kernel(%arg0: i32, %arg1: i32, %arg2: memref<4x16x16xf32, #tpu.memory_space<vmem>>, %arg3: memref<4x16x16xf32, #tpu.memory_space<vmem>>, %arg4: memref<16x128xf32, #tpu.memory_space<vmem>>, %arg5: memref<8x16xf32, #tpu.memory_space<vmem>>, %arg6: memref<1x8x128xf32, #tpu.memory_space<vmem>>, %arg7: memref<8x16xf32, #tpu.memory_space<vmem>>, %arg8: memref<8x128xf32, #tpu.memory_space<vmem>>) attributes {dimension_semantics = [#tpu.dimension_semantics<parallel>, #tpu.dimension_semantics<arbitrary>], iteration_bounds = array<i64: 2, 1>, scalar_prefetch = 0 : i64, scratch_operands = 2 : i64, tpu.core_type = #tpu.core_type<tc>, window_params = [{transform_indices = @transform_0, window_bounds = array<i64: 4, 16, 16>}, {transform_indices = @transform_1, window_bounds = array<i64: 4, 16, 16>}, {pipeline_mode = #tpu.pipeline_mode<synchronous>, transform_indices = @transform_2, window_bounds = array<i64: 16, 128>}, {pipeline_mode = #tpu.pipeline_mode<synchronous>, transform_indices = @transform_3, window_bounds = array<i64: 8, 16>}, {transform_indices = @transform_4, window_bounds = array<i64: 1, 8, 128>}]} {
    %c0_i32 = arith.constant 0 : i32
    %0 = arith.cmpi eq, %arg1, %c0_i32 : i32
    %1 = arith.extui %0 : i1 to i32
    %c0_i32_0 = arith.constant 0 : i32
    %2 = arith.cmpi ne, %1, %c0_i32_0 : i32
    scf.if %2 {
      %cst_82 = arith.constant 0.000000e+00 : f32
      %203 = vector.broadcast %cst_82 : f32 to vector<8x16xf32>
      %c0_83 = arith.constant 0 : index
      %c0_84 = arith.constant 0 : index
      %204 = vector.load %arg7[%c0_83, %c0_84] : memref<8x16xf32, #tpu.memory_space<vmem>>, vector<8x16xf32>
      tpu.vector_store %arg7[%c0_83, %c0_84], %203 {strides = array<i32>} : memref<8x16xf32, #tpu.memory_space<vmem>>, vector<8x16xf32>,
      %cst_85 = arith.constant 0.000000e+00 : f32
      %205 = vector.broadcast %cst_85 : f32 to vector<8x128xf32>
      %c0_86 = arith.constant 0 : index
      %c0_87 = arith.constant 0 : index
      %206 = vector.load %arg8[%c0_86, %c0_87] : memref<8x128xf32, #tpu.memory_space<vmem>>, vector<8x128xf32>
      tpu.vector_store %arg8[%c0_86, %c0_87], %205 {strides = array<i32>} : memref<8x128xf32, #tpu.memory_space<vmem>>, vector<8x128xf32>,
    } else {
    }
    %c0 = arith.constant 0 : index
    %c0_1 = arith.constant 0 : index
    %c0_2 = arith.constant 0 : index
    %3 = vector.load %arg2[%c0, %c0_1, %c0_2] : memref<4x16x16xf32, #tpu.memory_space<vmem>>, vector<4x16x16xf32>
    %4 = vector.shape_cast %3 : vector<4x16x16xf32> to vector<64x16xf32>
    %c0_3 = arith.constant 0 : index
    %c0_4 = arith.constant 0 : index
    %c0_5 = arith.constant 0 : index
    %5 = vector.load %arg3[%c0_3, %c0_4, %c0_5] : memref<4x16x16xf32, #tpu.memory_space<vmem>>, vector<4x16x16xf32>
    %6 = vector.shape_cast %5 : vector<4x16x16xf32> to vector<64x16xf32>
    %c0_6 = arith.constant 0 : index
    %c0_7 = arith.constant 0 : index
    %7 = vector.load %arg4[%c0_6, %c0_7] : memref<16x128xf32, #tpu.memory_space<vmem>>, vector<16x128xf32>
    %c0_8 = arith.constant 0 : index
    %c0_9 = arith.constant 0 : index
    %8 = vector.load %arg5[%c0_8, %c0_9] : memref<8x16xf32, #tpu.memory_space<vmem>>, vector<8x16xf32>
    %9 = arith.subf %4, %6 : vector<64x16xf32>
    %c0_10 = arith.constant 0 : index
    %c0_11 = arith.constant 0 : index
    %10 = vector.load %arg7[%c0_10, %c0_11] : memref<8x16xf32, #tpu.memory_space<vmem>>, vector<8x16xf32>
    %11 = arith.mulf %9, %9 : vector<64x16xf32>
    %12 = vector.shape_cast %11 : vector<64x16xf32> to vector<8x8x16xf32>
    %cst = arith.constant dense<0.000000e+00> : vector<8x16xf32>
    %13 = vector.multi_reduction <add>, %12, %cst [0] : vector<8x8x16xf32> to vector<8x16xf32>
    %14 = arith.addf %10, %13 : vector<8x16xf32>
    %c0_12 = arith.constant 0 : index
    %c0_13 = arith.constant 0 : index
    %15 = vector.load %arg7[%c0_12, %c0_13] : memref<8x16xf32, #tpu.memory_space<vmem>>, vector<8x16xf32>
    tpu.vector_store %arg7[%c0_12, %c0_13], %14 {strides = array<i32>} : memref<8x16xf32, #tpu.memory_space<vmem>>, vector<8x16xf32>,
    %cst_14 = arith.constant dense<0.000000e+00> : vector<64x128xf32>
    %16 = tpu.matmul %4, %7, %cst_14 {dimension_numbers = #tpu.dot_dimension_numbers<[1], [0], [0], [1], [0, 0, 1, 1], [], []>} : vector<64x16xf32>, vector<16x128xf32>, vector<64x128xf32> -> vector<64x128xf32>
    %cst_15 = arith.constant dense<0.000000e+00> : vector<64x128xf32>
    %17 = tpu.matmul %6, %7, %cst_15 {dimension_numbers = #tpu.dot_dimension_numbers<[1], [0], [0], [1], [0, 0, 1, 1], [], []>} : vector<64x16xf32>, vector<16x128xf32>, vector<64x128xf32> -> vector<64x128xf32>
    %18 = arith.mulf %4, %4 : vector<64x16xf32>
    %cst_16 = arith.constant dense<0.000000e+00> : vector<64x128xf32>
    %19 = tpu.matmul %18, %7, %cst_16 {dimension_numbers = #tpu.dot_dimension_numbers<[1], [0], [0], [1], [0, 0, 1, 1], [], []>} : vector<64x16xf32>, vector<16x128xf32>, vector<64x128xf32> -> vector<64x128xf32>
    %20 = arith.mulf %6, %6 : vector<64x16xf32>
    %cst_17 = arith.constant dense<0.000000e+00> : vector<64x128xf32>
    %21 = tpu.matmul %20, %7, %cst_17 {dimension_numbers = #tpu.dot_dimension_numbers<[1], [0], [0], [1], [0, 0, 1, 1], [], []>} : vector<64x16xf32>, vector<16x128xf32>, vector<64x128xf32> -> vector<64x128xf32>
    %22 = arith.mulf %4, %6 : vector<64x16xf32>
    %cst_18 = arith.constant dense<0.000000e+00> : vector<64x128xf32>
    %23 = tpu.matmul %22, %7, %cst_18 {dimension_numbers = #tpu.dot_dimension_numbers<[1], [0], [0], [1], [0, 0, 1, 1], [], []>} : vector<64x16xf32>, vector<16x128xf32>, vector<64x128xf32> -> vector<64x128xf32>
    %cst_19 = arith.constant 0.000000e+00 : f32
    %24 = vector.broadcast %cst_19 : f32 to vector<8x128xf32>
    %25 = vector.extract_strided_slice %16 {offsets = [0, 0], sizes = [16, 128], strides = [1, 1]} : vector<64x128xf32> to vector<16x128xf32>
    %cst_20 = arith.constant dense<0.000000e+00> : vector<8x128xf32>
    %26 = tpu.matmul %8, %25, %cst_20 {dimension_numbers = #tpu.dot_dimension_numbers<[1], [0], [0], [1], [0, 0, 1, 1], [], []>} : vector<8x16xf32>, vector<16x128xf32>, vector<8x128xf32> -> vector<8x128xf32>
    %27 = vector.extract_strided_slice %17 {offsets = [0, 0], sizes = [16, 128], strides = [1, 1]} : vector<64x128xf32> to vector<16x128xf32>
    %cst_21 = arith.constant dense<0.000000e+00> : vector<8x128xf32>
    %28 = tpu.matmul %8, %27, %cst_21 {dimension_numbers = #tpu.dot_dimension_numbers<[1], [0], [0], [1], [0, 0, 1, 1], [], []>} : vector<8x16xf32>, vector<16x128xf32>, vector<8x128xf32> -> vector<8x128xf32>
    %29 = vector.extract_strided_slice %19 {offsets = [0, 0], sizes = [16, 128], strides = [1, 1]} : vector<64x128xf32> to vector<16x128xf32>
    %cst_22 = arith.constant dense<0.000000e+00> : vector<8x128xf32>
    %30 = tpu.matmul %8, %29, %cst_22 {dimension_numbers = #tpu.dot_dimension_numbers<[1], [0], [0], [1], [0, 0, 1, 1], [], []>} : vector<8x16xf32>, vector<16x128xf32>, vector<8x128xf32> -> vector<8x128xf32>
    %31 = vector.extract_strided_slice %21 {offsets = [0, 0], sizes = [16, 128], strides = [1, 1]} : vector<64x128xf32> to vector<16x128xf32>
    %cst_23 = arith.constant dense<0.000000e+00> : vector<8x128xf32>
    %32 = tpu.matmul %8, %31, %cst_23 {dimension_numbers = #tpu.dot_dimension_numbers<[1], [0], [0], [1], [0, 0, 1, 1], [], []>} : vector<8x16xf32>, vector<16x128xf32>, vector<8x128xf32> -> vector<8x128xf32>
    %33 = vector.extract_strided_slice %23 {offsets = [0, 0], sizes = [16, 128], strides = [1, 1]} : vector<64x128xf32> to vector<16x128xf32>
    %cst_24 = arith.constant dense<0.000000e+00> : vector<8x128xf32>
    %34 = tpu.matmul %8, %33, %cst_24 {dimension_numbers = #tpu.dot_dimension_numbers<[1], [0], [0], [1], [0, 0, 1, 1], [], []>} : vector<8x16xf32>, vector<16x128xf32>, vector<8x128xf32> -> vector<8x128xf32>
    %35 = arith.mulf %26, %26 : vector<8x128xf32>
    %36 = arith.mulf %28, %28 : vector<8x128xf32>
    %37 = arith.mulf %26, %28 : vector<8x128xf32>
    %38 = arith.subf %30, %35 : vector<8x128xf32>
    %39 = arith.subf %32, %36 : vector<8x128xf32>
    %40 = arith.subf %34, %37 : vector<8x128xf32>
    %cst_25 = arith.constant 2.000000e+00 : f32
    %41 = vector.broadcast %cst_25 : f32 to vector<8x128xf32>
    %42 = arith.mulf %41, %37 : vector<8x128xf32>
    %cst_26 = arith.constant 9.99999974E-5 : f32
    %43 = vector.broadcast %cst_26 : f32 to vector<8x128xf32>
    %44 = arith.addf %42, %43 : vector<8x128xf32>
    %cst_27 = arith.constant 2.000000e+00 : f32
    %45 = vector.broadcast %cst_27 : f32 to vector<8x128xf32>
    %46 = arith.mulf %45, %40 : vector<8x128xf32>
    %cst_28 = arith.constant 8.99999984E-4 : f32
    %47 = vector.broadcast %cst_28 : f32 to vector<8x128xf32>
    %48 = arith.addf %46, %47 : vector<8x128xf32>
    %49 = arith.mulf %44, %48 : vector<8x128xf32>
    %50 = arith.addf %35, %36 : vector<8x128xf32>
    %cst_29 = arith.constant 9.99999974E-5 : f32
    %51 = vector.broadcast %cst_29 : f32 to vector<8x128xf32>
    %52 = arith.addf %50, %51 : vector<8x128xf32>
    %53 = arith.addf %38, %39 : vector<8x128xf32>
    %cst_30 = arith.constant 8.99999984E-4 : f32
    %54 = vector.broadcast %cst_30 : f32 to vector<8x128xf32>
    %55 = arith.addf %53, %54 : vector<8x128xf32>
    %56 = arith.mulf %52, %55 : vector<8x128xf32>
    %57 = tpu.reciprocal %56 {approx = true} : vector<8x128xf32> -> vector<8x128xf32>
    %58 = arith.mulf %56, %57 : vector<8x128xf32>
    %cst_31 = arith.constant 2.000000e+00 : f32
    %59 = vector.broadcast %cst_31 : f32 to vector<8x128xf32>
    %60 = arith.subf %59, %58 : vector<8x128xf32>
    %61 = arith.mulf %57, %60 : vector<8x128xf32>
    %62 = arith.mulf %49, %61 : vector<8x128xf32>
    %cst_32 = arith.constant 1.000000e+00 : f32
    %63 = vector.broadcast %cst_32 : f32 to vector<8x128xf32>
    %64 = arith.subf %62, %63 : vector<8x128xf32>
    %65 = vector.shape_cast %64 : vector<8x128xf32> to vector<1x8x128xf32>
    %cst_33 = arith.constant dense<0.000000e+00> : vector<8x128xf32>
    %66 = vector.multi_reduction <add>, %65, %cst_33 [0] : vector<1x8x128xf32> to vector<8x128xf32>
    %67 = arith.addf %24, %66 : vector<8x128xf32>
    %68 = vector.extract_strided_slice %16 {offsets = [16, 0], sizes = [16, 128], strides = [1, 1]} : vector<64x128xf32> to vector<16x128xf32>
    %cst_34 = arith.constant dense<0.000000e+00> : vector<8x128xf32>
    %69 = tpu.matmul %8, %68, %cst_34 {dimension_numbers = #tpu.dot_dimension_numbers<[1], [0], [0], [1], [0, 0, 1, 1], [], []>} : vector<8x16xf32>, vector<16x128xf32>, vector<8x128xf32> -> vector<8x128xf32>
    %70 = vector.extract_strided_slice %17 {offsets = [16, 0], sizes = [16, 128], strides = [1, 1]} : vector<64x128xf32> to vector<16x128xf32>
    %cst_35 = arith.constant dense<0.000000e+00> : vector<8x128xf32>
    %71 = tpu.matmul %8, %70, %cst_35 {dimension_numbers = #tpu.dot_dimension_numbers<[1], [0], [0], [1], [0, 0, 1, 1], [], []>} : vector<8x16xf32>, vector<16x128xf32>, vector<8x128xf32> -> vector<8x128xf32>
    %72 = vector.extract_strided_slice %19 {offsets = [16, 0], sizes = [16, 128], strides = [1, 1]} : vector<64x128xf32> to vector<16x128xf32>
    %cst_36 = arith.constant dense<0.000000e+00> : vector<8x128xf32>
    %73 = tpu.matmul %8, %72, %cst_36 {dimension_numbers = #tpu.dot_dimension_numbers<[1], [0], [0], [1], [0, 0, 1, 1], [], []>} : vector<8x16xf32>, vector<16x128xf32>, vector<8x128xf32> -> vector<8x128xf32>
    %74 = vector.extract_strided_slice %21 {offsets = [16, 0], sizes = [16, 128], strides = [1, 1]} : vector<64x128xf32> to vector<16x128xf32>
    %cst_37 = arith.constant dense<0.000000e+00> : vector<8x128xf32>
    %75 = tpu.matmul %8, %74, %cst_37 {dimension_numbers = #tpu.dot_dimension_numbers<[1], [0], [0], [1], [0, 0, 1, 1], [], []>} : vector<8x16xf32>, vector<16x128xf32>, vector<8x128xf32> -> vector<8x128xf32>
    %76 = vector.extract_strided_slice %23 {offsets = [16, 0], sizes = [16, 128], strides = [1, 1]} : vector<64x128xf32> to vector<16x128xf32>
    %cst_38 = arith.constant dense<0.000000e+00> : vector<8x128xf32>
    %77 = tpu.matmul %8, %76, %cst_38 {dimension_numbers = #tpu.dot_dimension_numbers<[1], [0], [0], [1], [0, 0, 1, 1], [], []>} : vector<8x16xf32>, vector<16x128xf32>, vector<8x128xf32> -> vector<8x128xf32>
    %78 = arith.mulf %69, %69 : vector<8x128xf32>
    %79 = arith.mulf %71, %71 : vector<8x128xf32>
    %80 = arith.mulf %69, %71 : vector<8x128xf32>
    %81 = arith.subf %73, %78 : vector<8x128xf32>
    %82 = arith.subf %75, %79 : vector<8x128xf32>
    %83 = arith.subf %77, %80 : vector<8x128xf32>
    %cst_39 = arith.constant 2.000000e+00 : f32
    %84 = vector.broadcast %cst_39 : f32 to vector<8x128xf32>
    %85 = arith.mulf %84, %80 : vector<8x128xf32>
    %cst_40 = arith.constant 9.99999974E-5 : f32
    %86 = vector.broadcast %cst_40 : f32 to vector<8x128xf32>
    %87 = arith.addf %85, %86 : vector<8x128xf32>
    %cst_41 = arith.constant 2.000000e+00 : f32
    %88 = vector.broadcast %cst_41 : f32 to vector<8x128xf32>
    %89 = arith.mulf %88, %83 : vector<8x128xf32>
    %cst_42 = arith.constant 8.99999984E-4 : f32
    %90 = vector.broadcast %cst_42 : f32 to vector<8x128xf32>
    %91 = arith.addf %89, %90 : vector<8x128xf32>
    %92 = arith.mulf %87, %91 : vector<8x128xf32>
    %93 = arith.addf %78, %79 : vector<8x128xf32>
    %cst_43 = arith.constant 9.99999974E-5 : f32
    %94 = vector.broadcast %cst_43 : f32 to vector<8x128xf32>
    %95 = arith.addf %93, %94 : vector<8x128xf32>
    %96 = arith.addf %81, %82 : vector<8x128xf32>
    %cst_44 = arith.constant 8.99999984E-4 : f32
    %97 = vector.broadcast %cst_44 : f32 to vector<8x128xf32>
    %98 = arith.addf %96, %97 : vector<8x128xf32>
    %99 = arith.mulf %95, %98 : vector<8x128xf32>
    %100 = tpu.reciprocal %99 {approx = true} : vector<8x128xf32> -> vector<8x128xf32>
    %101 = arith.mulf %99, %100 : vector<8x128xf32>
    %cst_45 = arith.constant 2.000000e+00 : f32
    %102 = vector.broadcast %cst_45 : f32 to vector<8x128xf32>
    %103 = arith.subf %102, %101 : vector<8x128xf32>
    %104 = arith.mulf %100, %103 : vector<8x128xf32>
    %105 = arith.mulf %92, %104 : vector<8x128xf32>
    %cst_46 = arith.constant 1.000000e+00 : f32
    %106 = vector.broadcast %cst_46 : f32 to vector<8x128xf32>
    %107 = arith.subf %105, %106 : vector<8x128xf32>
    %108 = vector.shape_cast %107 : vector<8x128xf32> to vector<1x8x128xf32>
    %cst_47 = arith.constant dense<0.000000e+00> : vector<8x128xf32>
    %109 = vector.multi_reduction <add>, %108, %cst_47 [0] : vector<1x8x128xf32> to vector<8x128xf32>
    %110 = arith.addf %67, %109 : vector<8x128xf32>
    %111 = vector.extract_strided_slice %16 {offsets = [32, 0], sizes = [16, 128], strides = [1, 1]} : vector<64x128xf32> to vector<16x128xf32>
    %cst_48 = arith.constant dense<0.000000e+00> : vector<8x128xf32>
    %112 = tpu.matmul %8, %111, %cst_48 {dimension_numbers = #tpu.dot_dimension_numbers<[1], [0], [0], [1], [0, 0, 1, 1], [], []>} : vector<8x16xf32>, vector<16x128xf32>, vector<8x128xf32> -> vector<8x128xf32>
    %113 = vector.extract_strided_slice %17 {offsets = [32, 0], sizes = [16, 128], strides = [1, 1]} : vector<64x128xf32> to vector<16x128xf32>
    %cst_49 = arith.constant dense<0.000000e+00> : vector<8x128xf32>
    %114 = tpu.matmul %8, %113, %cst_49 {dimension_numbers = #tpu.dot_dimension_numbers<[1], [0], [0], [1], [0, 0, 1, 1], [], []>} : vector<8x16xf32>, vector<16x128xf32>, vector<8x128xf32> -> vector<8x128xf32>
    %115 = vector.extract_strided_slice %19 {offsets = [32, 0], sizes = [16, 128], strides = [1, 1]} : vector<64x128xf32> to vector<16x128xf32>
    %cst_50 = arith.constant dense<0.000000e+00> : vector<8x128xf32>
    %116 = tpu.matmul %8, %115, %cst_50 {dimension_numbers = #tpu.dot_dimension_numbers<[1], [0], [0], [1], [0, 0, 1, 1], [], []>} : vector<8x16xf32>, vector<16x128xf32>, vector<8x128xf32> -> vector<8x128xf32>
    %117 = vector.extract_strided_slice %21 {offsets = [32, 0], sizes = [16, 128], strides = [1, 1]} : vector<64x128xf32> to vector<16x128xf32>
    %cst_51 = arith.constant dense<0.000000e+00> : vector<8x128xf32>
    %118 = tpu.matmul %8, %117, %cst_51 {dimension_numbers = #tpu.dot_dimension_numbers<[1], [0], [0], [1], [0, 0, 1, 1], [], []>} : vector<8x16xf32>, vector<16x128xf32>, vector<8x128xf32> -> vector<8x128xf32>
    %119 = vector.extract_strided_slice %23 {offsets = [32, 0], sizes = [16, 128], strides = [1, 1]} : vector<64x128xf32> to vector<16x128xf32>
    %cst_52 = arith.constant dense<0.000000e+00> : vector<8x128xf32>
    %120 = tpu.matmul %8, %119, %cst_52 {dimension_numbers = #tpu.dot_dimension_numbers<[1], [0], [0], [1], [0, 0, 1, 1], [], []>} : vector<8x16xf32>, vector<16x128xf32>, vector<8x128xf32> -> vector<8x128xf32>
    %121 = arith.mulf %112, %112 : vector<8x128xf32>
    %122 = arith.mulf %114, %114 : vector<8x128xf32>
    %123 = arith.mulf %112, %114 : vector<8x128xf32>
    %124 = arith.subf %116, %121 : vector<8x128xf32>
    %125 = arith.subf %118, %122 : vector<8x128xf32>
    %126 = arith.subf %120, %123 : vector<8x128xf32>
    %cst_53 = arith.constant 2.000000e+00 : f32
    %127 = vector.broadcast %cst_53 : f32 to vector<8x128xf32>
    %128 = arith.mulf %127, %123 : vector<8x128xf32>
    %cst_54 = arith.constant 9.99999974E-5 : f32
    %129 = vector.broadcast %cst_54 : f32 to vector<8x128xf32>
    %130 = arith.addf %128, %129 : vector<8x128xf32>
    %cst_55 = arith.constant 2.000000e+00 : f32
    %131 = vector.broadcast %cst_55 : f32 to vector<8x128xf32>
    %132 = arith.mulf %131, %126 : vector<8x128xf32>
    %cst_56 = arith.constant 8.99999984E-4 : f32
    %133 = vector.broadcast %cst_56 : f32 to vector<8x128xf32>
    %134 = arith.addf %132, %133 : vector<8x128xf32>
    %135 = arith.mulf %130, %134 : vector<8x128xf32>
    %136 = arith.addf %121, %122 : vector<8x128xf32>
    %cst_57 = arith.constant 9.99999974E-5 : f32
    %137 = vector.broadcast %cst_57 : f32 to vector<8x128xf32>
    %138 = arith.addf %136, %137 : vector<8x128xf32>
    %139 = arith.addf %124, %125 : vector<8x128xf32>
    %cst_58 = arith.constant 8.99999984E-4 : f32
    %140 = vector.broadcast %cst_58 : f32 to vector<8x128xf32>
    %141 = arith.addf %139, %140 : vector<8x128xf32>
    %142 = arith.mulf %138, %141 : vector<8x128xf32>
    %143 = tpu.reciprocal %142 {approx = true} : vector<8x128xf32> -> vector<8x128xf32>
    %144 = arith.mulf %142, %143 : vector<8x128xf32>
    %cst_59 = arith.constant 2.000000e+00 : f32
    %145 = vector.broadcast %cst_59 : f32 to vector<8x128xf32>
    %146 = arith.subf %145, %144 : vector<8x128xf32>
    %147 = arith.mulf %143, %146 : vector<8x128xf32>
    %148 = arith.mulf %135, %147 : vector<8x128xf32>
    %cst_60 = arith.constant 1.000000e+00 : f32
    %149 = vector.broadcast %cst_60 : f32 to vector<8x128xf32>
    %150 = arith.subf %148, %149 : vector<8x128xf32>
    %151 = vector.shape_cast %150 : vector<8x128xf32> to vector<1x8x128xf32>
    %cst_61 = arith.constant dense<0.000000e+00> : vector<8x128xf32>
    %152 = vector.multi_reduction <add>, %151, %cst_61 [0] : vector<1x8x128xf32> to vector<8x128xf32>
    %153 = arith.addf %110, %152 : vector<8x128xf32>
    %154 = vector.extract_strided_slice %16 {offsets = [48, 0], sizes = [16, 128], strides = [1, 1]} : vector<64x128xf32> to vector<16x128xf32>
    %cst_62 = arith.constant dense<0.000000e+00> : vector<8x128xf32>
    %155 = tpu.matmul %8, %154, %cst_62 {dimension_numbers = #tpu.dot_dimension_numbers<[1], [0], [0], [1], [0, 0, 1, 1], [], []>} : vector<8x16xf32>, vector<16x128xf32>, vector<8x128xf32> -> vector<8x128xf32>
    %156 = vector.extract_strided_slice %17 {offsets = [48, 0], sizes = [16, 128], strides = [1, 1]} : vector<64x128xf32> to vector<16x128xf32>
    %cst_63 = arith.constant dense<0.000000e+00> : vector<8x128xf32>
    %157 = tpu.matmul %8, %156, %cst_63 {dimension_numbers = #tpu.dot_dimension_numbers<[1], [0], [0], [1], [0, 0, 1, 1], [], []>} : vector<8x16xf32>, vector<16x128xf32>, vector<8x128xf32> -> vector<8x128xf32>
    %158 = vector.extract_strided_slice %19 {offsets = [48, 0], sizes = [16, 128], strides = [1, 1]} : vector<64x128xf32> to vector<16x128xf32>
    %cst_64 = arith.constant dense<0.000000e+00> : vector<8x128xf32>
    %159 = tpu.matmul %8, %158, %cst_64 {dimension_numbers = #tpu.dot_dimension_numbers<[1], [0], [0], [1], [0, 0, 1, 1], [], []>} : vector<8x16xf32>, vector<16x128xf32>, vector<8x128xf32> -> vector<8x128xf32>
    %160 = vector.extract_strided_slice %21 {offsets = [48, 0], sizes = [16, 128], strides = [1, 1]} : vector<64x128xf32> to vector<16x128xf32>
    %cst_65 = arith.constant dense<0.000000e+00> : vector<8x128xf32>
    %161 = tpu.matmul %8, %160, %cst_65 {dimension_numbers = #tpu.dot_dimension_numbers<[1], [0], [0], [1], [0, 0, 1, 1], [], []>} : vector<8x16xf32>, vector<16x128xf32>, vector<8x128xf32> -> vector<8x128xf32>
    %162 = vector.extract_strided_slice %23 {offsets = [48, 0], sizes = [16, 128], strides = [1, 1]} : vector<64x128xf32> to vector<16x128xf32>
    %cst_66 = arith.constant dense<0.000000e+00> : vector<8x128xf32>
    %163 = tpu.matmul %8, %162, %cst_66 {dimension_numbers = #tpu.dot_dimension_numbers<[1], [0], [0], [1], [0, 0, 1, 1], [], []>} : vector<8x16xf32>, vector<16x128xf32>, vector<8x128xf32> -> vector<8x128xf32>
    %164 = arith.mulf %155, %155 : vector<8x128xf32>
    %165 = arith.mulf %157, %157 : vector<8x128xf32>
    %166 = arith.mulf %155, %157 : vector<8x128xf32>
    %167 = arith.subf %159, %164 : vector<8x128xf32>
    %168 = arith.subf %161, %165 : vector<8x128xf32>
    %169 = arith.subf %163, %166 : vector<8x128xf32>
    %cst_67 = arith.constant 2.000000e+00 : f32
    %170 = vector.broadcast %cst_67 : f32 to vector<8x128xf32>
    %171 = arith.mulf %170, %166 : vector<8x128xf32>
    %cst_68 = arith.constant 9.99999974E-5 : f32
    %172 = vector.broadcast %cst_68 : f32 to vector<8x128xf32>
    %173 = arith.addf %171, %172 : vector<8x128xf32>
    %cst_69 = arith.constant 2.000000e+00 : f32
    %174 = vector.broadcast %cst_69 : f32 to vector<8x128xf32>
    %175 = arith.mulf %174, %169 : vector<8x128xf32>
    %cst_70 = arith.constant 8.99999984E-4 : f32
    %176 = vector.broadcast %cst_70 : f32 to vector<8x128xf32>
    %177 = arith.addf %175, %176 : vector<8x128xf32>
    %178 = arith.mulf %173, %177 : vector<8x128xf32>
    %179 = arith.addf %164, %165 : vector<8x128xf32>
    %cst_71 = arith.constant 9.99999974E-5 : f32
    %180 = vector.broadcast %cst_71 : f32 to vector<8x128xf32>
    %181 = arith.addf %179, %180 : vector<8x128xf32>
    %182 = arith.addf %167, %168 : vector<8x128xf32>
    %cst_72 = arith.constant 8.99999984E-4 : f32
    %183 = vector.broadcast %cst_72 : f32 to vector<8x128xf32>
    %184 = arith.addf %182, %183 : vector<8x128xf32>
    %185 = arith.mulf %181, %184 : vector<8x128xf32>
    %186 = tpu.reciprocal %185 {approx = true} : vector<8x128xf32> -> vector<8x128xf32>
    %187 = arith.mulf %185, %186 : vector<8x128xf32>
    %cst_73 = arith.constant 2.000000e+00 : f32
    %188 = vector.broadcast %cst_73 : f32 to vector<8x128xf32>
    %189 = arith.subf %188, %187 : vector<8x128xf32>
    %190 = arith.mulf %186, %189 : vector<8x128xf32>
    %191 = arith.mulf %178, %190 : vector<8x128xf32>
    %cst_74 = arith.constant 1.000000e+00 : f32
    %192 = vector.broadcast %cst_74 : f32 to vector<8x128xf32>
    %193 = arith.subf %191, %192 : vector<8x128xf32>
    %194 = vector.shape_cast %193 : vector<8x128xf32> to vector<1x8x128xf32>
    %cst_75 = arith.constant dense<0.000000e+00> : vector<8x128xf32>
    %195 = vector.multi_reduction <add>, %194, %cst_75 [0] : vector<1x8x128xf32> to vector<8x128xf32>
    %196 = arith.addf %153, %195 : vector<8x128xf32>
    %c0_76 = arith.constant 0 : index
    %c0_77 = arith.constant 0 : index
    %197 = vector.load %arg8[%c0_76, %c0_77] : memref<8x128xf32, #tpu.memory_space<vmem>>, vector<8x128xf32>
    %198 = arith.addf %197, %196 : vector<8x128xf32>
    %c0_78 = arith.constant 0 : index
    %c0_79 = arith.constant 0 : index
    %199 = vector.load %arg8[%c0_78, %c0_79] : memref<8x128xf32, #tpu.memory_space<vmem>>, vector<8x128xf32>
    tpu.vector_store %arg8[%c0_78, %c0_79], %198 {strides = array<i32>} : memref<8x128xf32, #tpu.memory_space<vmem>>, vector<8x128xf32>,
    %c0_i32_80 = arith.constant 0 : i32
    %200 = arith.cmpi eq, %arg1, %c0_i32_80 : i32
    %201 = arith.extui %200 : i1 to i32
    %c0_i32_81 = arith.constant 0 : i32
    %202 = arith.cmpi ne, %201, %c0_i32_81 : i32
    scf.if %202 {
      %c0_82 = arith.constant 0 : index
      %c0_83 = arith.constant 0 : index
      %203 = vector.load %arg7[%c0_82, %c0_83] : memref<8x16xf32, #tpu.memory_space<vmem>>, vector<8x16xf32>
      %204 = vector.shape_cast %203 : vector<8x16xf32> to vector<1x8x16xf32>
      %cst_84 = arith.constant dense<0.000000e+00> : vector<1xf32>
      %205 = vector.multi_reduction <add>, %204, %cst_84 [1, 2] : vector<1x8x16xf32> to vector<1xf32>
      %206 = vector.shape_cast %205 : vector<1xf32> to vector<1x1x1xf32>
      %207 = vector.extract %206[0, 0, 0] : f32 from vector<1x1x1xf32>
      %c0_85 = arith.constant 0 : index
      %c0_86 = arith.constant 0 : index
      %208 = vector.load %arg8[%c0_85, %c0_86] : memref<8x128xf32, #tpu.memory_space<vmem>>, vector<8x128xf32>
      %209 = vector.shape_cast %208 : vector<8x128xf32> to vector<1x8x128xf32>
      %cst_87 = arith.constant dense<0.000000e+00> : vector<1xf32>
      %210 = vector.multi_reduction <add>, %209, %cst_87 [1, 2] : vector<1x8x128xf32> to vector<1xf32>
      %211 = vector.shape_cast %210 : vector<1xf32> to vector<1x1x1xf32>
      %212 = vector.extract %211[0, 0, 0] : f32 from vector<1x1x1xf32>
      %213 = tpu.iota {dimensions = array<i32: 2>} : vector<1x8x128xi32>
      %c0_i32_88 = arith.constant 0 : i32
      %214 = vector.broadcast %c0_i32_88 : i32 to vector<1x8x128xi32>
      %215 = arith.cmpi eq, %213, %214 : vector<1x8x128xi32>
      %cst_89 = arith.constant 0.000000e+00 : f32
      %216 = vector.broadcast %207 : f32 to vector<1x8x128xf32>
      %217 = vector.broadcast %cst_89 : f32 to vector<1x8x128xf32>
      %218 = arith.select %215, %216, %217 : vector<1x8x128xi1>, vector<1x8x128xf32>
      %c1_i32 = arith.constant 1 : i32
      %219 = vector.broadcast %c1_i32 : i32 to vector<1x8x128xi32>
      %220 = arith.cmpi eq, %213, %219 : vector<1x8x128xi32>
      %cst_90 = arith.constant 0.000000e+00 : f32
      %221 = vector.broadcast %212 : f32 to vector<1x8x128xf32>
      %222 = vector.broadcast %cst_90 : f32 to vector<1x8x128xf32>
      %223 = arith.select %220, %221, %222 : vector<1x8x128xi1>, vector<1x8x128xf32>
      %224 = arith.addf %218, %223 : vector<1x8x128xf32>
      %c0_91 = arith.constant 0 : index
      %c0_92 = arith.constant 0 : index
      %c0_93 = arith.constant 0 : index
      %225 = vector.load %arg6[%c0_91, %c0_92, %c0_93] : memref<1x8x128xf32, #tpu.memory_space<vmem>>, vector<1x8x128xf32>
      tpu.vector_store %arg6[%c0_91, %c0_92, %c0_93], %224 {strides = array<i32>} : memref<1x8x128xf32, #tpu.memory_space<vmem>>, vector<1x8x128xf32>,
    } else {
    }
    return
  }
  func.func @transform_0(%arg0: i32, %arg1: i32) -> (i32, i32, i32) {
    %c1_i32 = arith.constant 1 : i32
    %0 = arith.muli %arg0, %c1_i32 : i32
    %1 = arith.addi %0, %arg1 : i32
    %c0_i32 = arith.constant 0 : i32
    %c0_i32_0 = arith.constant 0 : i32
    %c0_i32_1 = arith.constant 0 : i32
    return %1, %c0_i32, %c0_i32_0 : i32, i32, i32
  }
  func.func @transform_1(%arg0: i32, %arg1: i32) -> (i32, i32, i32) {
    %c1_i32 = arith.constant 1 : i32
    %0 = arith.muli %arg0, %c1_i32 : i32
    %1 = arith.addi %0, %arg1 : i32
    %c0_i32 = arith.constant 0 : i32
    %c0_i32_0 = arith.constant 0 : i32
    %c0_i32_1 = arith.constant 0 : i32
    return %1, %c0_i32, %c0_i32_0 : i32, i32, i32
  }
  func.func @transform_2(%arg0: i32, %arg1: i32) -> (i32, i32) {
    %c0_i32 = arith.constant 0 : i32
    %c0_i32_0 = arith.constant 0 : i32
    %c0_i32_1 = arith.constant 0 : i32
    return %c0_i32, %c0_i32_0 : i32, i32
  }
  func.func @transform_3(%arg0: i32, %arg1: i32) -> (i32, i32) {
    %c0_i32 = arith.constant 0 : i32
    %c0_i32_0 = arith.constant 0 : i32
    %c0_i32_1 = arith.constant 0 : i32
    return %c0_i32, %c0_i32_0 : i32, i32
  }
  func.func @transform_4(%arg0: i32, %arg1: i32) -> (i32, i32, i32) {
    %c0_i32 = arith.constant 0 : i32
    %c0_i32_0 = arith.constant 0 : i32
    %c0_i32_1 = arith.constant 0 : i32
    return %arg0, %c0_i32, %c0_i32_0 : i32, i32, i32
  }
}

</mosaic_0001>

<llo_original>
// kernel: tpu_custom_call.1
$region0: #{tpu_custom_call.1}
  #allocation0 [shape = 'u32[]', space=smem, size = 0x4, offset = 0x4, fixed_abs, tag = 'smem constant byte address 0x4 - core index']
  #allocation1 [shape = 'u32[144,128]{1,0:T(1,128)}', space=vmem, size = 0x12000, scoped, tag = 'internal scratch']
  #allocation2 [shape = 'f32[8,16]{1,0:T(8,128)}', space=vmem, size = 0x1000, scoped, tag = 'scratch operand']
  #allocation3 [shape = 'f32[8,128]{1,0:T(8,128)}', space=vmem, size = 0x1000, scoped, tag = 'scratch operand']
  %s0 = inlined_call_operand.hbm [shape: f32[8,16,16], index: 0, kind: input, shape index: {}]
  %s1 = inlined_call_operand.hbm [shape: f32[8,16,16], index: 1, kind: input, shape index: {}]
  %s2 = inlined_call_operand.hbm [shape: f32[16,128], index: 2, kind: input, shape index: {}]
  %s3 = inlined_call_operand.hbm [shape: f32[8,16], index: 3, kind: input, shape index: {}]
  %s4 = inlined_call_operand.hbm [shape: f32[2,8,128], index: 4, kind: output, shape index: {}]
  %s5 = sld [smem:[#allocation0]]
  $region73: #{tpu_custom_call.1} parent=0
    _
  %s7 = ssub.s32 1, %s5
  %s8 = scalar_select 0, %s7, %s5
  $region1: #{tpu_custom_call.1} parent=0
    #allocation4 [shape = 'u8[65536]{0}', space=vmem, size = 0x10000, scoped, tag = 'input window, operand 0']
    #allocation5 [shape = 's32[2]{0}', space=sflag, size = 0x8, scoped, tag = 'scoped memory for tpu_custom_call.1']
    #allocation6 [shape = 's32[2]{0}', space=sflag, size = 0x8, scoped, tag = 'scoped memory for tpu_custom_call.1']
    #allocation7 [shape = 'u8[65536]{0}', space=vmem, size = 0x10000, scoped, tag = 'input window, operand 1']
    #allocation8 [shape = 's32[2]{0}', space=sflag, size = 0x8, scoped, tag = 'scoped memory for tpu_custom_call.1']
    #allocation9 [shape = 'u8[8192]{0}', space=vmem, size = 0x2000, scoped, tag = 'input window, operand 2, single buffered']
    #allocation10 [shape = 'u8[4096]{0}', space=vmem, size = 0x1000, scoped, tag = 'input window, operand 3, single buffered']
    #allocation11 [shape = 's32[1]{0}', space=sflag, size = 0x4, scoped, tag = 'scoped memory for tpu_custom_call.1']
    #allocation12 [shape = 'u8[8192]{0}', space=vmem, size = 0x2000, scoped, tag = 'output window, operand 0']
    %9 = vsyncpa [#allocation5], 0
    %s10 = scalar_lea.sflag [#allocation5], 1
    %11 = vsyncpa %s10, 0
    %12 = vsyncpa [#allocation8], 0
    %s13 = scalar_lea.sflag [#allocation8], 1
    %14 = vsyncpa %s13, 0
    %15 = vsyncpa [#allocation11], 0
    %16 = vsyncpa [#allocation6], 0
    %s17 = scalar_lea.sflag [#allocation6], 1
    %18 = vsyncpa %s17, 0
    loop: start=0, step=1, limit=4
    $region2: #{tpu_custom_call.1} parent=1 // loop_pre_header
      _
    $region3: #{tpu_custom_call.1} parent=1 // loop_header
      %s20 = sphi 0, %s24
      %p21 = scmp.ge.s32.totalorder %s20, 4
      %s27 = sphi 0, %s39
      %s28 = sphi 0, %s35
      %s29 = sphi 0, %s27
      %s30 = sphi 0, %s28
      %s31 = sphi 0, %s29
      %s32 = sphi 0, %s30
      %s44 = sphi 0, %s46
      %s47 = sphi 0, %s44
      %s48 = sphi 0, %s47
      %s64 = sphi 0, %s48
      %s72 = sphi 0, %s74
      %s75 = sphi 0, %s72
      %s76 = sphi 0, %s75
      %s92 = sphi 0, %s76
      %s96 = sphi 0, %s96
      %s98 = sphi 0, %s96
      %s99 = sphi 0, %s98
      %s113 = sphi 0, %s99
      %s117 = sphi 0, %s117
      %s119 = sphi 0, %s117
      %s120 = sphi 0, %s119
      %s134 = sphi 0, %s120
      %s140 = sphi 0, %s142
      %s143 = sphi 0, %s140
      %s144 = sphi 0, %s143
      %s160 = sphi 0, %s144
    $region4: #{tpu_custom_call.1} parent=1 // loop_header_branch
      %23 = sbr.rel (%p21) target = $region8
    $region5: #{tpu_custom_call.1} parent=1 // loop_body
      %s25 = ssub.s32 %s20, 1
      %s26 = ssub.s32 %s20, 2
      %s33 = sadd.s32 1, %s28
      %p34 = scmp.ge.s32.totalorder %s33, 1
      %s35 = scalar_select %p34, 0, %s33
      %s36 = sadd.s32 1, %s27
      %s37 = scalar_select %p34, %s36, %s27
      %p38 = scmp.ge.s32.totalorder %s37, 2
      %s39 = scalar_select %p38, 0, %s37
      %s40 = sadd.s32 %s27, %s28
      %s41 = sadd.s32 %s39, %s35
      %s42 = ssub.s32 %s40, %s41
      %p43 = scmp.eq.s32.totalorder %s42, 0
      %s45 = sadd.s32 %s44, 1
      %s46 = scalar_select %p43, %s44, %s45
      %p49 = pneg %p43
      %p50 = scmp.eq.s32.totalorder %s20, 1
      %p51 = por %p49, %p50
      %p52 = scmp.ne.s32.totalorder %s44, %s47
      %p53 = scmp.eq.s32.totalorder %s20, 0
      %p54 = por %p52, %p53
      %p55 = scmp.ne.s32.totalorder %s44, %s47
      %p56 = scmp.eq.s32.totalorder %s25, 1
      %p57 = por %p55, %p56
      %p58 = scmp.ne.s32.totalorder %s47, %s48
      %p59 = scmp.eq.s32.totalorder %s25, 0
      %p60 = por %p58, %p59
      %p61 = scmp.ne.s32.totalorder %s47, %s48
      %p62 = scmp.eq.s32.totalorder %s26, 1
      %p63 = por %p61, %p62
      %p65 = scmp.ne.s32.totalorder %s48, %s64
      %p66 = scmp.eq.s32.totalorder %s26, 0
      %p67 = por %p65, %p66
      %s68 = sadd.s32 %s27, %s28
      %s69 = sadd.s32 %s39, %s35
      %s70 = ssub.s32 %s68, %s69
      %p71 = scmp.eq.s32.totalorder %s70, 0
      %s73 = sadd.s32 %s72, 1
      %s74 = scalar_select %p71, %s72, %s73
      %p77 = pneg %p71
      %p78 = scmp.eq.s32.totalorder %s20, 1
      %p79 = por %p77, %p78
      %p80 = scmp.ne.s32.totalorder %s72, %s75
      %p81 = scmp.eq.s32.totalorder %s20, 0
      %p82 = por %p80, %p81
      %p83 = scmp.ne.s32.totalorder %s72, %s75
      %p84 = scmp.eq.s32.totalorder %s25, 1
      %p85 = por %p83, %p84
      %p86 = scmp.ne.s32.totalorder %s75, %s76
      %p87 = scmp.eq.s32.totalorder %s25, 0
      %p88 = por %p86, %p87
      %p89 = scmp.ne.s32.totalorder %s75, %s76
      %p90 = scmp.eq.s32.totalorder %s26, 1
      %p91 = por %p89, %p90
      %p93 = scmp.ne.s32.totalorder %s76, %s92
      %p94 = scmp.eq.s32.totalorder %s26, 0
      %p95 = por %p93, %p94
      %s97 = sadd.s32 %s96, 1
      %p100 = scmp.eq.s32.totalorder %s20, 1
      %p101 = scmp.ne.s32.totalorder %s96, %s98
      %p102 = scmp.eq.s32.totalorder %s20, 0
      %p103 = por %p101, %p102
      %p104 = scmp.ne.s32.totalorder %s96, %s98
      %p105 = scmp.eq.s32.totalorder %s25, 1
      %p106 = por %p104, %p105
      %p107 = scmp.ne.s32.totalorder %s98, %s99
      %p108 = scmp.eq.s32.totalorder %s25, 0
      %p109 = por %p107, %p108
      %p110 = scmp.ne.s32.totalorder %s98, %s99
      %p111 = scmp.eq.s32.totalorder %s26, 1
      %p112 = por %p110, %p111
      %p114 = scmp.ne.s32.totalorder %s99, %s113
      %p115 = scmp.eq.s32.totalorder %s26, 0
      %p116 = por %p114, %p115
      %s118 = sadd.s32 %s117, 1
      %p121 = scmp.eq.s32.totalorder %s20, 1
      %p122 = scmp.ne.s32.totalorder %s117, %s119
      %p123 = scmp.eq.s32.totalorder %s20, 0
      %p124 = por %p122, %p123
      %p125 = scmp.ne.s32.totalorder %s117, %s119
      %p126 = scmp.eq.s32.totalorder %s25, 1
      %p127 = por %p125, %p126
      %p128 = scmp.ne.s32.totalorder %s119, %s120
      %p129 = scmp.eq.s32.totalorder %s25, 0
      %p130 = por %p128, %p129
      %p131 = scmp.ne.s32.totalorder %s119, %s120
      %p132 = scmp.eq.s32.totalorder %s26, 1
      %p133 = por %p131, %p132
      %p135 = scmp.ne.s32.totalorder %s120, %s134
      %p136 = scmp.eq.s32.totalorder %s26, 0
      %p137 = por %p135, %p136
      %s138 = ssub.s32 %s27, %s39
      %p139 = scmp.eq.s32.totalorder %s138, 0
      %s141 = sadd.s32 %s140, 1
      %s142 = scalar_select %p139, %s140, %s141
      %p145 = pneg %p139
      %p146 = scmp.eq.s32.totalorder %s20, 1
      %p147 = por %p145, %p146
      %p148 = scmp.ne.s32.totalorder %s140, %s143
      %p149 = scmp.eq.s32.totalorder %s20, 0
      %p150 = por %p148, %p149
      %p151 = scmp.ne.s32.totalorder %s140, %s143
      %p152 = scmp.eq.s32.totalorder %s25, 1
      %p153 = por %p151, %p152
      %p154 = scmp.ne.s32.totalorder %s143, %s144
      %p155 = scmp.eq.s32.totalorder %s25, 0
      %p156 = por %p154, %p155
      %p157 = scmp.ne.s32.totalorder %s143, %s144
      %p158 = scmp.eq.s32.totalorder %s26, 1
      %p159 = por %p157, %p158
      %p161 = scmp.ne.s32.totalorder %s144, %s160
      %p162 = scmp.eq.s32.totalorder %s26, 0
      %p163 = por %p161, %p162
      %p164 = scmp.le.s32.totalorder 1, %s20
      %p165 = scmp.lt.s32.totalorder %s20, 3
      %p166 = pnand %p164, %p165
      %p167 = pneg %p166
      // Predicated region
      $region9: #{tpu_custom_call.1} parent=5 // pred_check
        _
      $region10: #{tpu_custom_call.1} parent=5 // pred_check_branch
        %169 = sbr.rel (%p166) target = $region12
      $region11: #{tpu_custom_call.1} parent=5 // pred_region
        %s170 = ssub.s32 %s20, 1
        // Predicated region
        $region13: #{tpu_custom_call.1} parent=11 // pred_check
          %p171 = pneg %p109
        $region14: #{tpu_custom_call.1} parent=11 // pred_check_branch
          %173 = sbr.rel (%p171) target = $region16
        $region15: #{tpu_custom_call.1} parent=11 // pred_region
          %s175 = ssub.s32 256, 256
          %176 = vsyncadd [#allocation8], %s175
          %s177 = sshll.u32 [#allocation9], 4
          %s178 = int_to_ptr.vmem [resolvable:$true] %s177
          %183 = dma.hbm_to_vmem [thread:$0]  %s2, 256, %s178, [#allocation8], 128, 128, 8
        $region16: #{tpu_custom_call.1} parent=11 // pred_fallthru
          _
        // Predicated region
        $region17: #{tpu_custom_call.1} parent=11 // pred_check
          %p184 = pneg %p130
        $region18: #{tpu_custom_call.1} parent=11 // pred_check_branch
          %186 = sbr.rel (%p184) target = $region20
        $region19: #{tpu_custom_call.1} parent=11 // pred_region
          %s188 = ssub.s32 128, 128
          %189 = vsyncadd [#allocation11], %s188
          %s191 = sshll.u32 [#allocation10], 4
          %s192 = int_to_ptr.vmem [resolvable:$true] %s191
          %194 = dma.hbm_to_vmem [thread:$0]  %s3, 128, %s192, [#allocation11]
        $region20: #{tpu_custom_call.1} parent=11 // pred_fallthru
          _
      $region12: #{tpu_custom_call.1} parent=5 // pred_fallthru
        _
      %p195 = scmp.lt.s32.totalorder %s20, 2
      // Predicated region
      $region21: #{tpu_custom_call.1} parent=5 // pred_check
        %p196 = pneg %p195
      $region22: #{tpu_custom_call.1} parent=5 // pred_check_branch
        %198 = sbr.rel (%p196) target = $region24
      $region23: #{tpu_custom_call.1} parent=5 // pred_region
        // Predicated region
        $region25: #{tpu_custom_call.1} parent=23 // pred_check
          %p199 = pneg %p54
        $region26: #{tpu_custom_call.1} parent=23 // pred_check_branch
          %201 = sbr.rel (%p199) target = $region28
        $region27: #{tpu_custom_call.1} parent=23 // pred_region
          %s202 = sand.u32 %s44, 1
          %s203 = scalar_lea.sflag [#allocation5], %s202
          %s204 = sand.u32 %s44, 1
          %s205 = smul.addr %s204, 64
          %s206 = scalar_lea.vmem [#allocation4], %s205
          %s207 = sadd.s32 %s27, %s28
          %s208 = smul.u32 4, %s207
          %s210 = ssub.s32 1024, 1024
          %211 = vsyncadd %s203, %s210
          %s212 = smul.addr %s208, 2
          %s213 = smul.addr %s212, 128
          %s214 = scalar_lea.hbm %s0, %s213
          %s215 = sshll.u32 %s206, 4
          %s216 = int_to_ptr.vmem [resolvable:$true] %s215
          %221 = dma.hbm_to_vmem [thread:$0]  %s214, 1024, %s216, %s203, 128, 128, 8
        $region28: #{tpu_custom_call.1} parent=23 // pred_fallthru
          _
        // Predicated region
        $region29: #{tpu_custom_call.1} parent=23 // pred_check
          %p222 = pneg %p82
        $region30: #{tpu_custom_call.1} parent=23 // pred_check_branch
          %224 = sbr.rel (%p222) target = $region32
        $region31: #{tpu_custom_call.1} parent=23 // pred_region
          %s225 = sand.u32 %s20, 1
          %s226 = scalar_lea.sflag [#allocation8], %s225
          %s227 = sand.u32 %s72, 1
          %s228 = smul.addr %s227, 64
          %s229 = scalar_lea.vmem [#allocation7], %s228
          %s230 = sadd.s32 %s27, %s28
          %s231 = smul.u32 4, %s230
          %s233 = ssub.s32 1024, 1024
          %234 = vsyncadd %s226, %s233
          %s235 = smul.addr %s231, 2
          %s236 = smul.addr %s235, 128
          %s237 = scalar_lea.hbm %s1, %s236
          %s238 = sshll.u32 %s229, 4
          %s239 = int_to_ptr.vmem [resolvable:$true] %s238
          %244 = dma.hbm_to_vmem [thread:$0]  %s237, 1024, %s239, %s226, 128, 128, 8
        $region32: #{tpu_custom_call.1} parent=23 // pred_fallthru
          _
      $region24: #{tpu_custom_call.1} parent=5 // pred_fallthru
        _
      %p245 = scmp.le.s32.totalorder 1, %s20
      %p246 = scmp.lt.s32.totalorder %s20, 3
      %p247 = pnand %p245, %p246
      %p248 = pneg %p247
      // Predicated region
      $region33: #{tpu_custom_call.1} parent=5 // pred_check
        _
      $region34: #{tpu_custom_call.1} parent=5 // pred_check_branch
        %250 = sbr.rel (%p247) target = $region36
      $region35: #{tpu_custom_call.1} parent=5 // pred_region
        %s251 = ssub.s32 %s20, 1
        %s252 = sand.u32 %s47, 1
        %s253 = scalar_lea.sflag [#allocation5], %s252
        %s254 = sand.u32 %s47, 1
        %s255 = smul.addr %s254, 64
        %s256 = scalar_lea.vmem [#allocation4], %s255
        // Predicated region
        $region37: #{tpu_custom_call.1} parent=35 // pred_check
          %p257 = pneg %p60
        $region38: #{tpu_custom_call.1} parent=35 // pred_check_branch
          %259 = sbr.rel (%p257) target = $region40
        $region39: #{tpu_custom_call.1} parent=35 // pred_region
          %260 = dma.done %s253, 1024
        $region40: #{tpu_custom_call.1} parent=35 // pred_fallthru
          _
        %s261 = sand.u32 %s25, 1
        %s262 = scalar_lea.sflag [#allocation8], %s261
        %s263 = sand.u32 %s75, 1
        %s264 = smul.addr %s263, 64
        %s265 = scalar_lea.vmem [#allocation7], %s264
        // Predicated region
        $region41: #{tpu_custom_call.1} parent=35 // pred_check
          %p266 = pneg %p88
        $region42: #{tpu_custom_call.1} parent=35 // pred_check_branch
          %268 = sbr.rel (%p266) target = $region44
        $region43: #{tpu_custom_call.1} parent=35 // pred_region
          %269 = dma.done %s262, 1024
        $region44: #{tpu_custom_call.1} parent=35 // pred_fallthru
          _
        // Predicated region
        $region45: #{tpu_custom_call.1} parent=35 // pred_check
          %p270 = pneg %p109
        $region46: #{tpu_custom_call.1} parent=35 // pred_check_branch
          %272 = sbr.rel (%p270) target = $region48
        $region47: #{tpu_custom_call.1} parent=35 // pred_region
          %273 = dma.done [#allocation8], 256
        $region48: #{tpu_custom_call.1} parent=35 // pred_fallthru
          _
        // Predicated region
        $region49: #{tpu_custom_call.1} parent=35 // pred_check
          %p274 = pneg %p130
        $region50: #{tpu_custom_call.1} parent=35 // pred_check_branch
          %276 = sbr.rel (%p274) target = $region52
        $region51: #{tpu_custom_call.1} parent=35 // pred_region
          %277 = dma.done [#allocation11], 128
        $region52: #{tpu_custom_call.1} parent=35 // pred_fallthru
          _
        %s278 = sand.u32 %s47, 1
        %s279 = scalar_lea.sflag [#allocation5], %s278
        %s280 = sand.u32 %s47, 1
        %s281 = smul.addr %s280, 64
        %s282 = scalar_lea.vmem [#allocation4], %s281
        %p283 = pneg %p60
        %p284 = pneg %p57
        %s285 = sand.u32 %s25, 1
        %s286 = scalar_lea.sflag [#allocation8], %s285
        %s287 = sand.u32 %s75, 1
        %s288 = smul.addr %s287, 64
        %s289 = scalar_lea.vmem [#allocation7], %s288
        %p290 = pneg %p88
        %p291 = pneg %p85
        %p292 = pneg %p109
        %p293 = pneg %p106
        %p294 = pneg %p130
        %p295 = pneg %p127
        %p296 = pneg %p156
        %p297 = pneg %p153
        %s298 = sand.u32 %s143, 1
        %s299 = scalar_lea.sflag [#allocation6], %s298
        %s300 = sand.u32 %s143, 1
        %s301 = smul.addr %s300, 8
        %s302 = scalar_lea.vmem [#allocation12], %s301
        %s303 = sadd.s32 %s29, %s30
        %s304 = smul.u32 4, %s303
        %s305 = sadd.s32 %s29, %s30
        %s306 = smul.u32 4, %s305
        %p307 = scmp.eq.s32.totalorder %s30, 0
        // Predicated region
        $region53: #{tpu_custom_call.1} parent=35 // pred_check
          %p308 = pneg %p307
        $region54: #{tpu_custom_call.1} parent=35 // pred_check_branch
          %310 = sbr.rel (%p308) target = $region56
        $region55: #{tpu_custom_call.1} parent=35 // pred_region
          %vm311 = vcmask 130048
          %312 = vst.msk [vmem:[#allocation2] sm:$0xff] %vm311, 0.0
          %313 = vst [vmem:[#allocation3] sm:$0xff] 0.0
        $region56: #{tpu_custom_call.1} parent=35 // pred_fallthru
          _
        %v314 = vld [vmem:[%s256] sm:$0xff]
        %v315 = vld [vmem:[%s256 + $0x8] sm:$0xff]
        %v316 = vld [vmem:[%s256 + $0x10] sm:$0xff]
        %v317 = vld [vmem:[%s256 + $0x18] sm:$0xff]
        %v318 = vld [vmem:[%s256 + $0x20] sm:$0xff]
        %v319 = vld [vmem:[%s256 + $0x28] sm:$0xff]
        %v320 = vld [vmem:[%s256 + $0x30] sm:$0xff]
        %v321 = vld [vmem:[%s256 + $0x38] sm:$0xff]
        %v322 = vld [vmem:[%s265] sm:$0xff]
        %v323 = vld [vmem:[%s265 + $0x8] sm:$0xff]
        %v324 = vld [vmem:[%s265 + $0x10] sm:$0xff]
        %v325 = vld [vmem:[%s265 + $0x18] sm:$0xff]
        %v326 = vld [vmem:[%s265 + $0x20] sm:$0xff]
        %v327 = vld [vmem:[%s265 + $0x28] sm:$0xff]
        %v328 = vld [vmem:[%s265 + $0x30] sm:$0xff]
        %v329 = vld [vmem:[%s265 + $0x38] sm:$0xff]
        %v330 = vld [vmem:[#allocation9] sm:$0xff]
        %v331 = vld [vmem:[#allocation9 + $0x8] sm:$0xff]
        %v332 = vld [vmem:[#allocation10] sm:$0xff]
        %v333 = vsub.f32 %v314, %v322
        %v334 = vsub.f32 %v315, %v323
        %v335 = vsub.f32 %v316, %v324
        %v336 = vsub.f32 %v317, %v325
        %v337 = vsub.f32 %v318, %v326
        %v338 = vsub.f32 %v319, %v327
        %v339 = vsub.f32 %v320, %v328
        %v340 = vsub.f32 %v321, %v329
        %v341 = vld [vmem:[#allocation2] sm:$0xff]
        %v342 = vmul.f32 %v333, %v333
        %v343 = vmul.f32 %v334, %v334
        %v344 = vmul.f32 %v335, %v335
        %v345 = vmul.f32 %v336, %v336
        %v346 = vmul.f32 %v337, %v337
        %v347 = vmul.f32 %v338, %v338
        %v348 = vmul.f32 %v339, %v339
        %v349 = vmul.f32 %v340, %v340
        %vm350 = vcmask 130048
        %v351 = vsel %vm350, %v342, 0.0
        %v352 = vsel %vm350, %v343, 0.0
        %v353 = vadd.f32 %v351, %v352
        %v354 = vsel %vm350, %v344, 0.0
        %v355 = vadd.f32 %v353, %v354
        %v356 = vsel %vm350, %v345, 0.0
        %v357 = vadd.f32 %v355, %v356
        %v358 = vsel %vm350, %v346, 0.0
        %v359 = vadd.f32 %v357, %v358
        %v360 = vsel %vm350, %v347, 0.0
        %v361 = vadd.f32 %v359, %v360
        %v362 = vsel %vm350, %v348, 0.0
        %v363 = vadd.f32 %v361, %v362
        %v364 = vsel %vm350, %v349, 0.0
        %v365 = vadd.f32 %v363, %v364
        %v366 = vadd.f32 %v341, %v365
        %367 = vst.msk [vmem:[#allocation2] sm:$0xff] %vm350, %v366
        %v369 = vsel %vm350, %v314, 0
        %v372 = vsel %vm350, %v315, 0
        %v375 = vsel %vm350, %v316, 0
        %v378 = vsel %vm350, %v317, 0
        %v381 = vsel %vm350, %v318, 0
        %v384 = vsel %vm350, %v319, 0
        %v387 = vsel %vm350, %v320, 0
        %v390 = vsel %vm350, %v321, 0
        %392 = vmatprep.subr.mxu0 0.0
        %393 = vmatpush1.msra.mxu0 0.0
        %394 = vmatprep.subr.mxu0 0.0
        %395 = vmatpush1.msra.mxu0 0.0
        %396 = vmatprep.subr.mxu0 0.0
        %397 = vmatpush1.msra.mxu0 0.0
        %398 = vmatprep.subr.mxu0 0.0
        %399 = vmatpush1.msra.mxu0 0.0
        %400 = vmatprep.subr.mxu0 0.0
        %401 = vmatpush1.msra.mxu0 0.0
        %402 = vmatprep.subr.mxu0 0.0
        %403 = vmatpush1.msra.mxu0 0.0
        %404 = vmatprep.subr.mxu0 0.0
        %405 = vmatpush1.msra.mxu0 0.0
        %406 = vmatprep.subr.mxu0 0.0
        %407 = vmatpush1.msra.mxu0 0.0
        %408 = vmatprep.subr.mxu0 0.0
        %409 = vmatpush1.msra.mxu0 0.0
        %410 = vmatprep.subr.mxu0 0.0
        %411 = vmatpush1.msra.mxu0 0.0
        %412 = vmatprep.subr.mxu0 0.0
        %413 = vmatpush1.msra.mxu0 0.0
        %414 = vmatprep.subr.mxu0 0.0
        %415 = vmatpush1.msra.mxu0 0.0
        %416 = vmatprep.subr.mxu0 0.0
        %417 = vmatpush1.msra.mxu0 0.0
        %418 = vmatprep.subr.mxu0 0.0
        %419 = vmatpush1.msra.mxu0 0.0
        %420 = vmatprep.subr.mxu0 0.0
        %421 = vmatpush1.msra.mxu0 %v331
        %422 = vmatprep.subr.mxu0 0.0
        %423 = vmatpush1.msra.mxu0 %v330
        %424 = vmatprep.subr.mxu0 0.0
        %425 = vmatpush2.msra.mxu0 0.0
        %426 = vmatprep.subr.mxu0 0.0
        %427 = vmatpush2.msra.mxu0 0.0
        %428 = vmatprep.subr.mxu0 0.0
        %429 = vmatpush2.msra.mxu0 0.0
        %430 = vmatprep.subr.mxu0 0.0
        %431 = vmatpush2.msra.mxu0 0.0
        %432 = vmatprep.subr.mxu0 0.0
        %433 = vmatpush2.msra.mxu0 0.0
        %434 = vmatprep.subr.mxu0 0.0
        %435 = vmatpush2.msra.mxu0 0.0
        %436 = vmatprep.subr.mxu0 0.0
        %437 = vmatpush2.msra.mxu0 0.0
        %438 = vmatprep.subr.mxu0 0.0
        %439 = vmatpush2.msra.mxu0 0.0
        %440 = vmatprep.subr.mxu0 0.0
        %441 = vmatpush2.msra.mxu0 0.0
        %442 = vmatprep.subr.mxu0 0.0
        %443 = vmatpush2.msra.mxu0 0.0
        %444 = vmatprep.subr.mxu0 0.0
        %445 = vmatpush2.msra.mxu0 0.0
        %446 = vmatprep.subr.mxu0 0.0
        %447 = vmatpush2.msra.mxu0 0.0
        %448 = vmatprep.subr.mxu0 0.0
        %449 = vmatpush2.msra.mxu0 0.0
        %450 = vmatprep.subr.mxu0 0.0
        %451 = vmatpush2.msra.mxu0 0.0
        %452 = vmatprep.subr.mxu0 0.0
        %453 = vmatpush2.msra.mxu0 0.0
        %454 = vmatprep.subr.mxu0 0.0
        %455 = vmatpush2.msra.mxu0 0.0
        %456 = vmatprep.mubr.f32.mxu0 0.0
        %457 = vmatmul.mubr.f32.gmra.mxu0 %v369
        %v458 = vpop.f32.mrf.mxu0
        %v459 = vadd.f32 0.0, %v458
        %v460 = vpop.f32.mrf.mxu0
        %461 = vmatprep.mubr.f32.mxu0 0.0
        %462 = vmatmul.mubr.f32.gmra.mxu0 %v372
        %v463 = vpop.f32.mrf.mxu0
        %v464 = vadd.f32 0.0, %v463
        %v465 = vpop.f32.mrf.mxu0
        %466 = vmatprep.mubr.f32.mxu0 0.0
        %467 = vmatmul.mubr.f32.gmra.mxu0 %v375
        %v468 = vpop.f32.mrf.mxu0
        %v469 = vadd.f32 0.0, %v468
        %v470 = vpop.f32.mrf.mxu0
        %471 = vmatprep.mubr.f32.mxu0 0.0
        %472 = vmatmul.mubr.f32.gmra.mxu0 %v378
        %v473 = vpop.f32.mrf.mxu0
        %v474 = vadd.f32 0.0, %v473
        %v475 = vpop.f32.mrf.mxu0
        %476 = vmatprep.mubr.f32.mxu0 0.0
        %477 = vmatmul.mubr.f32.gmra.mxu0 %v381
        %v478 = vpop.f32.mrf.mxu0
        %v479 = vadd.f32 0.0, %v478
        %v480 = vpop.f32.mrf.mxu0
        %481 = vmatprep.mubr.f32.mxu0 0.0
        %482 = vmatmul.mubr.f32.gmra.mxu0 %v384
        %v483 = vpop.f32.mrf.mxu0
        %v484 = vadd.f32 0.0, %v483
        %v485 = vpop.f32.mrf.mxu0
        %486 = vmatprep.mubr.f32.mxu0 0.0
        %487 = vmatmul.mubr.f32.gmra.mxu0 %v387
        %v488 = vpop.f32.mrf.mxu0
        %v489 = vadd.f32 0.0, %v488
        %v490 = vpop.f32.mrf.mxu0
        %491 = vmatprep.mubr.f32.mxu0 0.0
        %492 = vmatmul.mubr.f32.gmra.mxu0 %v390
        %v493 = vpop.f32.mrf.mxu0
        %v494 = vadd.f32 0.0, %v493
        %v495 = vpop.f32.mrf.mxu0
        %496 = vdwg.mxu0
        %v498 = vsel %vm350, %v322, 0
        %v501 = vsel %vm350, %v323, 0
        %v504 = vsel %vm350, %v324, 0
        %v507 = vsel %vm350, %v325, 0
        %v510 = vsel %vm350, %v326, 0
        %v513 = vsel %vm350, %v327, 0
        %v516 = vsel %vm350, %v328, 0
        %v519 = vsel %vm350, %v329, 0
        %521 = vmatprep.subr.mxu0 0.0
        %522 = vmatpush1.msra.mxu0 0.0
        %523 = vmatprep.subr.mxu0 0.0
        %524 = vmatpush1.msra.mxu0 0.0
        %525 = vmatprep.subr.mxu0 0.0
        %526 = vmatpush1.msra.mxu0 0.0
        %527 = vmatprep.subr.mxu0 0.0
        %528 = vmatpush1.msra.mxu0 0.0
        %529 = vmatprep.subr.mxu0 0.0
        %530 = vmatpush1.msra.mxu0 0.0
        %531 = vmatprep.subr.mxu0 0.0
        %532 = vmatpush1.msra.mxu0 0.0
        %533 = vmatprep.subr.mxu0 0.0
        %534 = vmatpush1.msra.mxu0 0.0
        %535 = vmatprep.subr.mxu0 0.0
        %536 = vmatpush1.msra.mxu0 0.0
        %537 = vmatprep.subr.mxu0 0.0
        %538 = vmatpush1.msra.mxu0 0.0
        %539 = vmatprep.subr.mxu0 0.0
        %540 = vmatpush1.msra.mxu0 0.0
        %541 = vmatprep.subr.mxu0 0.0
        %542 = vmatpush1.msra.mxu0 0.0
        %543 = vmatprep.subr.mxu0 0.0
        %544 = vmatpush1.msra.mxu0 0.0
        %545 = vmatprep.subr.mxu0 0.0
        %546 = vmatpush1.msra.mxu0 0.0
        %547 = vmatprep.subr.mxu0 0.0
        %548 = vmatpush1.msra.mxu0 0.0
        %549 = vmatprep.subr.mxu0 0.0
        %550 = vmatpush1.msra.mxu0 %v331
        %551 = vmatprep.subr.mxu0 0.0
        %552 = vmatpush1.msra.mxu0 %v330
        %553 = vmatprep.subr.mxu0 0.0
        %554 = vmatpush2.msra.mxu0 0.0
        %555 = vmatprep.subr.mxu0 0.0
        %556 = vmatpush2.msra.mxu0 0.0
        %557 = vmatprep.subr.mxu0 0.0
        %558 = vmatpush2.msra.mxu0 0.0
        %559 = vmatprep.subr.mxu0 0.0
        %560 = vmatpush2.msra.mxu0 0.0
        %561 = vmatprep.subr.mxu0 0.0
        %562 = vmatpush2.msra.mxu0 0.0
        %563 = vmatprep.subr.mxu0 0.0
        %564 = vmatpush2.msra.mxu0 0.0
        %565 = vmatprep.subr.mxu0 0.0
        %566 = vmatpush2.msra.mxu0 0.0
        %567 = vmatprep.subr.mxu0 0.0
        %568 = vmatpush2.msra.mxu0 0.0
        %569 = vmatprep.subr.mxu0 0.0
        %570 = vmatpush2.msra.mxu0 0.0
        %571 = vmatprep.subr.mxu0 0.0
        %572 = vmatpush2.msra.mxu0 0.0
        %573 = vmatprep.subr.mxu0 0.0
        %574 = vmatpush2.msra.mxu0 0.0
        %575 = vmatprep.subr.mxu0 0.0
        %576 = vmatpush2.msra.mxu0 0.0
        %577 = vmatprep.subr.mxu0 0.0
        %578 = vmatpush2.msra.mxu0 0.0
        %579 = vmatprep.subr.mxu0 0.0
        %580 = vmatpush2.msra.mxu0 0.0
        %581 = vmatprep.subr.mxu0 0.0
        %582 = vmatpush2.msra.mxu0 0.0
        %583 = vmatprep.subr.mxu0 0.0
        %584 = vmatpush2.msra.mxu0 0.0
        %585 = vmatprep.mubr.f32.mxu0 0.0
        %586 = vmatmul.mubr.f32.gmra.mxu0 %v498
        %v587 = vpop.f32.mrf.mxu0
        %v588 = vadd.f32 0.0, %v587
        %v589 = vpop.f32.mrf.mxu0
        %590 = vmatprep.mubr.f32.mxu0 0.0
        %591 = vmatmul.mubr.f32.gmra.mxu0 %v501
        %v592 = vpop.f32.mrf.mxu0
        %v593 = vadd.f32 0.0, %v592
        %v594 = vpop.f32.mrf.mxu0
        %595 = vmatprep.mubr.f32.mxu0 0.0
        %596 = vmatmul.mubr.f32.gmra.mxu0 %v504
        %v597 = vpop.f32.mrf.mxu0
        %v598 = vadd.f32 0.0, %v597
        %v599 = vpop.f32.mrf.mxu0
        %600 = vmatprep.mubr.f32.mxu0 0.0
        %601 = vmatmul.mubr.f32.gmra.mxu0 %v507
        %v602 = vpop.f32.mrf.mxu0
        %v603 = vadd.f32 0.0, %v602
        %v604 = vpop.f32.mrf.mxu0
        %605 = vmatprep.mubr.f32.mxu0 0.0
        %606 = vmatmul.mubr.f32.gmra.mxu0 %v510
        %v607 = vpop.f32.mrf.mxu0
        %v608 = vadd.f32 0.0, %v607
        %v609 = vpop.f32.mrf.mxu0
        %610 = vmatprep.mubr.f32.mxu0 0.0
        %611 = vmatmul.mubr.f32.gmra.mxu0 %v513
        %v612 = vpop.f32.mrf.mxu0
        %v613 = vadd.f32 0.0, %v612
        %v614 = vpop.f32.mrf.mxu0
        %615 = vmatprep.mubr.f32.mxu0 0.0
        %616 = vmatmul.mubr.f32.gmra.mxu0 %v516
        %v617 = vpop.f32.mrf.mxu0
        %v618 = vadd.f32 0.0, %v617
        %v619 = vpop.f32.mrf.mxu0
        %620 = vmatprep.mubr.f32.mxu0 0.0
        %621 = vmatmul.mubr.f32.gmra.mxu0 %v519
        %v622 = vpop.f32.mrf.mxu0
        %v623 = vadd.f32 0.0, %v622
        %v624 = vpop.f32.mrf.mxu0
        %625 = vdwg.mxu0
        %v626 = vmul.f32 %v314, %v314
        %v627 = vmul.f32 %v315, %v315
        %v628 = vmul.f32 %v316, %v316
        %v629 = vmul.f32 %v317, %v317
        %v630 = vmul.f32 %v318, %v318
        %v631 = vmul.f32 %v319, %v319
        %v632 = vmul.f32 %v320, %v320
        %v633 = vmul.f32 %v321, %v321
        %v635 = vsel %vm350, %v626, 0
        %v638 = vsel %vm350, %v627, 0
        %v641 = vsel %vm350, %v628, 0
        %v644 = vsel %vm350, %v629, 0
        %v647 = vsel %vm350, %v630, 0
        %v650 = vsel %vm350, %v631, 0
        %v653 = vsel %vm350, %v632, 0
        %v656 = vsel %vm350, %v633, 0
        %658 = vmatprep.subr.mxu0 0.0
        %659 = vmatpush1.msra.mxu0 0.0
        %660 = vmatprep.subr.mxu0 0.0
        %661 = vmatpush1.msra.mxu0 0.0
        %662 = vmatprep.subr.mxu0 0.0
        %663 = vmatpush1.msra.mxu0 0.0
        %664 = vmatprep.subr.mxu0 0.0
        %665 = vmatpush1.msra.mxu0 0.0
        %666 = vmatprep.subr.mxu0 0.0
        %667 = vmatpush1.msra.mxu0 0.0
        %668 = vmatprep.subr.mxu0 0.0
        %669 = vmatpush1.msra.mxu0 0.0
        %670 = vmatprep.subr.mxu0 0.0
        %671 = vmatpush1.msra.mxu0 0.0
        %672 = vmatprep.subr.mxu0 0.0
        %673 = vmatpush1.msra.mxu0 0.0
        %674 = vmatprep.subr.mxu0 0.0
        %675 = vmatpush1.msra.mxu0 0.0
        %676 = vmatprep.subr.mxu0 0.0
        %677 = vmatpush1.msra.mxu0 0.0
        %678 = vmatprep.subr.mxu0 0.0
        %679 = vmatpush1.msra.mxu0 0.0
        %680 = vmatprep.subr.mxu0 0.0
        %681 = vmatpush1.msra.mxu0 0.0
        %682 = vmatprep.subr.mxu0 0.0
        %683 = vmatpush1.msra.mxu0 0.0
        %684 = vmatprep.subr.mxu0 0.0
        %685 = vmatpush1.msra.mxu0 0.0
        %686 = vmatprep.subr.mxu0 0.0
        %687 = vmatpush1.msra.mxu0 %v331
        %688 = vmatprep.subr.mxu0 0.0
        %689 = vmatpush1.msra.mxu0 %v330
        %690 = vmatprep.subr.mxu0 0.0
        %691 = vmatpush2.msra.mxu0 0.0
        %692 = vmatprep.subr.mxu0 0.0
        %693 = vmatpush2.msra.mxu0 0.0
        %694 = vmatprep.subr.mxu0 0.0
        %695 = vmatpush2.msra.mxu0 0.0
        %696 = vmatprep.subr.mxu0 0.0
        %697 = vmatpush2.msra.mxu0 0.0
        %698 = vmatprep.subr.mxu0 0.0
        %699 = vmatpush2.msra.mxu0 0.0
        %700 = vmatprep.subr.mxu0 0.0
        %701 = vmatpush2.msra.mxu0 0.0
        %702 = vmatprep.subr.mxu0 0.0
        %703 = vmatpush2.msra.mxu0 0.0
        %704 = vmatprep.subr.mxu0 0.0
        %705 = vmatpush2.msra.mxu0 0.0
        %706 = vmatprep.subr.mxu0 0.0
        %707 = vmatpush2.msra.mxu0 0.0
        %708 = vmatprep.subr.mxu0 0.0
        %709 = vmatpush2.msra.mxu0 0.0
        %710 = vmatprep.subr.mxu0 0.0
        %711 = vmatpush2.msra.mxu0 0.0
        %712 = vmatprep.subr.mxu0 0.0
        %713 = vmatpush2.msra.mxu0 0.0
        %714 = vmatprep.subr.mxu0 0.0
        %715 = vmatpush2.msra.mxu0 0.0
        %716 = vmatprep.subr.mxu0 0.0
        %717 = vmatpush2.msra.mxu0 0.0
        %718 = vmatprep.subr.mxu0 0.0
        %719 = vmatpush2.msra.mxu0 0.0
        %720 = vmatprep.subr.mxu0 0.0
        %721 = vmatpush2.msra.mxu0 0.0
        %722 = vmatprep.mubr.f32.mxu0 0.0
        %723 = vmatmul.mubr.f32.gmra.mxu0 %v635
        %v724 = vpop.f32.mrf.mxu0
        %v725 = vadd.f32 0.0, %v724
        %v726 = vpop.f32.mrf.mxu0
        %727 = vmatprep.mubr.f32.mxu0 0.0
        %728 = vmatmul.mubr.f32.gmra.mxu0 %v638
        %v729 = vpop.f32.mrf.mxu0
        %v730 = vadd.f32 0.0, %v729
        %v731 = vpop.f32.mrf.mxu0
        %732 = vmatprep.mubr.f32.mxu0 0.0
        %733 = vmatmul.mubr.f32.gmra.mxu0 %v641
        %v734 = vpop.f32.mrf.mxu0
        %v735 = vadd.f32 0.0, %v734
        %v736 = vpop.f32.mrf.mxu0
        %737 = vmatprep.mubr.f32.mxu0 0.0
        %738 = vmatmul.mubr.f32.gmra.mxu0 %v644
        %v739 = vpop.f32.mrf.mxu0
        %v740 = vadd.f32 0.0, %v739
        %v741 = vpop.f32.mrf.mxu0
        %742 = vmatprep.mubr.f32.mxu0 0.0
        %743 = vmatmul.mubr.f32.gmra.mxu0 %v647
        %v744 = vpop.f32.mrf.mxu0
        %v745 = vadd.f32 0.0, %v744
        %v746 = vpop.f32.mrf.mxu0
        %747 = vmatprep.mubr.f32.mxu0 0.0
        %748 = vmatmul.mubr.f32.gmra.mxu0 %v650
        %v749 = vpop.f32.mrf.mxu0
        %v750 = vadd.f32 0.0, %v749
        %v751 = vpop.f32.mrf.mxu0
        %752 = vmatprep.mubr.f32.mxu0 0.0
        %753 = vmatmul.mubr.f32.gmra.mxu0 %v653
        %v754 = vpop.f32.mrf.mxu0
        %v755 = vadd.f32 0.0, %v754
        %v756 = vpop.f32.mrf.mxu0
        %757 = vmatprep.mubr.f32.mxu0 0.0
        %758 = vmatmul.mubr.f32.gmra.mxu0 %v656
        %v759 = vpop.f32.mrf.mxu0
        %v760 = vadd.f32 0.0, %v759
        %v761 = vpop.f32.mrf.mxu0
        %762 = vdwg.mxu0
        %v763 = vmul.f32 %v322, %v322
        %v764 = vmul.f32 %v323, %v323
        %v765 = vmul.f32 %v324, %v324
        %v766 = vmul.f32 %v325, %v325
        %v767 = vmul.f32 %v326, %v326
        %v768 = vmul.f32 %v327, %v327
        %v769 = vmul.f32 %v328, %v328
        %v770 = vmul.f32 %v329, %v329
        %v772 = vsel %vm350, %v763, 0
        %v775 = vsel %vm350, %v764, 0
        %v778 = vsel %vm350, %v765, 0
        %v781 = vsel %vm350, %v766, 0
        %v784 = vsel %vm350, %v767, 0
        %v787 = vsel %vm350, %v768, 0
        %v790 = vsel %vm350, %v769, 0
        %v793 = vsel %vm350, %v770, 0
        %795 = vmatprep.subr.mxu0 0.0
        %796 = vmatpush1.msra.mxu0 0.0
        %797 = vmatprep.subr.mxu0 0.0
        %798 = vmatpush1.msra.mxu0 0.0
        %799 = vmatprep.subr.mxu0 0.0
        %800 = vmatpush1.msra.mxu0 0.0
        %801 = vmatprep.subr.mxu0 0.0
        %802 = vmatpush1.msra.mxu0 0.0
        %803 = vmatprep.subr.mxu0 0.0
        %804 = vmatpush1.msra.mxu0 0.0
        %805 = vmatprep.subr.mxu0 0.0
        %806 = vmatpush1.msra.mxu0 0.0
        %807 = vmatprep.subr.mxu0 0.0
        %808 = vmatpush1.msra.mxu0 0.0
        %809 = vmatprep.subr.mxu0 0.0
        %810 = vmatpush1.msra.mxu0 0.0
        %811 = vmatprep.subr.mxu0 0.0
        %812 = vmatpush1.msra.mxu0 0.0
        %813 = vmatprep.subr.mxu0 0.0
        %814 = vmatpush1.msra.mxu0 0.0
        %815 = vmatprep.subr.mxu0 0.0
        %816 = vmatpush1.msra.mxu0 0.0
        %817 = vmatprep.subr.mxu0 0.0
        %818 = vmatpush1.msra.mxu0 0.0
        %819 = vmatprep.subr.mxu0 0.0
        %820 = vmatpush1.msra.mxu0 0.0
        %821 = vmatprep.subr.mxu0 0.0
        %822 = vmatpush1.msra.mxu0 0.0
        %823 = vmatprep.subr.mxu0 0.0
        %824 = vmatpush1.msra.mxu0 %v331
        %825 = vmatprep.subr.mxu0 0.0
        %826 = vmatpush1.msra.mxu0 %v330
        %827 = vmatprep.subr.mxu0 0.0
        %828 = vmatpush2.msra.mxu0 0.0
        %829 = vmatprep.subr.mxu0 0.0
        %830 = vmatpush2.msra.mxu0 0.0
        %831 = vmatprep.subr.mxu0 0.0
        %832 = vmatpush2.msra.mxu0 0.0
        %833 = vmatprep.subr.mxu0 0.0
        %834 = vmatpush2.msra.mxu0 0.0
        %835 = vmatprep.subr.mxu0 0.0
        %836 = vmatpush2.msra.mxu0 0.0
        %837 = vmatprep.subr.mxu0 0.0
        %838 = vmatpush2.msra.mxu0 0.0
        %839 = vmatprep.subr.mxu0 0.0
        %840 = vmatpush2.msra.mxu0 0.0
        %841 = vmatprep.subr.mxu0 0.0
        %842 = vmatpush2.msra.mxu0 0.0
        %843 = vmatprep.subr.mxu0 0.0
        %844 = vmatpush2.msra.mxu0 0.0
        %845 = vmatprep.subr.mxu0 0.0
        %846 = vmatpush2.msra.mxu0 0.0
        %847 = vmatprep.subr.mxu0 0.0
        %848 = vmatpush2.msra.mxu0 0.0
        %849 = vmatprep.subr.mxu0 0.0
        %850 = vmatpush2.msra.mxu0 0.0
        %851 = vmatprep.subr.mxu0 0.0
        %852 = vmatpush2.msra.mxu0 0.0
        %853 = vmatprep.subr.mxu0 0.0
        %854 = vmatpush2.msra.mxu0 0.0
        %855 = vmatprep.subr.mxu0 0.0
        %856 = vmatpush2.msra.mxu0 0.0
        %857 = vmatprep.subr.mxu0 0.0
        %858 = vmatpush2.msra.mxu0 0.0
        %859 = vmatprep.mubr.f32.mxu0 0.0
        %860 = vmatmul.mubr.f32.gmra.mxu0 %v772
        %v861 = vpop.f32.mrf.mxu0
        %v862 = vadd.f32 0.0, %v861
        %v863 = vpop.f32.mrf.mxu0
        %864 = vmatprep.mubr.f32.mxu0 0.0
        %865 = vmatmul.mubr.f32.gmra.mxu0 %v775
        %v866 = vpop.f32.mrf.mxu0
        %v867 = vadd.f32 0.0, %v866
        %v868 = vpop.f32.mrf.mxu0
        %869 = vmatprep.mubr.f32.mxu0 0.0
        %870 = vmatmul.mubr.f32.gmra.mxu0 %v778
        %v871 = vpop.f32.mrf.mxu0
        %v872 = vadd.f32 0.0, %v871
        %v873 = vpop.f32.mrf.mxu0
        %874 = vmatprep.mubr.f32.mxu0 0.0
        %875 = vmatmul.mubr.f32.gmra.mxu0 %v781
        %v876 = vpop.f32.mrf.mxu0
        %v877 = vadd.f32 0.0, %v876
        %v878 = vpop.f32.mrf.mxu0
        %879 = vmatprep.mubr.f32.mxu0 0.0
        %880 = vmatmul.mubr.f32.gmra.mxu0 %v784
        %v881 = vpop.f32.mrf.mxu0
        %v882 = vadd.f32 0.0, %v881
        %v883 = vpop.f32.mrf.mxu0
        %884 = vmatprep.mubr.f32.mxu0 0.0
        %885 = vmatmul.mubr.f32.gmra.mxu0 %v787
        %v886 = vpop.f32.mrf.mxu0
        %v887 = vadd.f32 0.0, %v886
        %v888 = vpop.f32.mrf.mxu0
        %889 = vmatprep.mubr.f32.mxu0 0.0
        %890 = vmatmul.mubr.f32.gmra.mxu0 %v790
        %v891 = vpop.f32.mrf.mxu0
        %v892 = vadd.f32 0.0, %v891
        %v893 = vpop.f32.mrf.mxu0
        %894 = vmatprep.mubr.f32.mxu0 0.0
        %895 = vmatmul.mubr.f32.gmra.mxu0 %v793
        %v896 = vpop.f32.mrf.mxu0
        %v897 = vadd.f32 0.0, %v896
        %v898 = vpop.f32.mrf.mxu0
        %899 = vdwg.mxu0
        %v900 = vmul.f32 %v314, %v322
        %v901 = vmul.f32 %v315, %v323
        %v902 = vmul.f32 %v316, %v324
        %v903 = vmul.f32 %v317, %v325
        %v904 = vmul.f32 %v318, %v326
        %v905 = vmul.f32 %v319, %v327
        %v906 = vmul.f32 %v320, %v328
        %v907 = vmul.f32 %v321, %v329
        %v909 = vsel %vm350, %v900, 0
        %v912 = vsel %vm350, %v901, 0
        %v915 = vsel %vm350, %v902, 0
        %v918 = vsel %vm350, %v903, 0
        %v921 = vsel %vm350, %v904, 0
        %v924 = vsel %vm350, %v905, 0
        %v927 = vsel %vm350, %v906, 0
        %v930 = vsel %vm350, %v907, 0
        %932 = vmatprep.subr.mxu0 0.0
        %933 = vmatpush1.msra.mxu0 0.0
        %934 = vmatprep.subr.mxu0 0.0
        %935 = vmatpush1.msra.mxu0 0.0
        %936 = vmatprep.subr.mxu0 0.0
        %937 = vmatpush1.msra.mxu0 0.0
        %938 = vmatprep.subr.mxu0 0.0
        %939 = vmatpush1.msra.mxu0 0.0
        %940 = vmatprep.subr.mxu0 0.0
        %941 = vmatpush1.msra.mxu0 0.0
        %942 = vmatprep.subr.mxu0 0.0
        %943 = vmatpush1.msra.mxu0 0.0
        %944 = vmatprep.subr.mxu0 0.0
        %945 = vmatpush1.msra.mxu0 0.0
        %946 = vmatprep.subr.mxu0 0.0
        %947 = vmatpush1.msra.mxu0 0.0
        %948 = vmatprep.subr.mxu0 0.0
        %949 = vmatpush1.msra.mxu0 0.0
        %950 = vmatprep.subr.mxu0 0.0
        %951 = vmatpush1.msra.mxu0 0.0
        %952 = vmatprep.subr.mxu0 0.0
        %953 = vmatpush1.msra.mxu0 0.0
        %954 = vmatprep.subr.mxu0 0.0
        %955 = vmatpush1.msra.mxu0 0.0
        %956 = vmatprep.subr.mxu0 0.0
        %957 = vmatpush1.msra.mxu0 0.0
        %958 = vmatprep.subr.mxu0 0.0
        %959 = vmatpush1.msra.mxu0 0.0
        %960 = vmatprep.subr.mxu0 0.0
        %961 = vmatpush1.msra.mxu0 %v331
        %962 = vmatprep.subr.mxu0 0.0
        %963 = vmatpush1.msra.mxu0 %v330
        %964 = vmatprep.subr.mxu0 0.0
        %965 = vmatpush2.msra.mxu0 0.0
        %966 = vmatprep.subr.mxu0 0.0
        %967 = vmatpush2.msra.mxu0 0.0
        %968 = vmatprep.subr.mxu0 0.0
        %969 = vmatpush2.msra.mxu0 0.0
        %970 = vmatprep.subr.mxu0 0.0
        %971 = vmatpush2.msra.mxu0 0.0
        %972 = vmatprep.subr.mxu0 0.0
        %973 = vmatpush2.msra.mxu0 0.0
        %974 = vmatprep.subr.mxu0 0.0
        %975 = vmatpush2.msra.mxu0 0.0
        %976 = vmatprep.subr.mxu0 0.0
        %977 = vmatpush2.msra.mxu0 0.0
        %978 = vmatprep.subr.mxu0 0.0
        %979 = vmatpush2.msra.mxu0 0.0
        %980 = vmatprep.subr.mxu0 0.0
        %981 = vmatpush2.msra.mxu0 0.0
        %982 = vmatprep.subr.mxu0 0.0
        %983 = vmatpush2.msra.mxu0 0.0
        %984 = vmatprep.subr.mxu0 0.0
        %985 = vmatpush2.msra.mxu0 0.0
        %986 = vmatprep.subr.mxu0 0.0
        %987 = vmatpush2.msra.mxu0 0.0
        %988 = vmatprep.subr.mxu0 0.0
        %989 = vmatpush2.msra.mxu0 0.0
        %990 = vmatprep.subr.mxu0 0.0
        %991 = vmatpush2.msra.mxu0 0.0
        %992 = vmatprep.subr.mxu0 0.0
        %993 = vmatpush2.msra.mxu0 0.0
        %994 = vmatprep.subr.mxu0 0.0
        %995 = vmatpush2.msra.mxu0 0.0
        %996 = vmatprep.mubr.f32.mxu0 0.0
        %997 = vmatmul.mubr.f32.gmra.mxu0 %v909
        %v998 = vpop.f32.mrf.mxu0
        %v999 = vadd.f32 0.0, %v998
        %v1000 = vpop.f32.mrf.mxu0
        %1001 = vmatprep.mubr.f32.mxu0 0.0
        %1002 = vmatmul.mubr.f32.gmra.mxu0 %v912
        %v1003 = vpop.f32.mrf.mxu0
        %v1004 = vadd.f32 0.0, %v1003
        %v1005 = vpop.f32.mrf.mxu0
        %1006 = vmatprep.mubr.f32.mxu0 0.0
        %1007 = vmatmul.mubr.f32.gmra.mxu0 %v915
        %v1008 = vpop.f32.mrf.mxu0
        %v1009 = vadd.f32 0.0, %v1008
        %v1010 = vpop.f32.mrf.mxu0
        %1011 = vmatprep.mubr.f32.mxu0 0.0
        %1012 = vmatmul.mubr.f32.gmra.mxu0 %v918
        %v1013 = vpop.f32.mrf.mxu0
        %v1014 = vadd.f32 0.0, %v1013
        %v1015 = vpop.f32.mrf.mxu0
        %1016 = vmatprep.mubr.f32.mxu0 0.0
        %1017 = vmatmul.mubr.f32.gmra.mxu0 %v921
        %v1018 = vpop.f32.mrf.mxu0
        %v1019 = vadd.f32 0.0, %v1018
        %v1020 = vpop.f32.mrf.mxu0
        %1021 = vmatprep.mubr.f32.mxu0 0.0
        %1022 = vmatmul.mubr.f32.gmra.mxu0 %v924
        %v1023 = vpop.f32.mrf.mxu0
        %v1024 = vadd.f32 0.0, %v1023
        %v1025 = vpop.f32.mrf.mxu0
        %1026 = vmatprep.mubr.f32.mxu0 0.0
        %1027 = vmatmul.mubr.f32.gmra.mxu0 %v927
        %v1028 = vpop.f32.mrf.mxu0
        %v1029 = vadd.f32 0.0, %v1028
        %v1030 = vpop.f32.mrf.mxu0
        %1031 = vmatprep.mubr.f32.mxu0 0.0
        %1032 = vmatmul.mubr.f32.gmra.mxu0 %v930
        %v1033 = vpop.f32.mrf.mxu0
        %v1034 = vadd.f32 0.0, %v1033
        %v1035 = vpop.f32.mrf.mxu0
        %1036 = vdwg.mxu0
        %v1038 = vsel %vm350, %v332, 0
        %1040 = vmatprep.subr.mxu0 0.0
        %1041 = vmatpush1.msra.mxu0 0.0
        %1042 = vmatprep.subr.mxu0 0.0
        %1043 = vmatpush1.msra.mxu0 0.0
        %1044 = vmatprep.subr.mxu0 0.0
        %1045 = vmatpush1.msra.mxu0 0.0
        %1046 = vmatprep.subr.mxu0 0.0
        %1047 = vmatpush1.msra.mxu0 0.0
        %1048 = vmatprep.subr.mxu0 0.0
        %1049 = vmatpush1.msra.mxu0 0.0
        %1050 = vmatprep.subr.mxu0 0.0
        %1051 = vmatpush1.msra.mxu0 0.0
        %1052 = vmatprep.subr.mxu0 0.0
        %1053 = vmatpush1.msra.mxu0 0.0
        %1054 = vmatprep.subr.mxu0 0.0
        %1055 = vmatpush1.msra.mxu0 0.0
        %1056 = vmatprep.subr.mxu0 0.0
        %1057 = vmatpush1.msra.mxu0 0.0
        %1058 = vmatprep.subr.mxu0 0.0
        %1059 = vmatpush1.msra.mxu0 0.0
        %1060 = vmatprep.subr.mxu0 0.0
        %1061 = vmatpush1.msra.mxu0 0.0
        %1062 = vmatprep.subr.mxu0 0.0
        %1063 = vmatpush1.msra.mxu0 0.0
        %1064 = vmatprep.subr.mxu0 0.0
        %1065 = vmatpush1.msra.mxu0 0.0
        %1066 = vmatprep.subr.mxu0 0.0
        %1067 = vmatpush1.msra.mxu0 0.0
        %1068 = vmatprep.subr.mxu0 0.0
        %1069 = vmatpush1.msra.mxu0 %v464
        %1070 = vmatprep.subr.mxu0 0.0
        %1071 = vmatpush1.msra.mxu0 %v459
        %1072 = vmatprep.subr.mxu0 0.0
        %1073 = vmatpush2.msra.mxu0 0.0
        %1074 = vmatprep.subr.mxu0 0.0
        %1075 = vmatpush2.msra.mxu0 0.0
        %1076 = vmatprep.subr.mxu0 0.0
        %1077 = vmatpush2.msra.mxu0 0.0
        %1078 = vmatprep.subr.mxu0 0.0
        %1079 = vmatpush2.msra.mxu0 0.0
        %1080 = vmatprep.subr.mxu0 0.0
        %1081 = vmatpush2.msra.mxu0 0.0
        %1082 = vmatprep.subr.mxu0 0.0
        %1083 = vmatpush2.msra.mxu0 0.0
        %1084 = vmatprep.subr.mxu0 0.0
        %1085 = vmatpush2.msra.mxu0 0.0
        %1086 = vmatprep.subr.mxu0 0.0
        %1087 = vmatpush2.msra.mxu0 0.0
        %1088 = vmatprep.subr.mxu0 0.0
        %1089 = vmatpush2.msra.mxu0 0.0
        %1090 = vmatprep.subr.mxu0 0.0
        %1091 = vmatpush2.msra.mxu0 0.0
        %1092 = vmatprep.subr.mxu0 0.0
        %1093 = vmatpush2.msra.mxu0 0.0
        %1094 = vmatprep.subr.mxu0 0.0
        %1095 = vmatpush2.msra.mxu0 0.0
        %1096 = vmatprep.subr.mxu0 0.0
        %1097 = vmatpush2.msra.mxu0 0.0
        %1098 = vmatprep.subr.mxu0 0.0
        %1099 = vmatpush2.msra.mxu0 0.0
        %1100 = vmatprep.subr.mxu0 0.0
        %1101 = vmatpush2.msra.mxu0 0.0
        %1102 = vmatprep.subr.mxu0 0.0
        %1103 = vmatpush2.msra.mxu0 0.0
        %1104 = vmatprep.mubr.f32.mxu0 0.0
        %1105 = vmatmul.mubr.f32.gmra.mxu0 %v1038
        %v1106 = vpop.f32.mrf.mxu0
        %v1107 = vadd.f32 0.0, %v1106
        %v1108 = vpop.f32.mrf.mxu0
        %1109 = vdwg.mxu0
        %1110 = vmatprep.subr.mxu0 0.0
        %1111 = vmatpush1.msra.mxu0 0.0
        %1112 = vmatprep.subr.mxu0 0.0
        %1113 = vmatpush1.msra.mxu0 0.0
        %1114 = vmatprep.subr.mxu0 0.0
        %1115 = vmatpush1.msra.mxu0 0.0
        %1116 = vmatprep.subr.mxu0 0.0
        %1117 = vmatpush1.msra.mxu0 0.0
        %1118 = vmatprep.subr.mxu0 0.0
        %1119 = vmatpush1.msra.mxu0 0.0
        %1120 = vmatprep.subr.mxu0 0.0
        %1121 = vmatpush1.msra.mxu0 0.0
        %1122 = vmatprep.subr.mxu0 0.0
        %1123 = vmatpush1.msra.mxu0 0.0
        %1124 = vmatprep.subr.mxu0 0.0
        %1125 = vmatpush1.msra.mxu0 0.0
        %1126 = vmatprep.subr.mxu0 0.0
        %1127 = vmatpush1.msra.mxu0 0.0
        %1128 = vmatprep.subr.mxu0 0.0
        %1129 = vmatpush1.msra.mxu0 0.0
        %1130 = vmatprep.subr.mxu0 0.0
        %1131 = vmatpush1.msra.mxu0 0.0
        %1132 = vmatprep.subr.mxu0 0.0
        %1133 = vmatpush1.msra.mxu0 0.0
        %1134 = vmatprep.subr.mxu0 0.0
        %1135 = vmatpush1.msra.mxu0 0.0
        %1136 = vmatprep.subr.mxu0 0.0
        %1137 = vmatpush1.msra.mxu0 0.0
        %1138 = vmatprep.subr.mxu0 0.0
        %1139 = vmatpush1.msra.mxu0 %v593
        %1140 = vmatprep.subr.mxu0 0.0
        %1141 = vmatpush1.msra.mxu0 %v588
        %1142 = vmatprep.subr.mxu0 0.0
        %1143 = vmatpush2.msra.mxu0 0.0
        %1144 = vmatprep.subr.mxu0 0.0
        %1145 = vmatpush2.msra.mxu0 0.0
        %1146 = vmatprep.subr.mxu0 0.0
        %1147 = vmatpush2.msra.mxu0 0.0
        %1148 = vmatprep.subr.mxu0 0.0
        %1149 = vmatpush2.msra.mxu0 0.0
        %1150 = vmatprep.subr.mxu0 0.0
        %1151 = vmatpush2.msra.mxu0 0.0
        %1152 = vmatprep.subr.mxu0 0.0
        %1153 = vmatpush2.msra.mxu0 0.0
        %1154 = vmatprep.subr.mxu0 0.0
        %1155 = vmatpush2.msra.mxu0 0.0
        %1156 = vmatprep.subr.mxu0 0.0
        %1157 = vmatpush2.msra.mxu0 0.0
        %1158 = vmatprep.subr.mxu0 0.0
        %1159 = vmatpush2.msra.mxu0 0.0
        %1160 = vmatprep.subr.mxu0 0.0
        %1161 = vmatpush2.msra.mxu0 0.0
        %1162 = vmatprep.subr.mxu0 0.0
        %1163 = vmatpush2.msra.mxu0 0.0
        %1164 = vmatprep.subr.mxu0 0.0
        %1165 = vmatpush2.msra.mxu0 0.0
        %1166 = vmatprep.subr.mxu0 0.0
        %1167 = vmatpush2.msra.mxu0 0.0
        %1168 = vmatprep.subr.mxu0 0.0
        %1169 = vmatpush2.msra.mxu0 0.0
        %1170 = vmatprep.subr.mxu0 0.0
        %1171 = vmatpush2.msra.mxu0 0.0
        %1172 = vmatprep.subr.mxu0 0.0
        %1173 = vmatpush2.msra.mxu0 0.0
        %1174 = vmatprep.mubr.f32.mxu0 0.0
        %1175 = vmatmul.mubr.f32.gmra.mxu0 %v1038
        %v1176 = vpop.f32.mrf.mxu0
        %v1177 = vadd.f32 0.0, %v1176
        %v1178 = vpop.f32.mrf.mxu0
        %1179 = vdwg.mxu0
        %1180 = vmatprep.subr.mxu0 0.0
        %1181 = vmatpush1.msra.mxu0 0.0
        %1182 = vmatprep.subr.mxu0 0.0
        %1183 = vmatpush1.msra.mxu0 0.0
        %1184 = vmatprep.subr.mxu0 0.0
        %1185 = vmatpush1.msra.mxu0 0.0
        %1186 = vmatprep.subr.mxu0 0.0
        %1187 = vmatpush1.msra.mxu0 0.0
        %1188 = vmatprep.subr.mxu0 0.0
        %1189 = vmatpush1.msra.mxu0 0.0
        %1190 = vmatprep.subr.mxu0 0.0
        %1191 = vmatpush1.msra.mxu0 0.0
        %1192 = vmatprep.subr.mxu0 0.0
        %1193 = vmatpush1.msra.mxu0 0.0
        %1194 = vmatprep.subr.mxu0 0.0
        %1195 = vmatpush1.msra.mxu0 0.0
        %1196 = vmatprep.subr.mxu0 0.0
        %1197 = vmatpush1.msra.mxu0 0.0
        %1198 = vmatprep.subr.mxu0 0.0
        %1199 = vmatpush1.msra.mxu0 0.0
        %1200 = vmatprep.subr.mxu0 0.0
        %1201 = vmatpush1.msra.mxu0 0.0
        %1202 = vmatprep.subr.mxu0 0.0
        %1203 = vmatpush1.msra.mxu0 0.0
        %1204 = vmatprep.subr.mxu0 0.0
        %1205 = vmatpush1.msra.mxu0 0.0
        %1206 = vmatprep.subr.mxu0 0.0
        %1207 = vmatpush1.msra.mxu0 0.0
        %1208 = vmatprep.subr.mxu0 0.0
        %1209 = vmatpush1.msra.mxu0 %v730
        %1210 = vmatprep.subr.mxu0 0.0
        %1211 = vmatpush1.msra.mxu0 %v725
        %1212 = vmatprep.subr.mxu0 0.0
        %1213 = vmatpush2.msra.mxu0 0.0
        %1214 = vmatprep.subr.mxu0 0.0
        %1215 = vmatpush2.msra.mxu0 0.0
        %1216 = vmatprep.subr.mxu0 0.0
        %1217 = vmatpush2.msra.mxu0 0.0
        %1218 = vmatprep.subr.mxu0 0.0
        %1219 = vmatpush2.msra.mxu0 0.0
        %1220 = vmatprep.subr.mxu0 0.0
        %1221 = vmatpush2.msra.mxu0 0.0
        %1222 = vmatprep.subr.mxu0 0.0
        %1223 = vmatpush2.msra.mxu0 0.0
        %1224 = vmatprep.subr.mxu0 0.0
        %1225 = vmatpush2.msra.mxu0 0.0
        %1226 = vmatprep.subr.mxu0 0.0
        %1227 = vmatpush2.msra.mxu0 0.0
        %1228 = vmatprep.subr.mxu0 0.0
        %1229 = vmatpush2.msra.mxu0 0.0
        %1230 = vmatprep.subr.mxu0 0.0
        %1231 = vmatpush2.msra.mxu0 0.0
        %1232 = vmatprep.subr.mxu0 0.0
        %1233 = vmatpush2.msra.mxu0 0.0
        %1234 = vmatprep.subr.mxu0 0.0
        %1235 = vmatpush2.msra.mxu0 0.0
        %1236 = vmatprep.subr.mxu0 0.0
        %1237 = vmatpush2.msra.mxu0 0.0
        %1238 = vmatprep.subr.mxu0 0.0
        %1239 = vmatpush2.msra.mxu0 0.0
        %1240 = vmatprep.subr.mxu0 0.0
        %1241 = vmatpush2.msra.mxu0 0.0
        %1242 = vmatprep.subr.mxu0 0.0
        %1243 = vmatpush2.msra.mxu0 0.0
        %1244 = vmatprep.mubr.f32.mxu0 0.0
        %1245 = vmatmul.mubr.f32.gmra.mxu0 %v1038
        %v1246 = vpop.f32.mrf.mxu0
        %v1247 = vadd.f32 0.0, %v1246
        %v1248 = vpop.f32.mrf.mxu0
        %1249 = vdwg.mxu0
        %1250 = vmatprep.subr.mxu0 0.0
        %1251 = vmatpush1.msra.mxu0 0.0
        %1252 = vmatprep.subr.mxu0 0.0
        %1253 = vmatpush1.msra.mxu0 0.0
        %1254 = vmatprep.subr.mxu0 0.0
        %1255 = vmatpush1.msra.mxu0 0.0
        %1256 = vmatprep.subr.mxu0 0.0
        %1257 = vmatpush1.msra.mxu0 0.0
        %1258 = vmatprep.subr.mxu0 0.0
        %1259 = vmatpush1.msra.mxu0 0.0
        %1260 = vmatprep.subr.mxu0 0.0
        %1261 = vmatpush1.msra.mxu0 0.0
        %1262 = vmatprep.subr.mxu0 0.0
        %1263 = vmatpush1.msra.mxu0 0.0
        %1264 = vmatprep.subr.mxu0 0.0
        %1265 = vmatpush1.msra.mxu0 0.0
        %1266 = vmatprep.subr.mxu0 0.0
        %1267 = vmatpush1.msra.mxu0 0.0
        %1268 = vmatprep.subr.mxu0 0.0
        %1269 = vmatpush1.msra.mxu0 0.0
        %1270 = vmatprep.subr.mxu0 0.0
        %1271 = vmatpush1.msra.mxu0 0.0
        %1272 = vmatprep.subr.mxu0 0.0
        %1273 = vmatpush1.msra.mxu0 0.0
        %1274 = vmatprep.subr.mxu0 0.0
        %1275 = vmatpush1.msra.mxu0 0.0
        %1276 = vmatprep.subr.mxu0 0.0
        %1277 = vmatpush1.msra.mxu0 0.0
        %1278 = vmatprep.subr.mxu0 0.0
        %1279 = vmatpush1.msra.mxu0 %v867
        %1280 = vmatprep.subr.mxu0 0.0
        %1281 = vmatpush1.msra.mxu0 %v862
        %1282 = vmatprep.subr.mxu0 0.0
        %1283 = vmatpush2.msra.mxu0 0.0
        %1284 = vmatprep.subr.mxu0 0.0
        %1285 = vmatpush2.msra.mxu0 0.0
        %1286 = vmatprep.subr.mxu0 0.0
        %1287 = vmatpush2.msra.mxu0 0.0
        %1288 = vmatprep.subr.mxu0 0.0
        %1289 = vmatpush2.msra.mxu0 0.0
        %1290 = vmatprep.subr.mxu0 0.0
        %1291 = vmatpush2.msra.mxu0 0.0
        %1292 = vmatprep.subr.mxu0 0.0
        %1293 = vmatpush2.msra.mxu0 0.0
        %1294 = vmatprep.subr.mxu0 0.0
        %1295 = vmatpush2.msra.mxu0 0.0
        %1296 = vmatprep.subr.mxu0 0.0
        %1297 = vmatpush2.msra.mxu0 0.0
        %1298 = vmatprep.subr.mxu0 0.0
        %1299 = vmatpush2.msra.mxu0 0.0
        %1300 = vmatprep.subr.mxu0 0.0
        %1301 = vmatpush2.msra.mxu0 0.0
        %1302 = vmatprep.subr.mxu0 0.0
        %1303 = vmatpush2.msra.mxu0 0.0
        %1304 = vmatprep.subr.mxu0 0.0
        %1305 = vmatpush2.msra.mxu0 0.0
        %1306 = vmatprep.subr.mxu0 0.0
        %1307 = vmatpush2.msra.mxu0 0.0
        %1308 = vmatprep.subr.mxu0 0.0
        %1309 = vmatpush2.msra.mxu0 0.0
        %1310 = vmatprep.subr.mxu0 0.0
        %1311 = vmatpush2.msra.mxu0 0.0
        %1312 = vmatprep.subr.mxu0 0.0
        %1313 = vmatpush2.msra.mxu0 0.0
        %1314 = vmatprep.mubr.f32.mxu0 0.0
        %1315 = vmatmul.mubr.f32.gmra.mxu0 %v1038
        %v1316 = vpop.f32.mrf.mxu0
        %v1317 = vadd.f32 0.0, %v1316
        %v1318 = vpop.f32.mrf.mxu0
        %1319 = vdwg.mxu0
        %1320 = vmatprep.subr.mxu0 0.0
        %1321 = vmatpush1.msra.mxu0 0.0
        %1322 = vmatprep.subr.mxu0 0.0
        %1323 = vmatpush1.msra.mxu0 0.0
        %1324 = vmatprep.subr.mxu0 0.0
        %1325 = vmatpush1.msra.mxu0 0.0
        %1326 = vmatprep.subr.mxu0 0.0
        %1327 = vmatpush1.msra.mxu0 0.0
        %1328 = vmatprep.subr.mxu0 0.0
        %1329 = vmatpush1.msra.mxu0 0.0
        %1330 = vmatprep.subr.mxu0 0.0
        %1331 = vmatpush1.msra.mxu0 0.0
        %1332 = vmatprep.subr.mxu0 0.0
        %1333 = vmatpush1.msra.mxu0 0.0
        %1334 = vmatprep.subr.mxu0 0.0
        %1335 = vmatpush1.msra.mxu0 0.0
        %1336 = vmatprep.subr.mxu0 0.0
        %1337 = vmatpush1.msra.mxu0 0.0
        %1338 = vmatprep.subr.mxu0 0.0
        %1339 = vmatpush1.msra.mxu0 0.0
        %1340 = vmatprep.subr.mxu0 0.0
        %1341 = vmatpush1.msra.mxu0 0.0
        %1342 = vmatprep.subr.mxu0 0.0
        %1343 = vmatpush1.msra.mxu0 0.0
        %1344 = vmatprep.subr.mxu0 0.0
        %1345 = vmatpush1.msra.mxu0 0.0
        %1346 = vmatprep.subr.mxu0 0.0
        %1347 = vmatpush1.msra.mxu0 0.0
        %1348 = vmatprep.subr.mxu0 0.0
        %1349 = vmatpush1.msra.mxu0 %v1004
        %1350 = vmatprep.subr.mxu0 0.0
        %1351 = vmatpush1.msra.mxu0 %v999
        %1352 = vmatprep.subr.mxu0 0.0
        %1353 = vmatpush2.msra.mxu0 0.0
        %1354 = vmatprep.subr.mxu0 0.0
        %1355 = vmatpush2.msra.mxu0 0.0
        %1356 = vmatprep.subr.mxu0 0.0
        %1357 = vmatpush2.msra.mxu0 0.0
        %1358 = vmatprep.subr.mxu0 0.0
        %1359 = vmatpush2.msra.mxu0 0.0
        %1360 = vmatprep.subr.mxu0 0.0
        %1361 = vmatpush2.msra.mxu0 0.0
        %1362 = vmatprep.subr.mxu0 0.0
        %1363 = vmatpush2.msra.mxu0 0.0
        %1364 = vmatprep.subr.mxu0 0.0
        %1365 = vmatpush2.msra.mxu0 0.0
        %1366 = vmatprep.subr.mxu0 0.0
        %1367 = vmatpush2.msra.mxu0 0.0
        %1368 = vmatprep.subr.mxu0 0.0
        %1369 = vmatpush2.msra.mxu0 0.0
        %1370 = vmatprep.subr.mxu0 0.0
        %1371 = vmatpush2.msra.mxu0 0.0
        %1372 = vmatprep.subr.mxu0 0.0
        %1373 = vmatpush2.msra.mxu0 0.0
        %1374 = vmatprep.subr.mxu0 0.0
        %1375 = vmatpush2.msra.mxu0 0.0
        %1376 = vmatprep.subr.mxu0 0.0
        %1377 = vmatpush2.msra.mxu0 0.0
        %1378 = vmatprep.subr.mxu0 0.0
        %1379 = vmatpush2.msra.mxu0 0.0
        %1380 = vmatprep.subr.mxu0 0.0
        %1381 = vmatpush2.msra.mxu0 0.0
        %1382 = vmatprep.subr.mxu0 0.0
        %1383 = vmatpush2.msra.mxu0 0.0
        %1384 = vmatprep.mubr.f32.mxu0 0.0
        %1385 = vmatmul.mubr.f32.gmra.mxu0 %v1038
        %v1386 = vpop.f32.mrf.mxu0
        %v1387 = vadd.f32 0.0, %v1386
        %v1388 = vpop.f32.mrf.mxu0
        %1389 = vdwg.mxu0
        %v1390 = vmul.f32 %v1107, %v1107
        %v1391 = vmul.f32 %v1177, %v1177
        %v1392 = vmul.f32 %v1107, %v1177
        %v1393 = vsub.f32 %v1247, %v1390
        %v1394 = vsub.f32 %v1317, %v1391
        %v1395 = vsub.f32 %v1387, %v1392
        %v1396 = vmul.f32 %v1392, 2.0
        %v1397 = vadd.f32 %v1396, 0.0001
        %v1398 = vmul.f32 %v1395, 2.0
        %v1399 = vadd.f32 %v1398, 0.0009
        %v1400 = vmul.f32 %v1397, %v1399
        %v1401 = vadd.f32 %v1390, %v1391
        %v1402 = vadd.f32 %v1401, 0.0001
        %v1403 = vadd.f32 %v1393, %v1394
        %v1404 = vadd.f32 %v1403, 0.0009
        %v1405 = vmul.f32 %v1402, %v1404
        %v1406 = vrcp.pop %v1405
        %v1407 = vmul.f32 %v1405, %v1406
        %v1408 = vsub.f32 2.0, %v1407
        %v1409 = vmul.f32 %v1406, %v1408
        %v1410 = vmul.f32 %v1400, %v1409
        %v1411 = vsub.f32 %v1410, 1.0
        %v1412 = vadd.f32 %v1411, 0.0
        %v1413 = vadd.f32 %v1412, 0.0
        %1414 = vmatprep.subr.mxu0 0.0
        %1415 = vmatpush1.msra.mxu0 0.0
        %1416 = vmatprep.subr.mxu0 0.0
        %1417 = vmatpush1.msra.mxu0 0.0
        %1418 = vmatprep.subr.mxu0 0.0
        %1419 = vmatpush1.msra.mxu0 0.0
        %1420 = vmatprep.subr.mxu0 0.0
        %1421 = vmatpush1.msra.mxu0 0.0
        %1422 = vmatprep.subr.mxu0 0.0
        %1423 = vmatpush1.msra.mxu0 0.0
        %1424 = vmatprep.subr.mxu0 0.0
        %1425 = vmatpush1.msra.mxu0 0.0
        %1426 = vmatprep.subr.mxu0 0.0
        %1427 = vmatpush1.msra.mxu0 0.0
        %1428 = vmatprep.subr.mxu0 0.0
        %1429 = vmatpush1.msra.mxu0 0.0
        %1430 = vmatprep.subr.mxu0 0.0
        %1431 = vmatpush1.msra.mxu0 0.0
        %1432 = vmatprep.subr.mxu0 0.0
        %1433 = vmatpush1.msra.mxu0 0.0
        %1434 = vmatprep.subr.mxu0 0.0
        %1435 = vmatpush1.msra.mxu0 0.0
        %1436 = vmatprep.subr.mxu0 0.0
        %1437 = vmatpush1.msra.mxu0 0.0
        %1438 = vmatprep.subr.mxu0 0.0
        %1439 = vmatpush1.msra.mxu0 0.0
        %1440 = vmatprep.subr.mxu0 0.0
        %1441 = vmatpush1.msra.mxu0 0.0
        %1442 = vmatprep.subr.mxu0 0.0
        %1443 = vmatpush1.msra.mxu0 %v474
        %1444 = vmatprep.subr.mxu0 0.0
        %1445 = vmatpush1.msra.mxu0 %v469
        %1446 = vmatprep.subr.mxu0 0.0
        %1447 = vmatpush2.msra.mxu0 0.0
        %1448 = vmatprep.subr.mxu0 0.0
        %1449 = vmatpush2.msra.mxu0 0.0
        %1450 = vmatprep.subr.mxu0 0.0
        %1451 = vmatpush2.msra.mxu0 0.0
        %1452 = vmatprep.subr.mxu0 0.0
        %1453 = vmatpush2.msra.mxu0 0.0
        %1454 = vmatprep.subr.mxu0 0.0
        %1455 = vmatpush2.msra.mxu0 0.0
        %1456 = vmatprep.subr.mxu0 0.0
        %1457 = vmatpush2.msra.mxu0 0.0
        %1458 = vmatprep.subr.mxu0 0.0
        %1459 = vmatpush2.msra.mxu0 0.0
        %1460 = vmatprep.subr.mxu0 0.0
        %1461 = vmatpush2.msra.mxu0 0.0
        %1462 = vmatprep.subr.mxu0 0.0
        %1463 = vmatpush2.msra.mxu0 0.0
        %1464 = vmatprep.subr.mxu0 0.0
        %1465 = vmatpush2.msra.mxu0 0.0
        %1466 = vmatprep.subr.mxu0 0.0
        %1467 = vmatpush2.msra.mxu0 0.0
        %1468 = vmatprep.subr.mxu0 0.0
        %1469 = vmatpush2.msra.mxu0 0.0
        %1470 = vmatprep.subr.mxu0 0.0
        %1471 = vmatpush2.msra.mxu0 0.0
        %1472 = vmatprep.subr.mxu0 0.0
        %1473 = vmatpush2.msra.mxu0 0.0
        %1474 = vmatprep.subr.mxu0 0.0
        %1475 = vmatpush2.msra.mxu0 0.0
        %1476 = vmatprep.subr.mxu0 0.0
        %1477 = vmatpush2.msra.mxu0 0.0
        %1478 = vmatprep.mubr.f32.mxu0 0.0
        %1479 = vmatmul.mubr.f32.gmra.mxu0 %v1038
        %v1480 = vpop.f32.mrf.mxu0
        %v1481 = vadd.f32 0.0, %v1480
        %v1482 = vpop.f32.mrf.mxu0
        %1483 = vdwg.mxu0
        %1484 = vmatprep.subr.mxu0 0.0
        %1485 = vmatpush1.msra.mxu0 0.0
        %1486 = vmatprep.subr.mxu0 0.0
        %1487 = vmatpush1.msra.mxu0 0.0
        %1488 = vmatprep.subr.mxu0 0.0
        %1489 = vmatpush1.msra.mxu0 0.0
        %1490 = vmatprep.subr.mxu0 0.0
        %1491 = vmatpush1.msra.mxu0 0.0
        %1492 = vmatprep.subr.mxu0 0.0
        %1493 = vmatpush1.msra.mxu0 0.0
        %1494 = vmatprep.subr.mxu0 0.0
        %1495 = vmatpush1.msra.mxu0 0.0
        %1496 = vmatprep.subr.mxu0 0.0
        %1497 = vmatpush1.msra.mxu0 0.0
        %1498 = vmatprep.subr.mxu0 0.0
        %1499 = vmatpush1.msra.mxu0 0.0
        %1500 = vmatprep.subr.mxu0 0.0
        %1501 = vmatpush1.msra.mxu0 0.0
        %1502 = vmatprep.subr.mxu0 0.0
        %1503 = vmatpush1.msra.mxu0 0.0
        %1504 = vmatprep.subr.mxu0 0.0
        %1505 = vmatpush1.msra.mxu0 0.0
        %1506 = vmatprep.subr.mxu0 0.0
        %1507 = vmatpush1.msra.mxu0 0.0
        %1508 = vmatprep.subr.mxu0 0.0
        %1509 = vmatpush1.msra.mxu0 0.0
        %1510 = vmatprep.subr.mxu0 0.0
        %1511 = vmatpush1.msra.mxu0 0.0
        %1512 = vmatprep.subr.mxu0 0.0
        %1513 = vmatpush1.msra.mxu0 %v603
        %1514 = vmatprep.subr.mxu0 0.0
        %1515 = vmatpush1.msra.mxu0 %v598
        %1516 = vmatprep.subr.mxu0 0.0
        %1517 = vmatpush2.msra.mxu0 0.0
        %1518 = vmatprep.subr.mxu0 0.0
        %1519 = vmatpush2.msra.mxu0 0.0
        %1520 = vmatprep.subr.mxu0 0.0
        %1521 = vmatpush2.msra.mxu0 0.0
        %1522 = vmatprep.subr.mxu0 0.0
        %1523 = vmatpush2.msra.mxu0 0.0
        %1524 = vmatprep.subr.mxu0 0.0
        %1525 = vmatpush2.msra.mxu0 0.0
        %1526 = vmatprep.subr.mxu0 0.0
        %1527 = vmatpush2.msra.mxu0 0.0
        %1528 = vmatprep.subr.mxu0 0.0
        %1529 = vmatpush2.msra.mxu0 0.0
        %1530 = vmatprep.subr.mxu0 0.0
        %1531 = vmatpush2.msra.mxu0 0.0
        %1532 = vmatprep.subr.mxu0 0.0
        %1533 = vmatpush2.msra.mxu0 0.0
        %1534 = vmatprep.subr.mxu0 0.0
        %1535 = vmatpush2.msra.mxu0 0.0
        %1536 = vmatprep.subr.mxu0 0.0
        %1537 = vmatpush2.msra.mxu0 0.0
        %1538 = vmatprep.subr.mxu0 0.0
        %1539 = vmatpush2.msra.mxu0 0.0
        %1540 = vmatprep.subr.mxu0 0.0
        %1541 = vmatpush2.msra.mxu0 0.0
        %1542 = vmatprep.subr.mxu0 0.0
        %1543 = vmatpush2.msra.mxu0 0.0
        %1544 = vmatprep.subr.mxu0 0.0
        %1545 = vmatpush2.msra.mxu0 0.0
        %1546 = vmatprep.subr.mxu0 0.0
        %1547 = vmatpush2.msra.mxu0 0.0
        %1548 = vmatprep.mubr.f32.mxu0 0.0
        %1549 = vmatmul.mubr.f32.gmra.mxu0 %v1038
        %v1550 = vpop.f32.mrf.mxu0
        %v1551 = vadd.f32 0.0, %v1550
        %v1552 = vpop.f32.mrf.mxu0
        %1553 = vdwg.mxu0
        %1554 = vmatprep.subr.mxu0 0.0
        %1555 = vmatpush1.msra.mxu0 0.0
        %1556 = vmatprep.subr.mxu0 0.0
        %1557 = vmatpush1.msra.mxu0 0.0
        %1558 = vmatprep.subr.mxu0 0.0
        %1559 = vmatpush1.msra.mxu0 0.0
        %1560 = vmatprep.subr.mxu0 0.0
        %1561 = vmatpush1.msra.mxu0 0.0
        %1562 = vmatprep.subr.mxu0 0.0
        %1563 = vmatpush1.msra.mxu0 0.0
        %1564 = vmatprep.subr.mxu0 0.0
        %1565 = vmatpush1.msra.mxu0 0.0
        %1566 = vmatprep.subr.mxu0 0.0
        %1567 = vmatpush1.msra.mxu0 0.0
        %1568 = vmatprep.subr.mxu0 0.0
        %1569 = vmatpush1.msra.mxu0 0.0
        %1570 = vmatprep.subr.mxu0 0.0
        %1571 = vmatpush1.msra.mxu0 0.0
        %1572 = vmatprep.subr.mxu0 0.0
        %1573 = vmatpush1.msra.mxu0 0.0
        %1574 = vmatprep.subr.mxu0 0.0
        %1575 = vmatpush1.msra.mxu0 0.0
        %1576 = vmatprep.subr.mxu0 0.0
        %1577 = vmatpush1.msra.mxu0 0.0
        %1578 = vmatprep.subr.mxu0 0.0
        %1579 = vmatpush1.msra.mxu0 0.0
        %1580 = vmatprep.subr.mxu0 0.0
        %1581 = vmatpush1.msra.mxu0 0.0
        %1582 = vmatprep.subr.mxu0 0.0
        %1583 = vmatpush1.msra.mxu0 %v740
        %1584 = vmatprep.subr.mxu0 0.0
        %1585 = vmatpush1.msra.mxu0 %v735
        %1586 = vmatprep.subr.mxu0 0.0
        %1587 = vmatpush2.msra.mxu0 0.0
        %1588 = vmatprep.subr.mxu0 0.0
        %1589 = vmatpush2.msra.mxu0 0.0
        %1590 = vmatprep.subr.mxu0 0.0
        %1591 = vmatpush2.msra.mxu0 0.0
        %1592 = vmatprep.subr.mxu0 0.0
        %1593 = vmatpush2.msra.mxu0 0.0
        %1594 = vmatprep.subr.mxu0 0.0
        %1595 = vmatpush2.msra.mxu0 0.0
        %1596 = vmatprep.subr.mxu0 0.0
        %1597 = vmatpush2.msra.mxu0 0.0
        %1598 = vmatprep.subr.mxu0 0.0
        %1599 = vmatpush2.msra.mxu0 0.0
        %1600 = vmatprep.subr.mxu0 0.0
        %1601 = vmatpush2.msra.mxu0 0.0
        %1602 = vmatprep.subr.mxu0 0.0
        %1603 = vmatpush2.msra.mxu0 0.0
        %1604 = vmatprep.subr.mxu0 0.0
        %1605 = vmatpush2.msra.mxu0 0.0
        %1606 = vmatprep.subr.mxu0 0.0
        %1607 = vmatpush2.msra.mxu0 0.0
        %1608 = vmatprep.subr.mxu0 0.0
        %1609 = vmatpush2.msra.mxu0 0.0
        %1610 = vmatprep.subr.mxu0 0.0
        %1611 = vmatpush2.msra.mxu0 0.0
        %1612 = vmatprep.subr.mxu0 0.0
        %1613 = vmatpush2.msra.mxu0 0.0
        %1614 = vmatprep.subr.mxu0 0.0
        %1615 = vmatpush2.msra.mxu0 0.0
        %1616 = vmatprep.subr.mxu0 0.0
        %1617 = vmatpush2.msra.mxu0 0.0
        %1618 = vmatprep.mubr.f32.mxu0 0.0
        %1619 = vmatmul.mubr.f32.gmra.mxu0 %v1038
        %v1620 = vpop.f32.mrf.mxu0
        %v1621 = vadd.f32 0.0, %v1620
        %v1622 = vpop.f32.mrf.mxu0
        %1623 = vdwg.mxu0
        %1624 = vmatprep.subr.mxu0 0.0
        %1625 = vmatpush1.msra.mxu0 0.0
        %1626 = vmatprep.subr.mxu0 0.0
        %1627 = vmatpush1.msra.mxu0 0.0
        %1628 = vmatprep.subr.mxu0 0.0
        %1629 = vmatpush1.msra.mxu0 0.0
        %1630 = vmatprep.subr.mxu0 0.0
        %1631 = vmatpush1.msra.mxu0 0.0
        %1632 = vmatprep.subr.mxu0 0.0
        %1633 = vmatpush1.msra.mxu0 0.0
        %1634 = vmatprep.subr.mxu0 0.0
        %1635 = vmatpush1.msra.mxu0 0.0
        %1636 = vmatprep.subr.mxu0 0.0
        %1637 = vmatpush1.msra.mxu0 0.0
        %1638 = vmatprep.subr.mxu0 0.0
        %1639 = vmatpush1.msra.mxu0 0.0
        %1640 = vmatprep.subr.mxu0 0.0
        %1641 = vmatpush1.msra.mxu0 0.0
        %1642 = vmatprep.subr.mxu0 0.0
        %1643 = vmatpush1.msra.mxu0 0.0
        %1644 = vmatprep.subr.mxu0 0.0
        %1645 = vmatpush1.msra.mxu0 0.0
        %1646 = vmatprep.subr.mxu0 0.0
        %1647 = vmatpush1.msra.mxu0 0.0
        %1648 = vmatprep.subr.mxu0 0.0
        %1649 = vmatpush1.msra.mxu0 0.0
        %1650 = vmatprep.subr.mxu0 0.0
        %1651 = vmatpush1.msra.mxu0 0.0
        %1652 = vmatprep.subr.mxu0 0.0
        %1653 = vmatpush1.msra.mxu0 %v877
        %1654 = vmatprep.subr.mxu0 0.0
        %1655 = vmatpush1.msra.mxu0 %v872
        %1656 = vmatprep.subr.mxu0 0.0
        %1657 = vmatpush2.msra.mxu0 0.0
        %1658 = vmatprep.subr.mxu0 0.0
        %1659 = vmatpush2.msra.mxu0 0.0
        %1660 = vmatprep.subr.mxu0 0.0
        %1661 = vmatpush2.msra.mxu0 0.0
        %1662 = vmatprep.subr.mxu0 0.0
        %1663 = vmatpush2.msra.mxu0 0.0
        %1664 = vmatprep.subr.mxu0 0.0
        %1665 = vmatpush2.msra.mxu0 0.0
        %1666 = vmatprep.subr.mxu0 0.0
        %1667 = vmatpush2.msra.mxu0 0.0
        %1668 = vmatprep.subr.mxu0 0.0
        %1669 = vmatpush2.msra.mxu0 0.0
        %1670 = vmatprep.subr.mxu0 0.0
        %1671 = vmatpush2.msra.mxu0 0.0
        %1672 = vmatprep.subr.mxu0 0.0
        %1673 = vmatpush2.msra.mxu0 0.0
        %1674 = vmatprep.subr.mxu0 0.0
        %1675 = vmatpush2.msra.mxu0 0.0
        %1676 = vmatprep.subr.mxu0 0.0
        %1677 = vmatpush2.msra.mxu0 0.0
        %1678 = vmatprep.subr.mxu0 0.0
        %1679 = vmatpush2.msra.mxu0 0.0
        %1680 = vmatprep.subr.mxu0 0.0
        %1681 = vmatpush2.msra.mxu0 0.0
        %1682 = vmatprep.subr.mxu0 0.0
        %1683 = vmatpush2.msra.mxu0 0.0
        %1684 = vmatprep.subr.mxu0 0.0
        %1685 = vmatpush2.msra.mxu0 0.0
        %1686 = vmatprep.subr.mxu0 0.0
        %1687 = vmatpush2.msra.mxu0 0.0
        %1688 = vmatprep.mubr.f32.mxu0 0.0
        %1689 = vmatmul.mubr.f32.gmra.mxu0 %v1038
        %v1690 = vpop.f32.mrf.mxu0
        %v1691 = vadd.f32 0.0, %v1690
        %v1692 = vpop.f32.mrf.mxu0
        %1693 = vdwg.mxu0
        %1694 = vmatprep.subr.mxu0 0.0
        %1695 = vmatpush1.msra.mxu0 0.0
        %1696 = vmatprep.subr.mxu0 0.0
        %1697 = vmatpush1.msra.mxu0 0.0
        %1698 = vmatprep.subr.mxu0 0.0
        %1699 = vmatpush1.msra.mxu0 0.0
        %1700 = vmatprep.subr.mxu0 0.0
        %1701 = vmatpush1.msra.mxu0 0.0
        %1702 = vmatprep.subr.mxu0 0.0
        %1703 = vmatpush1.msra.mxu0 0.0
        %1704 = vmatprep.subr.mxu0 0.0
        %1705 = vmatpush1.msra.mxu0 0.0
        %1706 = vmatprep.subr.mxu0 0.0
        %1707 = vmatpush1.msra.mxu0 0.0
        %1708 = vmatprep.subr.mxu0 0.0
        %1709 = vmatpush1.msra.mxu0 0.0
        %1710 = vmatprep.subr.mxu0 0.0
        %1711 = vmatpush1.msra.mxu0 0.0
        %1712 = vmatprep.subr.mxu0 0.0
        %1713 = vmatpush1.msra.mxu0 0.0
        %1714 = vmatprep.subr.mxu0 0.0
        %1715 = vmatpush1.msra.mxu0 0.0
        %1716 = vmatprep.subr.mxu0 0.0
        %1717 = vmatpush1.msra.mxu0 0.0
        %1718 = vmatprep.subr.mxu0 0.0
        %1719 = vmatpush1.msra.mxu0 0.0
        %1720 = vmatprep.subr.mxu0 0.0
        %1721 = vmatpush1.msra.mxu0 0.0
        %1722 = vmatprep.subr.mxu0 0.0
        %1723 = vmatpush1.msra.mxu0 %v1014
        %1724 = vmatprep.subr.mxu0 0.0
        %1725 = vmatpush1.msra.mxu0 %v1009
        %1726 = vmatprep.subr.mxu0 0.0
        %1727 = vmatpush2.msra.mxu0 0.0
        %1728 = vmatprep.subr.mxu0 0.0
        %1729 = vmatpush2.msra.mxu0 0.0
        %1730 = vmatprep.subr.mxu0 0.0
        %1731 = vmatpush2.msra.mxu0 0.0
        %1732 = vmatprep.subr.mxu0 0.0
        %1733 = vmatpush2.msra.mxu0 0.0
        %1734 = vmatprep.subr.mxu0 0.0
        %1735 = vmatpush2.msra.mxu0 0.0
        %1736 = vmatprep.subr.mxu0 0.0
        %1737 = vmatpush2.msra.mxu0 0.0
        %1738 = vmatprep.subr.mxu0 0.0
        %1739 = vmatpush2.msra.mxu0 0.0
        %1740 = vmatprep.subr.mxu0 0.0
        %1741 = vmatpush2.msra.mxu0 0.0
        %1742 = vmatprep.subr.mxu0 0.0
        %1743 = vmatpush2.msra.mxu0 0.0
        %1744 = vmatprep.subr.mxu0 0.0
        %1745 = vmatpush2.msra.mxu0 0.0
        %1746 = vmatprep.subr.mxu0 0.0
        %1747 = vmatpush2.msra.mxu0 0.0
        %1748 = vmatprep.subr.mxu0 0.0
        %1749 = vmatpush2.msra.mxu0 0.0
        %1750 = vmatprep.subr.mxu0 0.0
        %1751 = vmatpush2.msra.mxu0 0.0
        %1752 = vmatprep.subr.mxu0 0.0
        %1753 = vmatpush2.msra.mxu0 0.0
        %1754 = vmatprep.subr.mxu0 0.0
        %1755 = vmatpush2.msra.mxu0 0.0
        %1756 = vmatprep.subr.mxu0 0.0
        %1757 = vmatpush2.msra.mxu0 0.0
        %1758 = vmatprep.mubr.f32.mxu0 0.0
        %1759 = vmatmul.mubr.f32.gmra.mxu0 %v1038
        %v1760 = vpop.f32.mrf.mxu0
        %v1761 = vadd.f32 0.0, %v1760
        %v1762 = vpop.f32.mrf.mxu0
        %1763 = vdwg.mxu0
        %v1764 = vmul.f32 %v1481, %v1481
        %v1765 = vmul.f32 %v1551, %v1551
        %v1766 = vmul.f32 %v1481, %v1551
        %v1767 = vsub.f32 %v1621, %v1764
        %v1768 = vsub.f32 %v1691, %v1765
        %v1769 = vsub.f32 %v1761, %v1766
        %v1770 = vmul.f32 %v1766, 2.0
        %v1771 = vadd.f32 %v1770, 0.0001
        %v1772 = vmul.f32 %v1769, 2.0
        %v1773 = vadd.f32 %v1772, 0.0009
        %v1774 = vmul.f32 %v1771, %v1773
        %v1775 = vadd.f32 %v1764, %v1765
        %v1776 = vadd.f32 %v1775, 0.0001
        %v1777 = vadd.f32 %v1767, %v1768
        %v1778 = vadd.f32 %v1777, 0.0009
        %v1779 = vmul.f32 %v1776, %v1778
        %v1780 = vrcp.pop %v1779
        %v1781 = vmul.f32 %v1779, %v1780
        %v1782 = vsub.f32 2.0, %v1781
        %v1783 = vmul.f32 %v1780, %v1782
        %v1784 = vmul.f32 %v1774, %v1783
        %v1785 = vsub.f32 %v1784, 1.0
        %v1786 = vadd.f32 %v1785, 0.0
        %v1787 = vadd.f32 %v1413, %v1786
        %1788 = vmatprep.subr.mxu0 0.0
        %1789 = vmatpush1.msra.mxu0 0.0
        %1790 = vmatprep.subr.mxu0 0.0
        %1791 = vmatpush1.msra.mxu0 0.0
        %1792 = vmatprep.subr.mxu0 0.0
        %1793 = vmatpush1.msra.mxu0 0.0
        %1794 = vmatprep.subr.mxu0 0.0
        %1795 = vmatpush1.msra.mxu0 0.0
        %1796 = vmatprep.subr.mxu0 0.0
        %1797 = vmatpush1.msra.mxu0 0.0
        %1798 = vmatprep.subr.mxu0 0.0
        %1799 = vmatpush1.msra.mxu0 0.0
        %1800 = vmatprep.subr.mxu0 0.0
        %1801 = vmatpush1.msra.mxu0 0.0
        %1802 = vmatprep.subr.mxu0 0.0
        %1803 = vmatpush1.msra.mxu0 0.0
        %1804 = vmatprep.subr.mxu0 0.0
        %1805 = vmatpush1.msra.mxu0 0.0
        %1806 = vmatprep.subr.mxu0 0.0
        %1807 = vmatpush1.msra.mxu0 0.0
        %1808 = vmatprep.subr.mxu0 0.0
        %1809 = vmatpush1.msra.mxu0 0.0
        %1810 = vmatprep.subr.mxu0 0.0
        %1811 = vmatpush1.msra.mxu0 0.0
        %1812 = vmatprep.subr.mxu0 0.0
        %1813 = vmatpush1.msra.mxu0 0.0
        %1814 = vmatprep.subr.mxu0 0.0
        %1815 = vmatpush1.msra.mxu0 0.0
        %1816 = vmatprep.subr.mxu0 0.0
        %1817 = vmatpush1.msra.mxu0 %v484
        %1818 = vmatprep.subr.mxu0 0.0
        %1819 = vmatpush1.msra.mxu0 %v479
        %1820 = vmatprep.subr.mxu0 0.0
        %1821 = vmatpush2.msra.mxu0 0.0
        %1822 = vmatprep.subr.mxu0 0.0
        %1823 = vmatpush2.msra.mxu0 0.0
        %1824 = vmatprep.subr.mxu0 0.0
        %1825 = vmatpush2.msra.mxu0 0.0
        %1826 = vmatprep.subr.mxu0 0.0
        %1827 = vmatpush2.msra.mxu0 0.0
        %1828 = vmatprep.subr.mxu0 0.0
        %1829 = vmatpush2.msra.mxu0 0.0
        %1830 = vmatprep.subr.mxu0 0.0
        %1831 = vmatpush2.msra.mxu0 0.0
        %1832 = vmatprep.subr.mxu0 0.0
        %1833 = vmatpush2.msra.mxu0 0.0
        %1834 = vmatprep.subr.mxu0 0.0
        %1835 = vmatpush2.msra.mxu0 0.0
        %1836 = vmatprep.subr.mxu0 0.0
        %1837 = vmatpush2.msra.mxu0 0.0
        %1838 = vmatprep.subr.mxu0 0.0
        %1839 = vmatpush2.msra.mxu0 0.0
        %1840 = vmatprep.subr.mxu0 0.0
        %1841 = vmatpush2.msra.mxu0 0.0
        %1842 = vmatprep.subr.mxu0 0.0
        %1843 = vmatpush2.msra.mxu0 0.0
        %1844 = vmatprep.subr.mxu0 0.0
        %1845 = vmatpush2.msra.mxu0 0.0
        %1846 = vmatprep.subr.mxu0 0.0
        %1847 = vmatpush2.msra.mxu0 0.0
        %1848 = vmatprep.subr.mxu0 0.0
        %1849 = vmatpush2.msra.mxu0 0.0
        %1850 = vmatprep.subr.mxu0 0.0
        %1851 = vmatpush2.msra.mxu0 0.0
        %1852 = vmatprep.mubr.f32.mxu0 0.0
        %1853 = vmatmul.mubr.f32.gmra.mxu0 %v1038
        %v1854 = vpop.f32.mrf.mxu0
        %v1855 = vadd.f32 0.0, %v1854
        %v1856 = vpop.f32.mrf.mxu0
        %1857 = vdwg.mxu0
        %1858 = vmatprep.subr.mxu0 0.0
        %1859 = vmatpush1.msra.mxu0 0.0
        %1860 = vmatprep.subr.mxu0 0.0
        %1861 = vmatpush1.msra.mxu0 0.0
        %1862 = vmatprep.subr.mxu0 0.0
        %1863 = vmatpush1.msra.mxu0 0.0
        %1864 = vmatprep.subr.mxu0 0.0
        %1865 = vmatpush1.msra.mxu0 0.0
        %1866 = vmatprep.subr.mxu0 0.0
        %1867 = vmatpush1.msra.mxu0 0.0
        %1868 = vmatprep.subr.mxu0 0.0
        %1869 = vmatpush1.msra.mxu0 0.0
        %1870 = vmatprep.subr.mxu0 0.0
        %1871 = vmatpush1.msra.mxu0 0.0
        %1872 = vmatprep.subr.mxu0 0.0
        %1873 = vmatpush1.msra.mxu0 0.0
        %1874 = vmatprep.subr.mxu0 0.0
        %1875 = vmatpush1.msra.mxu0 0.0
        %1876 = vmatprep.subr.mxu0 0.0
        %1877 = vmatpush1.msra.mxu0 0.0
        %1878 = vmatprep.subr.mxu0 0.0
        %1879 = vmatpush1.msra.mxu0 0.0
        %1880 = vmatprep.subr.mxu0 0.0
        %1881 = vmatpush1.msra.mxu0 0.0
        %1882 = vmatprep.subr.mxu0 0.0
        %1883 = vmatpush1.msra.mxu0 0.0
        %1884 = vmatprep.subr.mxu0 0.0
        %1885 = vmatpush1.msra.mxu0 0.0
        %1886 = vmatprep.subr.mxu0 0.0
        %1887 = vmatpush1.msra.mxu0 %v613
        %1888 = vmatprep.subr.mxu0 0.0
        %1889 = vmatpush1.msra.mxu0 %v608
        %1890 = vmatprep.subr.mxu0 0.0
        %1891 = vmatpush2.msra.mxu0 0.0
        %1892 = vmatprep.subr.mxu0 0.0
        %1893 = vmatpush2.msra.mxu0 0.0
        %1894 = vmatprep.subr.mxu0 0.0
        %1895 = vmatpush2.msra.mxu0 0.0
        %1896 = vmatprep.subr.mxu0 0.0
        %1897 = vmatpush2.msra.mxu0 0.0
        %1898 = vmatprep.subr.mxu0 0.0
        %1899 = vmatpush2.msra.mxu0 0.0
        %1900 = vmatprep.subr.mxu0 0.0
        %1901 = vmatpush2.msra.mxu0 0.0
        %1902 = vmatprep.subr.mxu0 0.0
        %1903 = vmatpush2.msra.mxu0 0.0
        %1904 = vmatprep.subr.mxu0 0.0
        %1905 = vmatpush2.msra.mxu0 0.0
        %1906 = vmatprep.subr.mxu0 0.0
        %1907 = vmatpush2.msra.mxu0 0.0
        %1908 = vmatprep.subr.mxu0 0.0
        %1909 = vmatpush2.msra.mxu0 0.0
        %1910 = vmatprep.subr.mxu0 0.0
        %1911 = vmatpush2.msra.mxu0 0.0
        %1912 = vmatprep.subr.mxu0 0.0
        %1913 = vmatpush2.msra.mxu0 0.0
        %1914 = vmatprep.subr.mxu0 0.0
        %1915 = vmatpush2.msra.mxu0 0.0
        %1916 = vmatprep.subr.mxu0 0.0
        %1917 = vmatpush2.msra.mxu0 0.0
        %1918 = vmatprep.subr.mxu0 0.0
        %1919 = vmatpush2.msra.mxu0 0.0
        %1920 = vmatprep.subr.mxu0 0.0
        %1921 = vmatpush2.msra.mxu0 0.0
        %1922 = vmatprep.mubr.f32.mxu0 0.0
        %1923 = vmatmul.mubr.f32.gmra.mxu0 %v1038
        %v1924 = vpop.f32.mrf.mxu0
        %v1925 = vadd.f32 0.0, %v1924
        %v1926 = vpop.f32.mrf.mxu0
        %1927 = vdwg.mxu0
        %1928 = vmatprep.subr.mxu0 0.0
        %1929 = vmatpush1.msra.mxu0 0.0
        %1930 = vmatprep.subr.mxu0 0.0
        %1931 = vmatpush1.msra.mxu0 0.0
        %1932 = vmatprep.subr.mxu0 0.0
        %1933 = vmatpush1.msra.mxu0 0.0
        %1934 = vmatprep.subr.mxu0 0.0
        %1935 = vmatpush1.msra.mxu0 0.0
        %1936 = vmatprep.subr.mxu0 0.0
        %1937 = vmatpush1.msra.mxu0 0.0
        %1938 = vmatprep.subr.mxu0 0.0
        %1939 = vmatpush1.msra.mxu0 0.0
        %1940 = vmatprep.subr.mxu0 0.0
        %1941 = vmatpush1.msra.mxu0 0.0
        %1942 = vmatprep.subr.mxu0 0.0
        %1943 = vmatpush1.msra.mxu0 0.0
        %1944 = vmatprep.subr.mxu0 0.0
        %1945 = vmatpush1.msra.mxu0 0.0
        %1946 = vmatprep.subr.mxu0 0.0
        %1947 = vmatpush1.msra.mxu0 0.0
        %1948 = vmatprep.subr.mxu0 0.0
        %1949 = vmatpush1.msra.mxu0 0.0
        %1950 = vmatprep.subr.mxu0 0.0
        %1951 = vmatpush1.msra.mxu0 0.0
        %1952 = vmatprep.subr.mxu0 0.0
        %1953 = vmatpush1.msra.mxu0 0.0
        %1954 = vmatprep.subr.mxu0 0.0
        %1955 = vmatpush1.msra.mxu0 0.0
        %1956 = vmatprep.subr.mxu0 0.0
        %1957 = vmatpush1.msra.mxu0 %v750
        %1958 = vmatprep.subr.mxu0 0.0
        %1959 = vmatpush1.msra.mxu0 %v745
        %1960 = vmatprep.subr.mxu0 0.0
        %1961 = vmatpush2.msra.mxu0 0.0
        %1962 = vmatprep.subr.mxu0 0.0
        %1963 = vmatpush2.msra.mxu0 0.0
        %1964 = vmatprep.subr.mxu0 0.0
        %1965 = vmatpush2.msra.mxu0 0.0
        %1966 = vmatprep.subr.mxu0 0.0
        %1967 = vmatpush2.msra.mxu0 0.0
        %1968 = vmatprep.subr.mxu0 0.0
        %1969 = vmatpush2.msra.mxu0 0.0
        %1970 = vmatprep.subr.mxu0 0.0
        %1971 = vmatpush2.msra.mxu0 0.0
        %1972 = vmatprep.subr.mxu0 0.0
        %1973 = vmatpush2.msra.mxu0 0.0
        %1974 = vmatprep.subr.mxu0 0.0
        %1975 = vmatpush2.msra.mxu0 0.0
        %1976 = vmatprep.subr.mxu0 0.0
        %1977 = vmatpush2.msra.mxu0 0.0
        %1978 = vmatprep.subr.mxu0 0.0
        %1979 = vmatpush2.msra.mxu0 0.0
        %1980 = vmatprep.subr.mxu0 0.0
        %1981 = vmatpush2.msra.mxu0 0.0
        %1982 = vmatprep.subr.mxu0 0.0
        %1983 = vmatpush2.msra.mxu0 0.0
        %1984 = vmatprep.subr.mxu0 0.0
        %1985 = vmatpush2.msra.mxu0 0.0
        %1986 = vmatprep.subr.mxu0 0.0
        %1987 = vmatpush2.msra.mxu0 0.0
        %1988 = vmatprep.subr.mxu0 0.0
        %1989 = vmatpush2.msra.mxu0 0.0
        %1990 = vmatprep.subr.mxu0 0.0
        %1991 = vmatpush2.msra.mxu0 0.0
        %1992 = vmatprep.mubr.f32.mxu0 0.0
        %1993 = vmatmul.mubr.f32.gmra.mxu0 %v1038
        %v1994 = vpop.f32.mrf.mxu0
        %v1995 = vadd.f32 0.0, %v1994
        %v1996 = vpop.f32.mrf.mxu0
        %1997 = vdwg.mxu0
        %1998 = vmatprep.subr.mxu0 0.0
        %1999 = vmatpush1.msra.mxu0 0.0
        %2000 = vmatprep.subr.mxu0 0.0
        %2001 = vmatpush1.msra.mxu0 0.0
        %2002 = vmatprep.subr.mxu0 0.0
        %2003 = vmatpush1.msra.mxu0 0.0
        %2004 = vmatprep.subr.mxu0 0.0
        %2005 = vmatpush1.msra.mxu0 0.0
        %2006 = vmatprep.subr.mxu0 0.0
        %2007 = vmatpush1.msra.mxu0 0.0
        %2008 = vmatprep.subr.mxu0 0.0
        %2009 = vmatpush1.msra.mxu0 0.0
        %2010 = vmatprep.subr.mxu0 0.0
        %2011 = vmatpush1.msra.mxu0 0.0
        %2012 = vmatprep.subr.mxu0 0.0
        %2013 = vmatpush1.msra.mxu0 0.0
        %2014 = vmatprep.subr.mxu0 0.0
        %2015 = vmatpush1.msra.mxu0 0.0
        %2016 = vmatprep.subr.mxu0 0.0
        %2017 = vmatpush1.msra.mxu0 0.0
        %2018 = vmatprep.subr.mxu0 0.0
        %2019 = vmatpush1.msra.mxu0 0.0
        %2020 = vmatprep.subr.mxu0 0.0
        %2021 = vmatpush1.msra.mxu0 0.0
        %2022 = vmatprep.subr.mxu0 0.0
        %2023 = vmatpush1.msra.mxu0 0.0
        %2024 = vmatprep.subr.mxu0 0.0
        %2025 = vmatpush1.msra.mxu0 0.0
        %2026 = vmatprep.subr.mxu0 0.0
        %2027 = vmatpush1.msra.mxu0 %v887
        %2028 = vmatprep.subr.mxu0 0.0
        %2029 = vmatpush1.msra.mxu0 %v882
        %2030 = vmatprep.subr.mxu0 0.0
        %2031 = vmatpush2.msra.mxu0 0.0
        %2032 = vmatprep.subr.mxu0 0.0
        %2033 = vmatpush2.msra.mxu0 0.0
        %2034 = vmatprep.subr.mxu0 0.0
        %2035 = vmatpush2.msra.mxu0 0.0
        %2036 = vmatprep.subr.mxu0 0.0
        %2037 = vmatpush2.msra.mxu0 0.0
        %2038 = vmatprep.subr.mxu0 0.0
        %2039 = vmatpush2.msra.mxu0 0.0
        %2040 = vmatprep.subr.mxu0 0.0
        %2041 = vmatpush2.msra.mxu0 0.0
        %2042 = vmatprep.subr.mxu0 0.0
        %2043 = vmatpush2.msra.mxu0 0.0
        %2044 = vmatprep.subr.mxu0 0.0
        %2045 = vmatpush2.msra.mxu0 0.0
        %2046 = vmatprep.subr.mxu0 0.0
        %2047 = vmatpush2.msra.mxu0 0.0
        %2048 = vmatprep.subr.mxu0 0.0
        %2049 = vmatpush2.msra.mxu0 0.0
        %2050 = vmatprep.subr.mxu0 0.0
        %2051 = vmatpush2.msra.mxu0 0.0
        %2052 = vmatprep.subr.mxu0 0.0
        %2053 = vmatpush2.msra.mxu0 0.0
        %2054 = vmatprep.subr.mxu0 0.0
        %2055 = vmatpush2.msra.mxu0 0.0
        %2056 = vmatprep.subr.mxu0 0.0
        %2057 = vmatpush2.msra.mxu0 0.0
        %2058 = vmatprep.subr.mxu0 0.0
        %2059 = vmatpush2.msra.mxu0 0.0
        %2060 = vmatprep.subr.mxu0 0.0
        %2061 = vmatpush2.msra.mxu0 0.0
        %2062 = vmatprep.mubr.f32.mxu0 0.0
        %2063 = vmatmul.mubr.f32.gmra.mxu0 %v1038
        %v2064 = vpop.f32.mrf.mxu0
        %v2065 = vadd.f32 0.0, %v2064
        %v2066 = vpop.f32.mrf.mxu0
        %2067 = vdwg.mxu0
        %2068 = vmatprep.subr.mxu0 0.0
        %2069 = vmatpush1.msra.mxu0 0.0
        %2070 = vmatprep.subr.mxu0 0.0
        %2071 = vmatpush1.msra.mxu0 0.0
        %2072 = vmatprep.subr.mxu0 0.0
        %2073 = vmatpush1.msra.mxu0 0.0
        %2074 = vmatprep.subr.mxu0 0.0
        %2075 = vmatpush1.msra.mxu0 0.0
        %2076 = vmatprep.subr.mxu0 0.0
        %2077 = vmatpush1.msra.mxu0 0.0
        %2078 = vmatprep.subr.mxu0 0.0
        %2079 = vmatpush1.msra.mxu0 0.0
        %2080 = vmatprep.subr.mxu0 0.0
        %2081 = vmatpush1.msra.mxu0 0.0
        %2082 = vmatprep.subr.mxu0 0.0
        %2083 = vmatpush1.msra.mxu0 0.0
        %2084 = vmatprep.subr.mxu0 0.0
        %2085 = vmatpush1.msra.mxu0 0.0
        %2086 = vmatprep.subr.mxu0 0.0
        %2087 = vmatpush1.msra.mxu0 0.0
        %2088 = vmatprep.subr.mxu0 0.0
        %2089 = vmatpush1.msra.mxu0 0.0
        %2090 = vmatprep.subr.mxu0 0.0
        %2091 = vmatpush1.msra.mxu0 0.0
        %2092 = vmatprep.subr.mxu0 0.0
        %2093 = vmatpush1.msra.mxu0 0.0
        %2094 = vmatprep.subr.mxu0 0.0
        %2095 = vmatpush1.msra.mxu0 0.0
        %2096 = vmatprep.subr.mxu0 0.0
        %2097 = vmatpush1.msra.mxu0 %v1024
        %2098 = vmatprep.subr.mxu0 0.0
        %2099 = vmatpush1.msra.mxu0 %v1019
        %2100 = vmatprep.subr.mxu0 0.0
        %2101 = vmatpush2.msra.mxu0 0.0
        %2102 = vmatprep.subr.mxu0 0.0
        %2103 = vmatpush2.msra.mxu0 0.0
        %2104 = vmatprep.subr.mxu0 0.0
        %2105 = vmatpush2.msra.mxu0 0.0
        %2106 = vmatprep.subr.mxu0 0.0
        %2107 = vmatpush2.msra.mxu0 0.0
        %2108 = vmatprep.subr.mxu0 0.0
        %2109 = vmatpush2.msra.mxu0 0.0
        %2110 = vmatprep.subr.mxu0 0.0
        %2111 = vmatpush2.msra.mxu0 0.0
        %2112 = vmatprep.subr.mxu0 0.0
        %2113 = vmatpush2.msra.mxu0 0.0
        %2114 = vmatprep.subr.mxu0 0.0
        %2115 = vmatpush2.msra.mxu0 0.0
        %2116 = vmatprep.subr.mxu0 0.0
        %2117 = vmatpush2.msra.mxu0 0.0
        %2118 = vmatprep.subr.mxu0 0.0
        %2119 = vmatpush2.msra.mxu0 0.0
        %2120 = vmatprep.subr.mxu0 0.0
        %2121 = vmatpush2.msra.mxu0 0.0
        %2122 = vmatprep.subr.mxu0 0.0
        %2123 = vmatpush2.msra.mxu0 0.0
        %2124 = vmatprep.subr.mxu0 0.0
        %2125 = vmatpush2.msra.mxu0 0.0
        %2126 = vmatprep.subr.mxu0 0.0
        %2127 = vmatpush2.msra.mxu0 0.0
        %2128 = vmatprep.subr.mxu0 0.0
        %2129 = vmatpush2.msra.mxu0 0.0
        %2130 = vmatprep.subr.mxu0 0.0
        %2131 = vmatpush2.msra.mxu0 0.0
        %2132 = vmatprep.mubr.f32.mxu0 0.0
        %2133 = vmatmul.mubr.f32.gmra.mxu0 %v1038
        %v2134 = vpop.f32.mrf.mxu0
        %v2135 = vadd.f32 0.0, %v2134
        %v2136 = vpop.f32.mrf.mxu0
        %2137 = vdwg.mxu0
        %v2138 = vmul.f32 %v1855, %v1855
        %v2139 = vmul.f32 %v1925, %v1925
        %v2140 = vmul.f32 %v1855, %v1925
        %v2141 = vsub.f32 %v1995, %v2138
        %v2142 = vsub.f32 %v2065, %v2139
        %v2143 = vsub.f32 %v2135, %v2140
        %v2144 = vmul.f32 %v2140, 2.0
        %v2145 = vadd.f32 %v2144, 0.0001
        %v2146 = vmul.f32 %v2143, 2.0
        %v2147 = vadd.f32 %v2146, 0.0009
        %v2148 = vmul.f32 %v2145, %v2147
        %v2149 = vadd.f32 %v2138, %v2139
        %v2150 = vadd.f32 %v2149, 0.0001
        %v2151 = vadd.f32 %v2141, %v2142
        %v2152 = vadd.f32 %v2151, 0.0009
        %v2153 = vmul.f32 %v2150, %v2152
        %v2154 = vrcp.pop %v2153
        %v2155 = vmul.f32 %v2153, %v2154
        %v2156 = vsub.f32 2.0, %v2155
        %v2157 = vmul.f32 %v2154, %v2156
        %v2158 = vmul.f32 %v2148, %v2157
        %v2159 = vsub.f32 %v2158, 1.0
        %v2160 = vadd.f32 %v2159, 0.0
        %v2161 = vadd.f32 %v1787, %v2160
        %2162 = vmatprep.subr.mxu0 0.0
        %2163 = vmatpush1.msra.mxu0 0.0
        %2164 = vmatprep.subr.mxu0 0.0
        %2165 = vmatpush1.msra.mxu0 0.0
        %2166 = vmatprep.subr.mxu0 0.0
        %2167 = vmatpush1.msra.mxu0 0.0
        %2168 = vmatprep.subr.mxu0 0.0
        %2169 = vmatpush1.msra.mxu0 0.0
        %2170 = vmatprep.subr.mxu0 0.0
        %2171 = vmatpush1.msra.mxu0 0.0
        %2172 = vmatprep.subr.mxu0 0.0
        %2173 = vmatpush1.msra.mxu0 0.0
        %2174 = vmatprep.subr.mxu0 0.0
        %2175 = vmatpush1.msra.mxu0 0.0
        %2176 = vmatprep.subr.mxu0 0.0
        %2177 = vmatpush1.msra.mxu0 0.0
        %2178 = vmatprep.subr.mxu0 0.0
        %2179 = vmatpush1.msra.mxu0 0.0
        %2180 = vmatprep.subr.mxu0 0.0
        %2181 = vmatpush1.msra.mxu0 0.0
        %2182 = vmatprep.subr.mxu0 0.0
        %2183 = vmatpush1.msra.mxu0 0.0
        %2184 = vmatprep.subr.mxu0 0.0
        %2185 = vmatpush1.msra.mxu0 0.0
        %2186 = vmatprep.subr.mxu0 0.0
        %2187 = vmatpush1.msra.mxu0 0.0
        %2188 = vmatprep.subr.mxu0 0.0
        %2189 = vmatpush1.msra.mxu0 0.0
        %2190 = vmatprep.subr.mxu0 0.0
        %2191 = vmatpush1.msra.mxu0 %v494
        %2192 = vmatprep.subr.mxu0 0.0
        %2193 = vmatpush1.msra.mxu0 %v489
        %2194 = vmatprep.subr.mxu0 0.0
        %2195 = vmatpush2.msra.mxu0 0.0
        %2196 = vmatprep.subr.mxu0 0.0
        %2197 = vmatpush2.msra.mxu0 0.0
        %2198 = vmatprep.subr.mxu0 0.0
        %2199 = vmatpush2.msra.mxu0 0.0
        %2200 = vmatprep.subr.mxu0 0.0
        %2201 = vmatpush2.msra.mxu0 0.0
        %2202 = vmatprep.subr.mxu0 0.0
        %2203 = vmatpush2.msra.mxu0 0.0
        %2204 = vmatprep.subr.mxu0 0.0
        %2205 = vmatpush2.msra.mxu0 0.0
        %2206 = vmatprep.subr.mxu0 0.0
        %2207 = vmatpush2.msra.mxu0 0.0
        %2208 = vmatprep.subr.mxu0 0.0
        %2209 = vmatpush2.msra.mxu0 0.0
        %2210 = vmatprep.subr.mxu0 0.0
        %2211 = vmatpush2.msra.mxu0 0.0
        %2212 = vmatprep.subr.mxu0 0.0
        %2213 = vmatpush2.msra.mxu0 0.0
        %2214 = vmatprep.subr.mxu0 0.0
        %2215 = vmatpush2.msra.mxu0 0.0
        %2216 = vmatprep.subr.mxu0 0.0
        %2217 = vmatpush2.msra.mxu0 0.0
        %2218 = vmatprep.subr.mxu0 0.0
        %2219 = vmatpush2.msra.mxu0 0.0
        %2220 = vmatprep.subr.mxu0 0.0
        %2221 = vmatpush2.msra.mxu0 0.0
        %2222 = vmatprep.subr.mxu0 0.0
        %2223 = vmatpush2.msra.mxu0 0.0
        %2224 = vmatprep.subr.mxu0 0.0
        %2225 = vmatpush2.msra.mxu0 0.0
        %2226 = vmatprep.mubr.f32.mxu0 0.0
        %2227 = vmatmul.mubr.f32.gmra.mxu0 %v1038
        %v2228 = vpop.f32.mrf.mxu0
        %v2229 = vadd.f32 0.0, %v2228
        %v2230 = vpop.f32.mrf.mxu0
        %2231 = vdwg.mxu0
        %2232 = vmatprep.subr.mxu0 0.0
        %2233 = vmatpush1.msra.mxu0 0.0
        %2234 = vmatprep.subr.mxu0 0.0
        %2235 = vmatpush1.msra.mxu0 0.0
        %2236 = vmatprep.subr.mxu0 0.0
        %2237 = vmatpush1.msra.mxu0 0.0
        %2238 = vmatprep.subr.mxu0 0.0
        %2239 = vmatpush1.msra.mxu0 0.0
        %2240 = vmatprep.subr.mxu0 0.0
        %2241 = vmatpush1.msra.mxu0 0.0
        %2242 = vmatprep.subr.mxu0 0.0
        %2243 = vmatpush1.msra.mxu0 0.0
        %2244 = vmatprep.subr.mxu0 0.0
        %2245 = vmatpush1.msra.mxu0 0.0
        %2246 = vmatprep.subr.mxu0 0.0
        %2247 = vmatpush1.msra.mxu0 0.0
        %2248 = vmatprep.subr.mxu0 0.0
        %2249 = vmatpush1.msra.mxu0 0.0
        %2250 = vmatprep.subr.mxu0 0.0
        %2251 = vmatpush1.msra.mxu0 0.0
        %2252 = vmatprep.subr.mxu0 0.0
        %2253 = vmatpush1.msra.mxu0 0.0
        %2254 = vmatprep.subr.mxu0 0.0
        %2255 = vmatpush1.msra.mxu0 0.0
        %2256 = vmatprep.subr.mxu0 0.0
        %2257 = vmatpush1.msra.mxu0 0.0
        %2258 = vmatprep.subr.mxu0 0.0
        %2259 = vmatpush1.msra.mxu0 0.0
        %2260 = vmatprep.subr.mxu0 0.0
        %2261 = vmatpush1.msra.mxu0 %v623
        %2262 = vmatprep.subr.mxu0 0.0
        %2263 = vmatpush1.msra.mxu0 %v618
        %2264 = vmatprep.subr.mxu0 0.0
        %2265 = vmatpush2.msra.mxu0 0.0
        %2266 = vmatprep.subr.mxu0 0.0
        %2267 = vmatpush2.msra.mxu0 0.0
        %2268 = vmatprep.subr.mxu0 0.0
        %2269 = vmatpush2.msra.mxu0 0.0
        %2270 = vmatprep.subr.mxu0 0.0
        %2271 = vmatpush2.msra.mxu0 0.0
        %2272 = vmatprep.subr.mxu0 0.0
        %2273 = vmatpush2.msra.mxu0 0.0
        %2274 = vmatprep.subr.mxu0 0.0
        %2275 = vmatpush2.msra.mxu0 0.0
        %2276 = vmatprep.subr.mxu0 0.0
        %2277 = vmatpush2.msra.mxu0 0.0
        %2278 = vmatprep.subr.mxu0 0.0
        %2279 = vmatpush2.msra.mxu0 0.0
        %2280 = vmatprep.subr.mxu0 0.0
        %2281 = vmatpush2.msra.mxu0 0.0
        %2282 = vmatprep.subr.mxu0 0.0
        %2283 = vmatpush2.msra.mxu0 0.0
        %2284 = vmatprep.subr.mxu0 0.0
        %2285 = vmatpush2.msra.mxu0 0.0
        %2286 = vmatprep.subr.mxu0 0.0
        %2287 = vmatpush2.msra.mxu0 0.0
        %2288 = vmatprep.subr.mxu0 0.0
        %2289 = vmatpush2.msra.mxu0 0.0
        %2290 = vmatprep.subr.mxu0 0.0
        %2291 = vmatpush2.msra.mxu0 0.0
        %2292 = vmatprep.subr.mxu0 0.0
        %2293 = vmatpush2.msra.mxu0 0.0
        %2294 = vmatprep.subr.mxu0 0.0
        %2295 = vmatpush2.msra.mxu0 0.0
        %2296 = vmatprep.mubr.f32.mxu0 0.0
        %2297 = vmatmul.mubr.f32.gmra.mxu0 %v1038
        %v2298 = vpop.f32.mrf.mxu0
        %v2299 = vadd.f32 0.0, %v2298
        %v2300 = vpop.f32.mrf.mxu0
        %2301 = vdwg.mxu0
        %2302 = vmatprep.subr.mxu0 0.0
        %2303 = vmatpush1.msra.mxu0 0.0
        %2304 = vmatprep.subr.mxu0 0.0
        %2305 = vmatpush1.msra.mxu0 0.0
        %2306 = vmatprep.subr.mxu0 0.0
        %2307 = vmatpush1.msra.mxu0 0.0
        %2308 = vmatprep.subr.mxu0 0.0
        %2309 = vmatpush1.msra.mxu0 0.0
        %2310 = vmatprep.subr.mxu0 0.0
        %2311 = vmatpush1.msra.mxu0 0.0
        %2312 = vmatprep.subr.mxu0 0.0
        %2313 = vmatpush1.msra.mxu0 0.0
        %2314 = vmatprep.subr.mxu0 0.0
        %2315 = vmatpush1.msra.mxu0 0.0
        %2316 = vmatprep.subr.mxu0 0.0
        %2317 = vmatpush1.msra.mxu0 0.0
        %2318 = vmatprep.subr.mxu0 0.0
        %2319 = vmatpush1.msra.mxu0 0.0
        %2320 = vmatprep.subr.mxu0 0.0
        %2321 = vmatpush1.msra.mxu0 0.0
        %2322 = vmatprep.subr.mxu0 0.0
        %2323 = vmatpush1.msra.mxu0 0.0
        %2324 = vmatprep.subr.mxu0 0.0
        %2325 = vmatpush1.msra.mxu0 0.0
        %2326 = vmatprep.subr.mxu0 0.0
        %2327 = vmatpush1.msra.mxu0 0.0
        %2328 = vmatprep.subr.mxu0 0.0
        %2329 = vmatpush1.msra.mxu0 0.0
        %2330 = vmatprep.subr.mxu0 0.0
        %2331 = vmatpush1.msra.mxu0 %v760
        %2332 = vmatprep.subr.mxu0 0.0
        %2333 = vmatpush1.msra.mxu0 %v755
        %2334 = vmatprep.subr.mxu0 0.0
        %2335 = vmatpush2.msra.mxu0 0.0
        %2336 = vmatprep.subr.mxu0 0.0
        %2337 = vmatpush2.msra.mxu0 0.0
        %2338 = vmatprep.subr.mxu0 0.0
        %2339 = vmatpush2.msra.mxu0 0.0
        %2340 = vmatprep.subr.mxu0 0.0
        %2341 = vmatpush2.msra.mxu0 0.0
        %2342 = vmatprep.subr.mxu0 0.0
        %2343 = vmatpush2.msra.mxu0 0.0
        %2344 = vmatprep.subr.mxu0 0.0
        %2345 = vmatpush2.msra.mxu0 0.0
        %2346 = vmatprep.subr.mxu0 0.0
        %2347 = vmatpush2.msra.mxu0 0.0
        %2348 = vmatprep.subr.mxu0 0.0
        %2349 = vmatpush2.msra.mxu0 0.0
        %2350 = vmatprep.subr.mxu0 0.0
        %2351 = vmatpush2.msra.mxu0 0.0
        %2352 = vmatprep.subr.mxu0 0.0
        %2353 = vmatpush2.msra.mxu0 0.0
        %2354 = vmatprep.subr.mxu0 0.0
        %2355 = vmatpush2.msra.mxu0 0.0
        %2356 = vmatprep.subr.mxu0 0.0
        %2357 = vmatpush2.msra.mxu0 0.0
        %2358 = vmatprep.subr.mxu0 0.0
        %2359 = vmatpush2.msra.mxu0 0.0
        %2360 = vmatprep.subr.mxu0 0.0
        %2361 = vmatpush2.msra.mxu0 0.0
        %2362 = vmatprep.subr.mxu0 0.0
        %2363 = vmatpush2.msra.mxu0 0.0
        %2364 = vmatprep.subr.mxu0 0.0
        %2365 = vmatpush2.msra.mxu0 0.0
        %2366 = vmatprep.mubr.f32.mxu0 0.0
        %2367 = vmatmul.mubr.f32.gmra.mxu0 %v1038
        %v2368 = vpop.f32.mrf.mxu0
        %v2369 = vadd.f32 0.0, %v2368
        %v2370 = vpop.f32.mrf.mxu0
        %2371 = vdwg.mxu0
        %2372 = vmatprep.subr.mxu0 0.0
        %2373 = vmatpush1.msra.mxu0 0.0
        %2374 = vmatprep.subr.mxu0 0.0
        %2375 = vmatpush1.msra.mxu0 0.0
        %2376 = vmatprep.subr.mxu0 0.0
        %2377 = vmatpush1.msra.mxu0 0.0
        %2378 = vmatprep.subr.mxu0 0.0
        %2379 = vmatpush1.msra.mxu0 0.0
        %2380 = vmatprep.subr.mxu0 0.0
        %2381 = vmatpush1.msra.mxu0 0.0
        %2382 = vmatprep.subr.mxu0 0.0
        %2383 = vmatpush1.msra.mxu0 0.0
        %2384 = vmatprep.subr.mxu0 0.0
        %2385 = vmatpush1.msra.mxu0 0.0
        %2386 = vmatprep.subr.mxu0 0.0
        %2387 = vmatpush1.msra.mxu0 0.0
        %2388 = vmatprep.subr.mxu0 0.0
        %2389 = vmatpush1.msra.mxu0 0.0
        %2390 = vmatprep.subr.mxu0 0.0
        %2391 = vmatpush1.msra.mxu0 0.0
        %2392 = vmatprep.subr.mxu0 0.0
        %2393 = vmatpush1.msra.mxu0 0.0
        %2394 = vmatprep.subr.mxu0 0.0
        %2395 = vmatpush1.msra.mxu0 0.0
        %2396 = vmatprep.subr.mxu0 0.0
        %2397 = vmatpush1.msra.mxu0 0.0
        %2398 = vmatprep.subr.mxu0 0.0
        %2399 = vmatpush1.msra.mxu0 0.0
        %2400 = vmatprep.subr.mxu0 0.0
        %2401 = vmatpush1.msra.mxu0 %v897
        %2402 = vmatprep.subr.mxu0 0.0
        %2403 = vmatpush1.msra.mxu0 %v892
        %2404 = vmatprep.subr.mxu0 0.0
        %2405 = vmatpush2.msra.mxu0 0.0
        %2406 = vmatprep.subr.mxu0 0.0
        %2407 = vmatpush2.msra.mxu0 0.0
        %2408 = vmatprep.subr.mxu0 0.0
        %2409 = vmatpush2.msra.mxu0 0.0
        %2410 = vmatprep.subr.mxu0 0.0
        %2411 = vmatpush2.msra.mxu0 0.0
        %2412 = vmatprep.subr.mxu0 0.0
        %2413 = vmatpush2.msra.mxu0 0.0
        %2414 = vmatprep.subr.mxu0 0.0
        %2415 = vmatpush2.msra.mxu0 0.0
        %2416 = vmatprep.subr.mxu0 0.0
        %2417 = vmatpush2.msra.mxu0 0.0
        %2418 = vmatprep.subr.mxu0 0.0
        %2419 = vmatpush2.msra.mxu0 0.0
        %2420 = vmatprep.subr.mxu0 0.0
        %2421 = vmatpush2.msra.mxu0 0.0
        %2422 = vmatprep.subr.mxu0 0.0
        %2423 = vmatpush2.msra.mxu0 0.0
        %2424 = vmatprep.subr.mxu0 0.0
        %2425 = vmatpush2.msra.mxu0 0.0
        %2426 = vmatprep.subr.mxu0 0.0
        %2427 = vmatpush2.msra.mxu0 0.0
        %2428 = vmatprep.subr.mxu0 0.0
        %2429 = vmatpush2.msra.mxu0 0.0
        %2430 = vmatprep.subr.mxu0 0.0
        %2431 = vmatpush2.msra.mxu0 0.0
        %2432 = vmatprep.subr.mxu0 0.0
        %2433 = vmatpush2.msra.mxu0 0.0
        %2434 = vmatprep.subr.mxu0 0.0
        %2435 = vmatpush2.msra.mxu0 0.0
        %2436 = vmatprep.mubr.f32.mxu0 0.0
        %2437 = vmatmul.mubr.f32.gmra.mxu0 %v1038
        %v2438 = vpop.f32.mrf.mxu0
        %v2439 = vadd.f32 0.0, %v2438
        %v2440 = vpop.f32.mrf.mxu0
        %2441 = vdwg.mxu0
        %2442 = vmatprep.subr.mxu0 0.0
        %2443 = vmatpush1.msra.mxu0 0.0
        %2444 = vmatprep.subr.mxu0 0.0
        %2445 = vmatpush1.msra.mxu0 0.0
        %2446 = vmatprep.subr.mxu0 0.0
        %2447 = vmatpush1.msra.mxu0 0.0
        %2448 = vmatprep.subr.mxu0 0.0
        %2449 = vmatpush1.msra.mxu0 0.0
        %2450 = vmatprep.subr.mxu0 0.0
        %2451 = vmatpush1.msra.mxu0 0.0
        %2452 = vmatprep.subr.mxu0 0.0
        %2453 = vmatpush1.msra.mxu0 0.0
        %2454 = vmatprep.subr.mxu0 0.0
        %2455 = vmatpush1.msra.mxu0 0.0
        %2456 = vmatprep.subr.mxu0 0.0
        %2457 = vmatpush1.msra.mxu0 0.0
        %2458 = vmatprep.subr.mxu0 0.0
        %2459 = vmatpush1.msra.mxu0 0.0
        %2460 = vmatprep.subr.mxu0 0.0
        %2461 = vmatpush1.msra.mxu0 0.0
        %2462 = vmatprep.subr.mxu0 0.0
        %2463 = vmatpush1.msra.mxu0 0.0
        %2464 = vmatprep.subr.mxu0 0.0
        %2465 = vmatpush1.msra.mxu0 0.0
        %2466 = vmatprep.subr.mxu0 0.0
        %2467 = vmatpush1.msra.mxu0 0.0
        %2468 = vmatprep.subr.mxu0 0.0
        %2469 = vmatpush1.msra.mxu0 0.0
        %2470 = vmatprep.subr.mxu0 0.0
        %2471 = vmatpush1.msra.mxu0 %v1034
        %2472 = vmatprep.subr.mxu0 0.0
        %2473 = vmatpush1.msra.mxu0 %v1029
        %2474 = vmatprep.subr.mxu0 0.0
        %2475 = vmatpush2.msra.mxu0 0.0
        %2476 = vmatprep.subr.mxu0 0.0
        %2477 = vmatpush2.msra.mxu0 0.0
        %2478 = vmatprep.subr.mxu0 0.0
        %2479 = vmatpush2.msra.mxu0 0.0
        %2480 = vmatprep.subr.mxu0 0.0
        %2481 = vmatpush2.msra.mxu0 0.0
        %2482 = vmatprep.subr.mxu0 0.0
        %2483 = vmatpush2.msra.mxu0 0.0
        %2484 = vmatprep.subr.mxu0 0.0
        %2485 = vmatpush2.msra.mxu0 0.0
        %2486 = vmatprep.subr.mxu0 0.0
        %2487 = vmatpush2.msra.mxu0 0.0
        %2488 = vmatprep.subr.mxu0 0.0
        %2489 = vmatpush2.msra.mxu0 0.0
        %2490 = vmatprep.subr.mxu0 0.0
        %2491 = vmatpush2.msra.mxu0 0.0
        %2492 = vmatprep.subr.mxu0 0.0
        %2493 = vmatpush2.msra.mxu0 0.0
        %2494 = vmatprep.subr.mxu0 0.0
        %2495 = vmatpush2.msra.mxu0 0.0
        %2496 = vmatprep.subr.mxu0 0.0
        %2497 = vmatpush2.msra.mxu0 0.0
        %2498 = vmatprep.subr.mxu0 0.0
        %2499 = vmatpush2.msra.mxu0 0.0
        %2500 = vmatprep.subr.mxu0 0.0
        %2501 = vmatpush2.msra.mxu0 0.0
        %2502 = vmatprep.subr.mxu0 0.0
        %2503 = vmatpush2.msra.mxu0 0.0
        %2504 = vmatprep.subr.mxu0 0.0
        %2505 = vmatpush2.msra.mxu0 0.0
        %2506 = vmatprep.mubr.f32.mxu0 0.0
        %2507 = vmatmul.mubr.f32.gmra.mxu0 %v1038
        %v2508 = vpop.f32.mrf.mxu0
        %v2509 = vadd.f32 0.0, %v2508
        %v2510 = vpop.f32.mrf.mxu0
        %2511 = vdwg.mxu0
        %v2512 = vmul.f32 %v2229, %v2229
        %v2513 = vmul.f32 %v2299, %v2299
        %v2514 = vmul.f32 %v2229, %v2299
        %v2515 = vsub.f32 %v2369, %v2512
        %v2516 = vsub.f32 %v2439, %v2513
        %v2517 = vsub.f32 %v2509, %v2514
        %v2518 = vmul.f32 %v2514, 2.0
        %v2519 = vadd.f32 %v2518, 0.0001
        %v2520 = vmul.f32 %v2517, 2.0
        %v2521 = vadd.f32 %v2520, 0.0009
        %v2522 = vmul.f32 %v2519, %v2521
        %v2523 = vadd.f32 %v2512, %v2513
        %v2524 = vadd.f32 %v2523, 0.0001
        %v2525 = vadd.f32 %v2515, %v2516
        %v2526 = vadd.f32 %v2525, 0.0009
        %v2527 = vmul.f32 %v2524, %v2526
        %v2528 = vrcp.pop %v2527
        %v2529 = vmul.f32 %v2527, %v2528
        %v2530 = vsub.f32 2.0, %v2529
        %v2531 = vmul.f32 %v2528, %v2530
        %v2532 = vmul.f32 %v2522, %v2531
        %v2533 = vsub.f32 %v2532, 1.0
        %v2534 = vadd.f32 %v2533, 0.0
        %v2535 = vadd.f32 %v2161, %v2534
        %v2536 = vld [vmem:[#allocation3] sm:$0xff]
        %v2537 = vadd.f32 %v2536, %v2535
        %2538 = vst [vmem:[#allocation3] sm:$0xff] %v2537
        // Predicated region
        $region57: #{tpu_custom_call.1} parent=35 // pred_check
          %p2539 = pneg %p307
        $region58: #{tpu_custom_call.1} parent=35 // pred_check_branch
          %2541 = sbr.rel (%p2539) target = $region60
        $region59: #{tpu_custom_call.1} parent=35 // pred_region
          %v2542 = vld [vmem:[#allocation2] sm:$0xff]
          %v2543 = vsel %vm350, %v2542, 0.0
          %2544 = vadd.xlane.f32.xlu0 %v2543
          %v2545 = vpop.xlane.xlu0 %2544
          %v2546 = vrot.slane %v2545, 4
          %v2547 = vadd.f32 %v2545, %v2546
          %v2548 = vrot.slane %v2547, 2
          %v2549 = vadd.f32 %v2547, %v2548
          %v2550 = vrot.slane %v2549, 1
          %v2551 = vadd.f32 %v2549, %v2550
          %s2552 = vtos %v2551
          %v2553 = vld [vmem:[#allocation3] sm:$0xff]
          %2554 = vadd.xlane.f32.xlu0 %v2553
          %v2555 = vpop.xlane.xlu0 %2554
          %v2556 = vrot.slane %v2555, 4
          %v2557 = vadd.f32 %v2555, %v2556
          %v2558 = vrot.slane %v2557, 2
          %v2559 = vadd.f32 %v2557, %v2558
          %v2560 = vrot.slane %v2559, 1
          %v2561 = vadd.f32 %v2559, %v2560
          %s2562 = vtos %v2561
          %v2563 = vlaneseq
          %v2564 = vand.u32 %v2563, 127
          %vm2565 = vcmp.eq.s32.totalorder %v2564, 0
          %v2566 = vstv %s2552
          %v2567 = vsel %vm2565, %v2566, 0.0
          %vm2568 = vcmp.eq.s32.totalorder %v2564, 1
          %v2569 = vstv %s2562
          %v2570 = vsel %vm2568, %v2569, 0.0
          %v2571 = vadd.f32 %v2567, %v2570
          %2572 = vst [vmem:[%s302] sm:$0xff] %v2571
        $region60: #{tpu_custom_call.1} parent=35 // pred_fallthru
          _
        %s2573 = sand.u32 %s143, 1
        %s2574 = scalar_lea.sflag [#allocation6], %s2573
        %s2575 = sand.u32 %s143, 1
        %s2576 = smul.addr %s2575, 8
        %s2577 = scalar_lea.vmem [#allocation12], %s2576
        // Predicated region
        $region61: #{tpu_custom_call.1} parent=35 // pred_check
          %p2578 = pneg %p153
        $region62: #{tpu_custom_call.1} parent=35 // pred_check_branch
          %2580 = sbr.rel (%p2578) target = $region64
        $region63: #{tpu_custom_call.1} parent=35 // pred_region
          %s2582 = ssub.s32 128, 128
          %2583 = vsyncadd %s2574, %s2582
          %s2584 = smul.addr %s29, 128
          %s2585 = scalar_lea.hbm %s4, %s2584
          %s2587 = sshll.u32 %s2577, 4
          %s2588 = int_to_ptr.vmem [resolvable:$true] %s2587
          %2590 = dma.vmem_to_hbm [thread:$0]  %s2588, 128, %s2585, %s2574
        $region64: #{tpu_custom_call.1} parent=35 // pred_fallthru
          _
      $region36: #{tpu_custom_call.1} parent=5 // pred_fallthru
        _
      %p2591 = scmp.le.s32.totalorder 2, %s20
      // Predicated region
      $region65: #{tpu_custom_call.1} parent=5 // pred_check
        %p2592 = pneg %p2591
      $region66: #{tpu_custom_call.1} parent=5 // pred_check_branch
        %2594 = sbr.rel (%p2592) target = $region68
      $region67: #{tpu_custom_call.1} parent=5 // pred_region
        %s2595 = ssub.s32 %s20, 2
        // Predicated region
        $region69: #{tpu_custom_call.1} parent=67 // pred_check
          %p2596 = pneg %p159
        $region70: #{tpu_custom_call.1} parent=67 // pred_check_branch
          %2598 = sbr.rel (%p2596) target = $region72
        $region71: #{tpu_custom_call.1} parent=67 // pred_region
          %s2599 = sand.u32 %s144, 1
          %s2600 = scalar_lea.sflag [#allocation6], %s2599
          %s2601 = sand.u32 %s144, 1
          %s2602 = smul.addr %s2601, 8
          %s2603 = scalar_lea.vmem [#allocation12], %s2602
          %2604 = dma.done %s2600, 128
        $region72: #{tpu_custom_call.1} parent=67 // pred_fallthru
          _
      $region68: #{tpu_custom_call.1} parent=5 // pred_fallthru
        _
    $region6: #{tpu_custom_call.1} parent=1 // loop_footer
      %s24 = sadd.s32 1, %s20
    $region7: #{tpu_custom_call.1} parent=1 // loop_footer_branch
      %19 = sbr.rel target = $region3
    $region8: #{tpu_custom_call.1} parent=1 // loop_exit
      _
    %2605 = vsyncpa [#allocation5], 1
    %s2606 = scalar_lea.sflag [#allocation5], 1
    %2607 = vsyncpa %s2606, 1
    %2608 = vsyncpa [#allocation8], 1
    %s2609 = scalar_lea.sflag [#allocation8], 1
    %2610 = vsyncpa %s2609, 1
    %2611 = vsyncpa [#allocation11], 1
    %2612 = vsyncpa [#allocation6], 1
    %s2613 = scalar_lea.sflag [#allocation6], 1
    %2614 = vsyncpa %s2613, 1

// kernel: tpu_custom_call.1
$region0: #{tpu_custom_call.1}
  #allocation0 [shape = 'u32[]', space=smem, size = 0x4, offset = 0x4, fixed_abs, tag = 'smem constant byte address 0x4 - core index']
  #allocation1 [shape = 'u32[144,128]{1,0:T(1,128)}', space=vmem, size = 0x12000, scoped, tag = 'internal scratch']
  #allocation2 [shape = 'f32[8,16]{1,0:T(8,128)}', space=vmem, size = 0x1000, scoped, tag = 'scratch operand']
  #allocation3 [shape = 'f32[8,128]{1,0:T(8,128)}', space=vmem, size = 0x1000, scoped, tag = 'scratch operand']
  %s0 = inlined_call_operand.hbm [shape: f32[8,16,16], index: 0, kind: input, shape index: {}]
  %s1 = inlined_call_operand.hbm [shape: f32[8,16,16], index: 1, kind: input, shape index: {}]
  %s2 = inlined_call_operand.hbm [shape: f32[16,128], index: 2, kind: input, shape index: {}]
  %s3 = inlined_call_operand.hbm [shape: f32[8,16], index: 3, kind: input, shape index: {}]
  %s4 = inlined_call_operand.hbm [shape: f32[2,8,128], index: 4, kind: output, shape index: {}]
  %s5 = sld [smem:[#allocation0]]
  $region73: #{tpu_custom_call.1} parent=0
    _
  %s7 = ssub.s32 1, %s5
  %s8 = scalar_select 0, %s7, %s5
  $region1: #{tpu_custom_call.1} parent=0
    #allocation4 [shape = 'u8[65536]{0}', space=vmem, size = 0x10000, scoped, tag = 'input window, operand 0']
    #allocation5 [shape = 's32[2]{0}', space=sflag, size = 0x8, scoped, tag = 'scoped memory for tpu_custom_call.1']
    #allocation6 [shape = 's32[2]{0}', space=sflag, size = 0x8, scoped, tag = 'scoped memory for tpu_custom_call.1']
    #allocation7 [shape = 'u8[65536]{0}', space=vmem, size = 0x10000, scoped, tag = 'input window, operand 1']
    #allocation8 [shape = 's32[2]{0}', space=sflag, size = 0x8, scoped, tag = 'scoped memory for tpu_custom_call.1']
    #allocation9 [shape = 'u8[8192]{0}', space=vmem, size = 0x2000, scoped, tag = 'input window, operand 2, single buffered']
    #allocation10 [shape = 'u8[4096]{0}', space=vmem, size = 0x1000, scoped, tag = 'input window, operand 3, single buffered']
    #allocation11 [shape = 's32[1]{0}', space=sflag, size = 0x4, scoped, tag = 'scoped memory for tpu_custom_call.1']
    #allocation12 [shape = 'u8[8192]{0}', space=vmem, size = 0x2000, scoped, tag = 'output window, operand 0']
    %9 = vsyncpa [#allocation5], 0
    %s10 = scalar_lea.sflag [#allocation5], 1
    %11 = vsyncpa %s10, 0
    %12 = vsyncpa [#allocation8], 0
    %s13 = scalar_lea.sflag [#allocation8], 1
    %14 = vsyncpa %s13, 0
    %15 = vsyncpa [#allocation11], 0
    %16 = vsyncpa [#allocation6], 0
    %s17 = scalar_lea.sflag [#allocation6], 1
    %18 = vsyncpa %s17, 0
    loop: start=0, step=1, limit=4
    $region2: #{tpu_custom_call.1} parent=1 // loop_pre_header
      _
    $region3: #{tpu_custom_call.1} parent=1 // loop_header
      %s20 = sphi 0, %s24
      %p21 = scmp.ge.s32.totalorder %s20, 4
      %s27 = sphi 0, %s39
      %s28 = sphi 0, %s35
      %s29 = sphi 0, %s27
      %s30 = sphi 0, %s28
      %s31 = sphi 0, %s29
      %s32 = sphi 0, %s30
      %s44 = sphi 0, %s46
      %s47 = sphi 0, %s44
      %s48 = sphi 0, %s47
      %s64 = sphi 0, %s48
      %s72 = sphi 0, %s74
      %s75 = sphi 0, %s72
      %s76 = sphi 0, %s75
      %s92 = sphi 0, %s76
      %s96 = sphi 0, %s96
      %s98 = sphi 0, %s96
      %s99 = sphi 0, %s98
      %s113 = sphi 0, %s99
      %s117 = sphi 0, %s117
      %s119 = sphi 0, %s117
      %s120 = sphi 0, %s119
      %s134 = sphi 0, %s120
      %s140 = sphi 0, %s142
      %s143 = sphi 0, %s140
      %s144 = sphi 0, %s143
      %s160 = sphi 0, %s144
    $region4: #{tpu_custom_call.1} parent=1 // loop_header_branch
      %23 = sbr.rel (%p21) target = $region8
    $region5: #{tpu_custom_call.1} parent=1 // loop_body
      %s25 = ssub.s32 %s20, 1
      %s26 = ssub.s32 %s20, 2
      %s33 = sadd.s32 1, %s28
      %p34 = scmp.ge.s32.totalorder %s33, 1
      %s35 = scalar_select %p34, 0, %s33
      %s36 = sadd.s32 1, %s27
      %s37 = scalar_select %p34, %s36, %s27
      %p38 = scmp.ge.s32.totalorder %s37, 2
      %s39 = scalar_select %p38, 0, %s37
      %s40 = sadd.s32 %s27, %s28
      %s41 = sadd.s32 %s39, %s35
      %s42 = ssub.s32 %s40, %s41
      %p43 = scmp.eq.s32.totalorder %s42, 0
      %s45 = sadd.s32 %s44, 1
      %s46 = scalar_select %p43, %s44, %s45
      %p49 = pneg %p43
      %p50 = scmp.eq.s32.totalorder %s20, 1
      %p51 = por %p49, %p50
      %p52 = scmp.ne.s32.totalorder %s44, %s47
      %p53 = scmp.eq.s32.totalorder %s20, 0
      %p54 = por %p52, %p53
      %p55 = scmp.ne.s32.totalorder %s44, %s47
      %p56 = scmp.eq.s32.totalorder %s25, 1
      %p57 = por %p55, %p56
      %p58 = scmp.ne.s32.totalorder %s47, %s48
      %p59 = scmp.eq.s32.totalorder %s25, 0
      %p60 = por %p58, %p59
      %p61 = scmp.ne.s32.totalorder %s47, %s48
      %p62 = scmp.eq.s32.totalorder %s26, 1
      %p63 = por %p61, %p62
      %p65 = scmp.ne.s32.totalorder %s48, %s64
      %p66 = scmp.eq.s32.totalorder %s26, 0
      %p67 = por %p65, %p66
      %s68 = sadd.s32 %s27, %s28
      %s69 = sadd.s32 %s39, %s35
      %s70 = ssub.s32 %s68, %s69
      %p71 = scmp.eq.s32.totalorder %s70, 0
      %s73 = sadd.s32 %s72, 1
      %s74 = scalar_select %p71, %s72, %s73
      %p77 = pneg %p71
      %p78 = scmp.eq.s32.totalorder %s20, 1
      %p79 = por %p77, %p78
      %p80 = scmp.ne.s32.totalorder %s72, %s75
      %p81 = scmp.eq.s32.totalorder %s20, 0
      %p82 = por %p80, %p81
      %p83 = scmp.ne.s32.totalorder %s72, %s75
      %p84 = scmp.eq.s32.totalorder %s25, 1
      %p85 = por %p83, %p84
      %p86 = scmp.ne.s32.totalorder %s75, %s76
      %p87 = scmp.eq.s32.totalorder %s25, 0
      %p88 = por %p86, %p87
      %p89 = scmp.ne.s32.totalorder %s75, %s76
      %p90 = scmp.eq.s32.totalorder %s26, 1
      %p91 = por %p89, %p90
      %p93 = scmp.ne.s32.totalorder %s76, %s92
      %p94 = scmp.eq.s32.totalorder %s26, 0
      %p95 = por %p93, %p94
      %s97 = sadd.s32 %s96, 1
      %p100 = scmp.eq.s32.totalorder %s20, 1
      %p101 = scmp.ne.s32.totalorder %s96, %s98
      %p102 = scmp.eq.s32.totalorder %s20, 0
      %p103 = por %p101, %p102
      %p104 = scmp.ne.s32.totalorder %s96, %s98
      %p105 = scmp.eq.s32.totalorder %s25, 1
      %p106 = por %p104, %p105
      %p107 = scmp.ne.s32.totalorder %s98, %s99
      %p108 = scmp.eq.s32.totalorder %s25, 0
      %p109 = por %p107, %p108
      %p110 = scmp.ne.s32.totalorder %s98, %s99
      %p111 = scmp.eq.s32.totalorder %s26, 1
      %p112 = por %p110, %p111
      %p114 = scmp.ne.s32.totalorder %s99, %s113
      %p115 = scmp.eq.s32.totalorder %s26, 0
      %p116 = por %p114, %p115
      %s118 = sadd.s32 %s117, 1
      %p121 = scmp.eq.s32.totalorder %s20, 1
      %p122 = scmp.ne.s32.totalorder %s117, %s119
      %p123 = scmp.eq.s32.totalorder %s20, 0
      %p124 = por %p122, %p123
      %p125 = scmp.ne.s32.totalorder %s117, %s119
      %p126 = scmp.eq.s32.totalorder %s25, 1
      %p127 = por %p125, %p126
      %p128 = scmp.ne.s32.totalorder %s119, %s120
      %p129 = scmp.eq.s32.totalorder %s25, 0
      %p130 = por %p128, %p129
      %p131 = scmp.ne.s32.totalorder %s119, %s120
      %p132 = scmp.eq.s32.totalorder %s26, 1
      %p133 = por %p131, %p132
      %p135 = scmp.ne.s32.totalorder %s120, %s134
      %p136 = scmp.eq.s32.totalorder %s26, 0
      %p137 = por %p135, %p136
      %s138 = ssub.s32 %s27, %s39
      %p139 = scmp.eq.s32.totalorder %s138, 0
      %s141 = sadd.s32 %s140, 1
      %s142 = scalar_select %p139, %s140, %s141
      %p145 = pneg %p139
      %p146 = scmp.eq.s32.totalorder %s20, 1
      %p147 = por %p145, %p146
      %p148 = scmp.ne.s32.totalorder %s140, %s143
      %p149 = scmp.eq.s32.totalorder %s20, 0
      %p150 = por %p148, %p149
      %p151 = scmp.ne.s32.totalorder %s140, %s143
      %p152 = scmp.eq.s32.totalorder %s25, 1
      %p153 = por %p151, %p152
      %p154 = scmp.ne.s32.totalorder %s143, %s144
      %p155 = scmp.eq.s32.totalorder %s25, 0
      %p156 = por %p154, %p155
      %p157 = scmp.ne.s32.totalorder %s143, %s144
      %p158 = scmp.eq.s32.totalorder %s26, 1
      %p159 = por %p157, %p158
      %p161 = scmp.ne.s32.totalorder %s144, %s160
      %p162 = scmp.eq.s32.totalorder %s26, 0
      %p163 = por %p161, %p162
      %p164 = scmp.le.s32.totalorder 1, %s20
      %p165 = scmp.lt.s32.totalorder %s20, 3
      %p166 = pnand %p164, %p165
      %p167 = pneg %p166
      // Predicated region
      $region9: #{tpu_custom_call.1} parent=5 // pred_check
        _
      $region10: #{tpu_custom_call.1} parent=5 // pred_check_branch
        %169 = sbr.rel (%p166) target = $region12
      $region11: #{tpu_custom_call.1} parent=5 // pred_region
        %s170 = ssub.s32 %s20, 1
        // Predicated region
        $region13: #{tpu_custom_call.1} parent=11 // pred_check
          %p171 = pneg %p109
        $region14: #{tpu_custom_call.1} parent=11 // pred_check_branch
          %173 = sbr.rel (%p171) target = $region16
        $region15: #{tpu_custom_call.1} parent=11 // pred_region
          %s175 = ssub.s32 256, 256
          %176 = vsyncadd [#allocation8], %s175
          %s177 = sshll.u32 [#allocation9], 4
          %s178 = int_to_ptr.vmem [resolvable:$true] %s177
          %183 = dma.hbm_to_vmem [thread:$0]  %s2, 256, %s178, [#allocation8], 128, 128, 8
        $region16: #{tpu_custom_call.1} parent=11 // pred_fallthru
          _
        // Predicated region
        $region17: #{tpu_custom_call.1} parent=11 // pred_check
          %p184 = pneg %p130
        $region18: #{tpu_custom_call.1} parent=11 // pred_check_branch
          %186 = sbr.rel (%p184) target = $region20
        $region19: #{tpu_custom_call.1} parent=11 // pred_region
          %s188 = ssub.s32 128, 128
          %189 = vsyncadd [#allocation11], %s188
          %s191 = sshll.u32 [#allocation10], 4
          %s192 = int_to_ptr.vmem [resolvable:$true] %s191
          %194 = dma.hbm_to_vmem [thread:$0]  %s3, 128, %s192, [#allocation11]
        $region20: #{tpu_custom_call.1} parent=11 // pred_fallthru
          _
      $region12: #{tpu_custom_call.1} parent=5 // pred_fallthru
        _
      %p195 = scmp.lt.s32.totalorder %s20, 2
      // Predicated region
      $region21: #{tpu_custom_call.1} parent=5 // pred_check
        %p196 = pneg %p195
      $region22: #{tpu_custom_call.1} parent=5 // pred_check_branch
        %198 = sbr.rel (%p196) target = $region24
      $region23: #{tpu_custom_call.1} parent=5 // pred_region
        // Predicated region
        $region25: #{tpu_custom_call.1} parent=23 // pred_check
          %p199 = pneg %p54
        $region26: #{tpu_custom_call.1} parent=23 // pred_check_branch
          %201 = sbr.rel (%p199) target = $region28
        $region27: #{tpu_custom_call.1} parent=23 // pred_region
          %s202 = sand.u32 %s44, 1
          %s203 = scalar_lea.sflag [#allocation5], %s202
          %s204 = sand.u32 %s44, 1
          %s205 = smul.addr %s204, 64
          %s206 = scalar_lea.vmem [#allocation4], %s205
          %s207 = sadd.s32 %s27, %s28
          %s208 = smul.u32 4, %s207
          %s210 = ssub.s32 1024, 1024
          %211 = vsyncadd %s203, %s210
          %s212 = smul.addr %s208, 2
          %s213 = smul.addr %s212, 128
          %s214 = scalar_lea.hbm %s0, %s213
          %s215 = sshll.u32 %s206, 4
          %s216 = int_to_ptr.vmem [resolvable:$true] %s215
          %221 = dma.hbm_to_vmem [thread:$0]  %s214, 1024, %s216, %s203, 128, 128, 8
        $region28: #{tpu_custom_call.1} parent=23 // pred_fallthru
          _
        // Predicated region
        $region29: #{tpu_custom_call.1} parent=23 // pred_check
          %p222 = pneg %p82
        $region30: #{tpu_custom_call.1} parent=23 // pred_check_branch
          %224 = sbr.rel (%p222) target = $region32
        $region31: #{tpu_custom_call.1} parent=23 // pred_region
          %s225 = sand.u32 %s20, 1
          %s226 = scalar_lea.sflag [#allocation8], %s225
          %s227 = sand.u32 %s72, 1
          %s228 = smul.addr %s227, 64
          %s229 = scalar_lea.vmem [#allocation7], %s228
          %s230 = sadd.s32 %s27, %s28
          %s231 = smul.u32 4, %s230
          %s233 = ssub.s32 1024, 1024
          %234 = vsyncadd %s226, %s233
          %s235 = smul.addr %s231, 2
          %s236 = smul.addr %s235, 128
          %s237 = scalar_lea.hbm %s1, %s236
          %s238 = sshll.u32 %s229, 4
          %s239 = int_to_ptr.vmem [resolvable:$true] %s238
          %244 = dma.hbm_to_vmem [thread:$0]  %s237, 1024, %s239, %s226, 128, 128, 8
        $region32: #{tpu_custom_call.1} parent=23 // pred_fallthru
          _
      $region24: #{tpu_custom_call.1} parent=5 // pred_fallthru
        _
      %p245 = scmp.le.s32.totalorder 1, %s20
      %p246 = scmp.lt.s32.totalorder %s20, 3
      %p247 = pnand %p245, %p246
      %p248 = pneg %p247
      // Predicated region
      $region33: #{tpu_custom_call.1} parent=5 // pred_check
        _
      $region34: #{tpu_custom_call.1} parent=5 // pred_check_branch
        %250 = sbr.rel (%p247) target = $region36
      $region35: #{tpu_custom_call.1} parent=5 // pred_region
        %s251 = ssub.s32 %s20, 1
        %s252 = sand.u32 %s47, 1
        %s253 = scalar_lea.sflag [#allocation5], %s252
        %s254 = sand.u32 %s47, 1
        %s255 = smul.addr %s254, 64
        %s256 = scalar_lea.vmem [#allocation4], %s255
        // Predicated region
        $region37: #{tpu_custom_call.1} parent=35 // pred_check
          %p257 = pneg %p60
        $region38: #{tpu_custom_call.1} parent=35 // pred_check_branch
          %259 = sbr.rel (%p257) target = $region40
        $region39: #{tpu_custom_call.1} parent=35 // pred_region
          %260 = dma.done %s253, 1024
        $region40: #{tpu_custom_call.1} parent=35 // pred_fallthru
          _
        %s261 = sand.u32 %s25, 1
        %s262 = scalar_lea.sflag [#allocation8], %s261
        %s263 = sand.u32 %s75, 1
        %s264 = smul.addr %s263, 64
        %s265 = scalar_lea.vmem [#allocation7], %s264
        // Predicated region
        $region41: #{tpu_custom_call.1} parent=35 // pred_check
          %p266 = pneg %p88
        $region42: #{tpu_custom_call.1} parent=35 // pred_check_branch
          %268 = sbr.rel (%p266) target = $region44
        $region43: #{tpu_custom_call.1} parent=35 // pred_region
          %269 = dma.done %s262, 1024
        $region44: #{tpu_custom_call.1} parent=35 // pred_fallthru
          _
        // Predicated region
        $region45: #{tpu_custom_call.1} parent=35 // pred_check
          %p270 = pneg %p109
        $region46: #{tpu_custom_call.1} parent=35 // pred_check_branch
          %272 = sbr.rel (%p270) target = $region48
        $region47: #{tpu_custom_call.1} parent=35 // pred_region
          %273 = dma.done [#allocation8], 256
        $region48: #{tpu_custom_call.1} parent=35 // pred_fallthru
          _
        // Predicated region
        $region49: #{tpu_custom_call.1} parent=35 // pred_check
          %p274 = pneg %p130
        $region50: #{tpu_custom_call.1} parent=35 // pred_check_branch
          %276 = sbr.rel (%p274) target = $region52
        $region51: #{tpu_custom_call.1} parent=35 // pred_region
          %277 = dma.done [#allocation11], 128
        $region52: #{tpu_custom_call.1} parent=35 // pred_fallthru
          _
        %s278 = sand.u32 %s47, 1
        %s279 = scalar_lea.sflag [#allocation5], %s278
        %s280 = sand.u32 %s47, 1
        %s281 = smul.addr %s280, 64
        %s282 = scalar_lea.vmem [#allocation4], %s281
        %p283 = pneg %p60
        %p284 = pneg %p57
        %s285 = sand.u32 %s25, 1
        %s286 = scalar_lea.sflag [#allocation8], %s285
        %s287 = sand.u32 %s75, 1
        %s288 = smul.addr %s287, 64
        %s289 = scalar_lea.vmem [#allocation7], %s288
        %p290 = pneg %p88
        %p291 = pneg %p85
        %p292 = pneg %p109
        %p293 = pneg %p106
        %p294 = pneg %p130
        %p295 = pneg %p127
        %p296 = pneg %p156
        %p297 = pneg %p153
        %s298 = sand.u32 %s143, 1
        %s299 = scalar_lea.sflag [#allocation6], %s298
        %s300 = sand.u32 %s143, 1
        %s301 = smul.addr %s300, 8
        %s302 = scalar_lea.vmem [#allocation12], %s301
        %s303 = sadd.s32 %s29, %s30
        %s304 = smul.u32 4, %s303
        %s305 = sadd.s32 %s29, %s30
        %s306 = smul.u32 4, %s305
        %p307 = scmp.eq.s32.totalorder %s30, 0
        // Predicated region
        $region53: #{tpu_custom_call.1} parent=35 // pred_check
          %p308 = pneg %p307
        $region54: #{tpu_custom_call.1} parent=35 // pred_check_branch
          %310 = sbr.rel (%p308) target = $region56
        $region55: #{tpu_custom_call.1} parent=35 // pred_region
          %vm311 = vcmask 130048
          %312 = vst.msk [vmem:[#allocation2] sm:$0xff] %vm311, 0.0
          %313 = vst [vmem:[#allocation3] sm:$0xff] 0.0
        $region56: #{tpu_custom_call.1} parent=35 // pred_fallthru
          _
        %v314 = vld [vmem:[%s256] sm:$0xff]
        %v315 = vld [vmem:[%s256 + $0x8] sm:$0xff]
        %v316 = vld [vmem:[%s256 + $0x10] sm:$0xff]
        %v317 = vld [vmem:[%s256 + $0x18] sm:$0xff]
        %v318 = vld [vmem:[%s256 + $0x20] sm:$0xff]
        %v319 = vld [vmem:[%s256 + $0x28] sm:$0xff]
        %v320 = vld [vmem:[%s256 + $0x30] sm:$0xff]
        %v321 = vld [vmem:[%s256 + $0x38] sm:$0xff]
        %v322 = vld [vmem:[%s265] sm:$0xff]
        %v323 = vld [vmem:[%s265 + $0x8] sm:$0xff]
        %v324 = vld [vmem:[%s265 + $0x10] sm:$0xff]
        %v325 = vld [vmem:[%s265 + $0x18] sm:$0xff]
        %v326 = vld [vmem:[%s265 + $0x20] sm:$0xff]
        %v327 = vld [vmem:[%s265 + $0x28] sm:$0xff]
        %v328 = vld [vmem:[%s265 + $0x30] sm:$0xff]
        %v329 = vld [vmem:[%s265 + $0x38] sm:$0xff]
        %v330 = vld [vmem:[#allocation9] sm:$0xff]
        %v331 = vld [vmem:[#allocation9 + $0x8] sm:$0xff]
        %v332 = vld [vmem:[#allocation10] sm:$0xff]
        %v333 = vsub.f32 %v314, %v322
        %v334 = vsub.f32 %v315, %v323
        %v335 = vsub.f32 %v316, %v324
        %v336 = vsub.f32 %v317, %v325
        %v337 = vsub.f32 %v318, %v326
        %v338 = vsub.f32 %v319, %v327
        %v339 = vsub.f32 %v320, %v328
        %v340 = vsub.f32 %v321, %v329
        %v341 = vld [vmem:[#allocation2] sm:$0xff]
        %v342 = vmul.f32 %v333, %v333
        %v343 = vmul.f32 %v334, %v334
        %v344 = vmul.f32 %v335, %v335
        %v345 = vmul.f32 %v336, %v336
        %v346 = vmul.f32 %v337, %v337
        %v347 = vmul.f32 %v338, %v338
        %v348 = vmul.f32 %v339, %v339
        %v349 = vmul.f32 %v340, %v340
        %vm350 = vcmask 130048
        %v351 = vsel %vm350, %v342, 0.0
        %v352 = vsel %vm350, %v343, 0.0
        %v353 = vadd.f32 %v351, %v352
        %v354 = vsel %vm350, %v344, 0.0
        %v355 = vadd.f32 %v353, %v354
        %v356 = vsel %vm350, %v345, 0.0
        %v357 = vadd.f32 %v355, %v356
        %v358 = vsel %vm350, %v346, 0.0
        %v359 = vadd.f32 %v357, %v358
        %v360 = vsel %vm350, %v347, 0.0
        %v361 = vadd.f32 %v359, %v360
        %v362 = vsel %vm350, %v348, 0.0
        %v363 = vadd.f32 %v361, %v362
        %v364 = vsel %vm350, %v349, 0.0
        %v365 = vadd.f32 %v363, %v364
        %v366 = vadd.f32 %v341, %v365
        %367 = vst.msk [vmem:[#allocation2] sm:$0xff] %vm350, %v366
        %v369 = vsel %vm350, %v314, 0
        %v372 = vsel %vm350, %v315, 0
        %v375 = vsel %vm350, %v316, 0
        %v378 = vsel %vm350, %v317, 0
        %v381 = vsel %vm350, %v318, 0
        %v384 = vsel %vm350, %v319, 0
        %v387 = vsel %vm350, %v320, 0
        %v390 = vsel %vm350, %v321, 0
        %392 = vmatprep.subr.mxu0 0.0
        %393 = vmatpush1.msra.mxu0 0.0
        %394 = vmatprep.subr.mxu0 0.0
        %395 = vmatpush1.msra.mxu0 0.0
        %396 = vmatprep.subr.mxu0 0.0
        %397 = vmatpush1.msra.mxu0 0.0
        %398 = vmatprep.subr.mxu0 0.0
        %399 = vmatpush1.msra.mxu0 0.0
        %400 = vmatprep.subr.mxu0 0.0
        %401 = vmatpush1.msra.mxu0 0.0
        %402 = vmatprep.subr.mxu0 0.0
        %403 = vmatpush1.msra.mxu0 0.0
        %404 = vmatprep.subr.mxu0 0.0
        %405 = vmatpush1.msra.mxu0 0.0
        %406 = vmatprep.subr.mxu0 0.0
        %407 = vmatpush1.msra.mxu0 0.0
        %408 = vmatprep.subr.mxu0 0.0
        %409 = vmatpush1.msra.mxu0 0.0
        %410 = vmatprep.subr.mxu0 0.0
        %411 = vmatpush1.msra.mxu0 0.0
        %412 = vmatprep.subr.mxu0 0.0
        %413 = vmatpush1.msra.mxu0 0.0
        %414 = vmatprep.subr.mxu0 0.0
        %415 = vmatpush1.msra.mxu0 0.0
        %416 = vmatprep.subr.mxu0 0.0
        %417 = vmatpush1.msra.mxu0 0.0
        %418 = vmatprep.subr.mxu0 0.0
        %419 = vmatpush1.msra.mxu0 0.0
        %420 = vmatprep.subr.mxu0 0.0
        %421 = vmatpush1.msra.mxu0 %v331
        %422 = vmatprep.subr.mxu0 0.0
        %423 = vmatpush1.msra.mxu0 %v330
        %424 = vmatprep.subr.mxu0 0.0
        %425 = vmatpush2.msra.mxu0 0.0
        %426 = vmatprep.subr.mxu0 0.0
        %427 = vmatpush2.msra.mxu0 0.0
        %428 = vmatprep.subr.mxu0 0.0
        %429 = vmatpush2.msra.mxu0 0.0
        %430 = vmatprep.subr.mxu0 0.0
        %431 = vmatpush2.msra.mxu0 0.0
        %432 = vmatprep.subr.mxu0 0.0
        %433 = vmatpush2.msra.mxu0 0.0
        %434 = vmatprep.subr.mxu0 0.0
        %435 = vmatpush2.msra.mxu0 0.0
        %436 = vmatprep.subr.mxu0 0.0
        %437 = vmatpush2.msra.mxu0 0.0
        %438 = vmatprep.subr.mxu0 0.0
        %439 = vmatpush2.msra.mxu0 0.0
        %440 = vmatprep.subr.mxu0 0.0
        %441 = vmatpush2.msra.mxu0 0.0
        %442 = vmatprep.subr.mxu0 0.0
        %443 = vmatpush2.msra.mxu0 0.0
        %444 = vmatprep.subr.mxu0 0.0
        %445 = vmatpush2.msra.mxu0 0.0
        %446 = vmatprep.subr.mxu0 0.0
        %447 = vmatpush2.msra.mxu0 0.0
        %448 = vmatprep.subr.mxu0 0.0
        %449 = vmatpush2.msra.mxu0 0.0
        %450 = vmatprep.subr.mxu0 0.0
        %451 = vmatpush2.msra.mxu0 0.0
        %452 = vmatprep.subr.mxu0 0.0
        %453 = vmatpush2.msra.mxu0 0.0
        %454 = vmatprep.subr.mxu0 0.0
        %455 = vmatpush2.msra.mxu0 0.0
        %456 = vmatprep.mubr.f32.mxu0 0.0
        %457 = vmatmul.mubr.f32.gmra.mxu0 %v369
        %v458 = vpop.f32.mrf.mxu0
        %v459 = vadd.f32 0.0, %v458
        %v460 = vpop.f32.mrf.mxu0
        %461 = vmatprep.mubr.f32.mxu0 0.0
        %462 = vmatmul.mubr.f32.gmra.mxu0 %v372
        %v463 = vpop.f32.mrf.mxu0
        %v464 = vadd.f32 0.0, %v463
        %v465 = vpop.f32.mrf.mxu0
        %466 = vmatprep.mubr.f32.mxu0 0.0
        %467 = vmatmul.mubr.f32.gmra.mxu0 %v375
        %v468 = vpop.f32.mrf.mxu0
        %v469 = vadd.f32 0.0, %v468
        %v470 = vpop.f32.mrf.mxu0
        %471 = vmatprep.mubr.f32.mxu0 0.0
        %472 = vmatmul.mubr.f32.gmra.mxu0 %v378
        %v473 = vpop.f32.mrf.mxu0
        %v474 = vadd.f32 0.0, %v473
        %v475 = vpop.f32.mrf.mxu0
        %476 = vmatprep.mubr.f32.mxu0 0.0
        %477 = vmatmul.mubr.f32.gmra.mxu0 %v381
        %v478 = vpop.f32.mrf.mxu0
        %v479 = vadd.f32 0.0, %v478
        %v480 = vpop.f32.mrf.mxu0
        %481 = vmatprep.mubr.f32.mxu0 0.0
        %482 = vmatmul.mubr.f32.gmra.mxu0 %v384
        %v483 = vpop.f32.mrf.mxu0
        %v484 = vadd.f32 0.0, %v483
        %v485 = vpop.f32.mrf.mxu0
        %486 = vmatprep.mubr.f32.mxu0 0.0
        %487 = vmatmul.mubr.f32.gmra.mxu0 %v387
        %v488 = vpop.f32.mrf.mxu0
        %v489 = vadd.f32 0.0, %v488
        %v490 = vpop.f32.mrf.mxu0
        %491 = vmatprep.mubr.f32.mxu0 0.0
        %492 = vmatmul.mubr.f32.gmra.mxu0 %v390
        %v493 = vpop.f32.mrf.mxu0
        %v494 = vadd.f32 0.0, %v493
        %v495 = vpop.f32.mrf.mxu0
        %496 = vdwg.mxu0
        %v498 = vsel %vm350, %v322, 0
        %v501 = vsel %vm350, %v323, 0
        %v504 = vsel %vm350, %v324, 0
        %v507 = vsel %vm350, %v325, 0
        %v510 = vsel %vm350, %v326, 0
        %v513 = vsel %vm350, %v327, 0
        %v516 = vsel %vm350, %v328, 0
        %v519 = vsel %vm350, %v329, 0
        %521 = vmatprep.subr.mxu0 0.0
        %522 = vmatpush1.msra.mxu0 0.0
        %523 = vmatprep.subr.mxu0 0.0
        %524 = vmatpush1.msra.mxu0 0.0
        %525 = vmatprep.subr.mxu0 0.0
        %526 = vmatpush1.msra.mxu0 0.0
        %527 = vmatprep.subr.mxu0 0.0
        %528 = vmatpush1.msra.mxu0 0.0
        %529 = vmatprep.subr.mxu0 0.0
        %530 = vmatpush1.msra.mxu0 0.0
        %531 = vmatprep.subr.mxu0 0.0
        %532 = vmatpush1.msra.mxu0 0.0
        %533 = vmatprep.subr.mxu0 0.0
        %534 = vmatpush1.msra.mxu0 0.0
        %535 = vmatprep.subr.mxu0 0.0
        %536 = vmatpush1.msra.mxu0 0.0
        %537 = vmatprep.subr.mxu0 0.0
        %538 = vmatpush1.msra.mxu0 0.0
        %539 = vmatprep.subr.mxu0 0.0
        %540 = vmatpush1.msra.mxu0 0.0
        %541 = vmatprep.subr.mxu0 0.0
        %542 = vmatpush1.msra.mxu0 0.0
        %543 = vmatprep.subr.mxu0 0.0
        %544 = vmatpush1.msra.mxu0 0.0
        %545 = vmatprep.subr.mxu0 0.0
        %546 = vmatpush1.msra.mxu0 0.0
        %547 = vmatprep.subr.mxu0 0.0
        %548 = vmatpush1.msra.mxu0 0.0
        %549 = vmatprep.subr.mxu0 0.0
        %550 = vmatpush1.msra.mxu0 %v331
        %551 = vmatprep.subr.mxu0 0.0
        %552 = vmatpush1.msra.mxu0 %v330
        %553 = vmatprep.subr.mxu0 0.0
        %554 = vmatpush2.msra.mxu0 0.0
        %555 = vmatprep.subr.mxu0 0.0
        %556 = vmatpush2.msra.mxu0 0.0
        %557 = vmatprep.subr.mxu0 0.0
        %558 = vmatpush2.msra.mxu0 0.0
        %559 = vmatprep.subr.mxu0 0.0
        %560 = vmatpush2.msra.mxu0 0.0
        %561 = vmatprep.subr.mxu0 0.0
        %562 = vmatpush2.msra.mxu0 0.0
        %563 = vmatprep.subr.mxu0 0.0
        %564 = vmatpush2.msra.mxu0 0.0
        %565 = vmatprep.subr.mxu0 0.0
        %566 = vmatpush2.msra.mxu0 0.0
        %567 = vmatprep.subr.mxu0 0.0
        %568 = vmatpush2.msra.mxu0 0.0
        %569 = vmatprep.subr.mxu0 0.0
        %570 = vmatpush2.msra.mxu0 0.0
        %571 = vmatprep.subr.mxu0 0.0
        %572 = vmatpush2.msra.mxu0 0.0
        %573 = vmatprep.subr.mxu0 0.0
        %574 = vmatpush2.msra.mxu0 0.0
        %575 = vmatprep.subr.mxu0 0.0
        %576 = vmatpush2.msra.mxu0 0.0
        %577 = vmatprep.subr.mxu0 0.0
        %578 = vmatpush2.msra.mxu0 0.0
        %579 = vmatprep.subr.mxu0 0.0
        %580 = vmatpush2.msra.mxu0 0.0
        %581 = vmatprep.subr.mxu0 0.0
        %582 = vmatpush2.msra.mxu0 0.0
        %583 = vmatprep.subr.mxu0 0.0
        %584 = vmatpush2.msra.mxu0 0.0
        %585 = vmatprep.mubr.f32.mxu0 0.0
        %586 = vmatmul.mubr.f32.gmra.mxu0 %v498
        %v587 = vpop.f32.mrf.mxu0
        %v588 = vadd.f32 0.0, %v587
        %v589 = vpop.f32.mrf.mxu0
        %590 = vmatprep.mubr.f32.mxu0 0.0
        %591 = vmatmul.mubr.f32.gmra.mxu0 %v501
        %v592 = vpop.f32.mrf.mxu0
        %v593 = vadd.f32 0.0, %v592
        %v594 = vpop.f32.mrf.mxu0
        %595 = vmatprep.mubr.f32.mxu0 0.0
        %596 = vmatmul.mubr.f32.gmra.mxu0 %v504
        %v597 = vpop.f32.mrf.mxu0
        %v598 = vadd.f32 0.0, %v597
        %v599 = vpop.f32.mrf.mxu0
        %600 = vmatprep.mubr.f32.mxu0 0.0
        %601 = vmatmul.mubr.f32.gmra.mxu0 %v507
        %v602 = vpop.f32.mrf.mxu0
        %v603 = vadd.f32 0.0, %v602
        %v604 = vpop.f32.mrf.mxu0
        %605 = vmatprep.mubr.f32.mxu0 0.0
        %606 = vmatmul.mubr.f32.gmra.mxu0 %v510
        %v607 = vpop.f32.mrf.mxu0
        %v608 = vadd.f32 0.0, %v607
        %v609 = vpop.f32.mrf.mxu0
        %610 = vmatprep.mubr.f32.mxu0 0.0
        %611 = vmatmul.mubr.f32.gmra.mxu0 %v513
        %v612 = vpop.f32.mrf.mxu0
        %v613 = vadd.f32 0.0, %v612
        %v614 = vpop.f32.mrf.mxu0
        %615 = vmatprep.mubr.f32.mxu0 0.0
        %616 = vmatmul.mubr.f32.gmra.mxu0 %v516
        %v617 = vpop.f32.mrf.mxu0
        %v618 = vadd.f32 0.0, %v617
        %v619 = vpop.f32.mrf.mxu0
        %620 = vmatprep.mubr.f32.mxu0 0.0
        %621 = vmatmul.mubr.f32.gmra.mxu0 %v519
        %v622 = vpop.f32.mrf.mxu0
        %v623 = vadd.f32 0.0, %v622
        %v624 = vpop.f32.mrf.mxu0
        %625 = vdwg.mxu0
        %v626 = vmul.f32 %v314, %v314
        %v627 = vmul.f32 %v315, %v315
        %v628 = vmul.f32 %v316, %v316
        %v629 = vmul.f32 %v317, %v317
        %v630 = vmul.f32 %v318, %v318
        %v631 = vmul.f32 %v319, %v319
        %v632 = vmul.f32 %v320, %v320
        %v633 = vmul.f32 %v321, %v321
        %v635 = vsel %vm350, %v626, 0
        %v638 = vsel %vm350, %v627, 0
        %v641 = vsel %vm350, %v628, 0
        %v644 = vsel %vm350, %v629, 0
        %v647 = vsel %vm350, %v630, 0
        %v650 = vsel %vm350, %v631, 0
        %v653 = vsel %vm350, %v632, 0
        %v656 = vsel %vm350, %v633, 0
        %658 = vmatprep.subr.mxu0 0.0
        %659 = vmatpush1.msra.mxu0 0.0
        %660 = vmatprep.subr.mxu0 0.0
        %661 = vmatpush1.msra.mxu0 0.0
        %662 = vmatprep.subr.mxu0 0.0
        %663 = vmatpush1.msra.mxu0 0.0
        %664 = vmatprep.subr.mxu0 0.0
        %665 = vmatpush1.msra.mxu0 0.0
        %666 = vmatprep.subr.mxu0 0.0
        %667 = vmatpush1.msra.mxu0 0.0
        %668 = vmatprep.subr.mxu0 0.0
        %669 = vmatpush1.msra.mxu0 0.0
        %670 = vmatprep.subr.mxu0 0.0
        %671 = vmatpush1.msra.mxu0 0.0
        %672 = vmatprep.subr.mxu0 0.0
        %673 = vmatpush1.msra.mxu0 0.0
        %674 = vmatprep.subr.mxu0 0.0
        %675 = vmatpush1.msra.mxu0 0.0
        %676 = vmatprep.subr.mxu0 0.0
        %677 = vmatpush1.msra.mxu0 0.0
        %678 = vmatprep.subr.mxu0 0.0
        %679 = vmatpush1.msra.mxu0 0.0
        %680 = vmatprep.subr.mxu0 0.0
        %681 = vmatpush1.msra.mxu0 0.0
        %682 = vmatprep.subr.mxu0 0.0
        %683 = vmatpush1.msra.mxu0 0.0
        %684 = vmatprep.subr.mxu0 0.0
        %685 = vmatpush1.msra.mxu0 0.0
        %686 = vmatprep.subr.mxu0 0.0
        %687 = vmatpush1.msra.mxu0 %v331
        %688 = vmatprep.subr.mxu0 0.0
        %689 = vmatpush1.msra.mxu0 %v330
        %690 = vmatprep.subr.mxu0 0.0
        %691 = vmatpush2.msra.mxu0 0.0
        %692 = vmatprep.subr.mxu0 0.0
        %693 = vmatpush2.msra.mxu0 0.0
        %694 = vmatprep.subr.mxu0 0.0
        %695 = vmatpush2.msra.mxu0 0.0
        %696 = vmatprep.subr.mxu0 0.0
        %697 = vmatpush2.msra.mxu0 0.0
        %698 = vmatprep.subr.mxu0 0.0
        %699 = vmatpush2.msra.mxu0 0.0
        %700 = vmatprep.subr.mxu0 0.0
        %701 = vmatpush2.msra.mxu0 0.0
        %702 = vmatprep.subr.mxu0 0.0
        %703 = vmatpush2.msra.mxu0 0.0
        %704 = vmatprep.subr.mxu0 0.0
        %705 = vmatpush2.msra.mxu0 0.0
        %706 = vmatprep.subr.mxu0 0.0
        %707 = vmatpush2.msra.mxu0 0.0
        %708 = vmatprep.subr.mxu0 0.0
        %709 = vmatpush2.msra.mxu0 0.0
        %710 = vmatprep.subr.mxu0 0.0
        %711 = vmatpush2.msra.mxu0 0.0
        %712 = vmatprep.subr.mxu0 0.0
        %713 = vmatpush2.msra.mxu0 0.0
        %714 = vmatprep.subr.mxu0 0.0
        %715 = vmatpush2.msra.mxu0 0.0
        %716 = vmatprep.subr.mxu0 0.0
        %717 = vmatpush2.msra.mxu0 0.0
        %718 = vmatprep.subr.mxu0 0.0
        %719 = vmatpush2.msra.mxu0 0.0
        %720 = vmatprep.subr.mxu0 0.0
        %721 = vmatpush2.msra.mxu0 0.0
        %722 = vmatprep.mubr.f32.mxu0 0.0
        %723 = vmatmul.mubr.f32.gmra.mxu0 %v635
        %v724 = vpop.f32.mrf.mxu0
        %v725 = vadd.f32 0.0, %v724
        %v726 = vpop.f32.mrf.mxu0
        %727 = vmatprep.mubr.f32.mxu0 0.0
        %728 = vmatmul.mubr.f32.gmra.mxu0 %v638
        %v729 = vpop.f32.mrf.mxu0
        %v730 = vadd.f32 0.0, %v729
        %v731 = vpop.f32.mrf.mxu0
        %732 = vmatprep.mubr.f32.mxu0 0.0
        %733 = vmatmul.mubr.f32.gmra.mxu0 %v641
        %v734 = vpop.f32.mrf.mxu0
        %v735 = vadd.f32 0.0, %v734
        %v736 = vpop.f32.mrf.mxu0
        %737 = vmatprep.mubr.f32.mxu0 0.0
        %738 = vmatmul.mubr.f32.gmra.mxu0 %v644
        %v739 = vpop.f32.mrf.mxu0
        %v740 = vadd.f32 0.0, %v739
        %v741 = vpop.f32.mrf.mxu0
        %742 = vmatprep.mubr.f32.mxu0 0.0
        %743 = vmatmul.mubr.f32.gmra.mxu0 %v647
        %v744 = vpop.f32.mrf.mxu0
        %v745 = vadd.f32 0.0, %v744
        %v746 = vpop.f32.mrf.mxu0
        %747 = vmatprep.mubr.f32.mxu0 0.0
        %748 = vmatmul.mubr.f32.gmra.mxu0 %v650
        %v749 = vpop.f32.mrf.mxu0
        %v750 = vadd.f32 0.0, %v749
        %v751 = vpop.f32.mrf.mxu0
        %752 = vmatprep.mubr.f32.mxu0 0.0
        %753 = vmatmul.mubr.f32.gmra.mxu0 %v653
        %v754 = vpop.f32.mrf.mxu0
        %v755 = vadd.f32 0.0, %v754
        %v756 = vpop.f32.mrf.mxu0
        %757 = vmatprep.mubr.f32.mxu0 0.0
        %758 = vmatmul.mubr.f32.gmra.mxu0 %v656
        %v759 = vpop.f32.mrf.mxu0
        %v760 = vadd.f32 0.0, %v759
        %v761 = vpop.f32.mrf.mxu0
        %762 = vdwg.mxu0
        %v763 = vmul.f32 %v322, %v322
        %v764 = vmul.f32 %v323, %v323
        %v765 = vmul.f32 %v324, %v324
        %v766 = vmul.f32 %v325, %v325
        %v767 = vmul.f32 %v326, %v326
        %v768 = vmul.f32 %v327, %v327
        %v769 = vmul.f32 %v328, %v328
        %v770 = vmul.f32 %v329, %v329
        %v772 = vsel %vm350, %v763, 0
        %v775 = vsel %vm350, %v764, 0
        %v778 = vsel %vm350, %v765, 0
        %v781 = vsel %vm350, %v766, 0
        %v784 = vsel %vm350, %v767, 0
        %v787 = vsel %vm350, %v768, 0
        %v790 = vsel %vm350, %v769, 0
        %v793 = vsel %vm350, %v770, 0
        %795 = vmatprep.subr.mxu0 0.0
        %796 = vmatpush1.msra.mxu0 0.0
        %797 = vmatprep.subr.mxu0 0.0
        %798 = vmatpush1.msra.mxu0 0.0
        %799 = vmatprep.subr.mxu0 0.0
        %800 = vmatpush1.msra.mxu0 0.0
        %801 = vmatprep.subr.mxu0 0.0
        %802 = vmatpush1.msra.mxu0 0.0
        %803 = vmatprep.subr.mxu0 0.0
        %804 = vmatpush1.msra.mxu0 0.0
        %805 = vmatprep.subr.mxu0 0.0
        %806 = vmatpush1.msra.mxu0 0.0
        %807 = vmatprep.subr.mxu0 0.0
        %808 = vmatpush1.msra.mxu0 0.0
        %809 = vmatprep.subr.mxu0 0.0
        %810 = vmatpush1.msra.mxu0 0.0
        %811 = vmatprep.subr.mxu0 0.0
        %812 = vmatpush1.msra.mxu0 0.0
        %813 = vmatprep.subr.mxu0 0.0
        %814 = vmatpush1.msra.mxu0 0.0
        %815 = vmatprep.subr.mxu0 0.0
        %816 = vmatpush1.msra.mxu0 0.0
        %817 = vmatprep.subr.mxu0 0.0
        %818 = vmatpush1.msra.mxu0 0.0
        %819 = vmatprep.subr.mxu0 0.0
        %820 = vmatpush1.msra.mxu0 0.0
        %821 = vmatprep.subr.mxu0 0.0
        %822 = vmatpush1.msra.mxu0 0.0
        %823 = vmatprep.subr.mxu0 0.0
        %824 = vmatpush1.msra.mxu0 %v331
        %825 = vmatprep.subr.mxu0 0.0
        %826 = vmatpush1.msra.mxu0 %v330
        %827 = vmatprep.subr.mxu0 0.0
        %828 = vmatpush2.msra.mxu0 0.0
        %829 = vmatprep.subr.mxu0 0.0
        %830 = vmatpush2.msra.mxu0 0.0
        %831 = vmatprep.subr.mxu0 0.0
        %832 = vmatpush2.msra.mxu0 0.0
        %833 = vmatprep.subr.mxu0 0.0
        %834 = vmatpush2.msra.mxu0 0.0
        %835 = vmatprep.subr.mxu0 0.0
        %836 = vmatpush2.msra.mxu0 0.0
        %837 = vmatprep.subr.mxu0 0.0
        %838 = vmatpush2.msra.mxu0 0.0
        %839 = vmatprep.subr.mxu0 0.0
        %840 = vmatpush2.msra.mxu0 0.0
        %841 = vmatprep.subr.mxu0 0.0
        %842 = vmatpush2.msra.mxu0 0.0
        %843 = vmatprep.subr.mxu0 0.0
        %844 = vmatpush2.msra.mxu0 0.0
        %845 = vmatprep.subr.mxu0 0.0
        %846 = vmatpush2.msra.mxu0 0.0
        %847 = vmatprep.subr.mxu0 0.0
        %848 = vmatpush2.msra.mxu0 0.0
        %849 = vmatprep.subr.mxu0 0.0
        %850 = vmatpush2.msra.mxu0 0.0
        %851 = vmatprep.subr.mxu0 0.0
        %852 = vmatpush2.msra.mxu0 0.0
        %853 = vmatprep.subr.mxu0 0.0
        %854 = vmatpush2.msra.mxu0 0.0
        %855 = vmatprep.subr.mxu0 0.0
        %856 = vmatpush2.msra.mxu0 0.0
        %857 = vmatprep.subr.mxu0 0.0
        %858 = vmatpush2.msra.mxu0 0.0
        %859 = vmatprep.mubr.f32.mxu0 0.0
        %860 = vmatmul.mubr.f32.gmra.mxu0 %v772
        %v861 = vpop.f32.mrf.mxu0
        %v862 = vadd.f32 0.0, %v861
        %v863 = vpop.f32.mrf.mxu0
        %864 = vmatprep.mubr.f32.mxu0 0.0
        %865 = vmatmul.mubr.f32.gmra.mxu0 %v775
        %v866 = vpop.f32.mrf.mxu0
        %v867 = vadd.f32 0.0, %v866
        %v868 = vpop.f32.mrf.mxu0
        %869 = vmatprep.mubr.f32.mxu0 0.0
        %870 = vmatmul.mubr.f32.gmra.mxu0 %v778
        %v871 = vpop.f32.mrf.mxu0
        %v872 = vadd.f32 0.0, %v871
        %v873 = vpop.f32.mrf.mxu0
        %874 = vmatprep.mubr.f32.mxu0 0.0
        %875 = vmatmul.mubr.f32.gmra.mxu0 %v781
        %v876 = vpop.f32.mrf.mxu0
        %v877 = vadd.f32 0.0, %v876
        %v878 = vpop.f32.mrf.mxu0
        %879 = vmatprep.mubr.f32.mxu0 0.0
        %880 = vmatmul.mubr.f32.gmra.mxu0 %v784
        %v881 = vpop.f32.mrf.mxu0
        %v882 = vadd.f32 0.0, %v881
        %v883 = vpop.f32.mrf.mxu0
        %884 = vmatprep.mubr.f32.mxu0 0.0
        %885 = vmatmul.mubr.f32.gmra.mxu0 %v787
        %v886 = vpop.f32.mrf.mxu0
        %v887 = vadd.f32 0.0, %v886
        %v888 = vpop.f32.mrf.mxu0
        %889 = vmatprep.mubr.f32.mxu0 0.0
        %890 = vmatmul.mubr.f32.gmra.mxu0 %v790
        %v891 = vpop.f32.mrf.mxu0
        %v892 = vadd.f32 0.0, %v891
        %v893 = vpop.f32.mrf.mxu0
        %894 = vmatprep.mubr.f32.mxu0 0.0
        %895 = vmatmul.mubr.f32.gmra.mxu0 %v793
        %v896 = vpop.f32.mrf.mxu0
        %v897 = vadd.f32 0.0, %v896
        %v898 = vpop.f32.mrf.mxu0
        %899 = vdwg.mxu0
        %v900 = vmul.f32 %v314, %v322
        %v901 = vmul.f32 %v315, %v323
        %v902 = vmul.f32 %v316, %v324
        %v903 = vmul.f32 %v317, %v325
        %v904 = vmul.f32 %v318, %v326
        %v905 = vmul.f32 %v319, %v327
        %v906 = vmul.f32 %v320, %v328
        %v907 = vmul.f32 %v321, %v329
        %v909 = vsel %vm350, %v900, 0
        %v912 = vsel %vm350, %v901, 0
        %v915 = vsel %vm350, %v902, 0
        %v918 = vsel %vm350, %v903, 0
        %v921 = vsel %vm350, %v904, 0
        %v924 = vsel %vm350, %v905, 0
        %v927 = vsel %vm350, %v906, 0
        %v930 = vsel %vm350, %v907, 0
        %932 = vmatprep.subr.mxu0 0.0
        %933 = vmatpush1.msra.mxu0 0.0
        %934 = vmatprep.subr.mxu0 0.0
        %935 = vmatpush1.msra.mxu0 0.0
        %936 = vmatprep.subr.mxu0 0.0
        %937 = vmatpush1.msra.mxu0 0.0
        %938 = vmatprep.subr.mxu0 0.0
        %939 = vmatpush1.msra.mxu0 0.0
        %940 = vmatprep.subr.mxu0 0.0
        %941 = vmatpush1.msra.mxu0 0.0
        %942 = vmatprep.subr.mxu0 0.0
        %943 = vmatpush1.msra.mxu0 0.0
        %944 = vmatprep.subr.mxu0 0.0
        %945 = vmatpush1.msra.mxu0 0.0
        %946 = vmatprep.subr.mxu0 0.0
        %947 = vmatpush1.msra.mxu0 0.0
        %948 = vmatprep.subr.mxu0 0.0
        %949 = vmatpush1.msra.mxu0 0.0
        %950 = vmatprep.subr.mxu0 0.0
        %951 = vmatpush1.msra.mxu0 0.0
        %952 = vmatprep.subr.mxu0 0.0
        %953 = vmatpush1.msra.mxu0 0.0
        %954 = vmatprep.subr.mxu0 0.0
        %955 = vmatpush1.msra.mxu0 0.0
        %956 = vmatprep.subr.mxu0 0.0
        %957 = vmatpush1.msra.mxu0 0.0
        %958 = vmatprep.subr.mxu0 0.0
        %959 = vmatpush1.msra.mxu0 0.0
        %960 = vmatprep.subr.mxu0 0.0
        %961 = vmatpush1.msra.mxu0 %v331
        %962 = vmatprep.subr.mxu0 0.0
        %963 = vmatpush1.msra.mxu0 %v330
        %964 = vmatprep.subr.mxu0 0.0
        %965 = vmatpush2.msra.mxu0 0.0
        %966 = vmatprep.subr.mxu0 0.0
        %967 = vmatpush2.msra.mxu0 0.0
        %968 = vmatprep.subr.mxu0 0.0
        %969 = vmatpush2.msra.mxu0 0.0
        %970 = vmatprep.subr.mxu0 0.0
        %971 = vmatpush2.msra.mxu0 0.0
        %972 = vmatprep.subr.mxu0 0.0
        %973 = vmatpush2.msra.mxu0 0.0
        %974 = vmatprep.subr.mxu0 0.0
        %975 = vmatpush2.msra.mxu0 0.0
        %976 = vmatprep.subr.mxu0 0.0
        %977 = vmatpush2.msra.mxu0 0.0
        %978 = vmatprep.subr.mxu0 0.0
        %979 = vmatpush2.msra.mxu0 0.0
        %980 = vmatprep.subr.mxu0 0.0
        %981 = vmatpush2.msra.mxu0 0.0
        %982 = vmatprep.subr.mxu0 0.0
        %983 = vmatpush2.msra.mxu0 0.0
        %984 = vmatprep.subr.mxu0 0.0
        %985 = vmatpush2.msra.mxu0 0.0
        %986 = vmatprep.subr.mxu0 0.0
        %987 = vmatpush2.msra.mxu0 0.0
        %988 = vmatprep.subr.mxu0 0.0
        %989 = vmatpush2.msra.mxu0 0.0
        %990 = vmatprep.subr.mxu0 0.0
        %991 = vmatpush2.msra.mxu0 0.0
        %992 = vmatprep.subr.mxu0 0.0
        %993 = vmatpush2.msra.mxu0 0.0
        %994 = vmatprep.subr.mxu0 0.0
        %995 = vmatpush2.msra.mxu0 0.0
        %996 = vmatprep.mubr.f32.mxu0 0.0
        %997 = vmatmul.mubr.f32.gmra.mxu0 %v909
        %v998 = vpop.f32.mrf.mxu0
        %v999 = vadd.f32 0.0, %v998
        %v1000 = vpop.f32.mrf.mxu0
        %1001 = vmatprep.mubr.f32.mxu0 0.0
        %1002 = vmatmul.mubr.f32.gmra.mxu0 %v912
        %v1003 = vpop.f32.mrf.mxu0
        %v1004 = vadd.f32 0.0, %v1003
        %v1005 = vpop.f32.mrf.mxu0
        %1006 = vmatprep.mubr.f32.mxu0 0.0
        %1007 = vmatmul.mubr.f32.gmra.mxu0 %v915
        %v1008 = vpop.f32.mrf.mxu0
        %v1009 = vadd.f32 0.0, %v1008
        %v1010 = vpop.f32.mrf.mxu0
        %1011 = vmatprep.mubr.f32.mxu0 0.0
        %1012 = vmatmul.mubr.f32.gmra.mxu0 %v918
        %v1013 = vpop.f32.mrf.mxu0
        %v1014 = vadd.f32 0.0, %v1013
        %v1015 = vpop.f32.mrf.mxu0
        %1016 = vmatprep.mubr.f32.mxu0 0.0
        %1017 = vmatmul.mubr.f32.gmra.mxu0 %v921
        %v1018 = vpop.f32.mrf.mxu0
        %v1019 = vadd.f32 0.0, %v1018
        %v1020 = vpop.f32.mrf.mxu0
        %1021 = vmatprep.mubr.f32.mxu0 0.0
        %1022 = vmatmul.mubr.f32.gmra.mxu0 %v924
        %v1023 = vpop.f32.mrf.mxu0
        %v1024 = vadd.f32 0.0, %v1023
        %v1025 = vpop.f32.mrf.mxu0
        %1026 = vmatprep.mubr.f32.mxu0 0.0
        %1027 = vmatmul.mubr.f32.gmra.mxu0 %v927
        %v1028 = vpop.f32.mrf.mxu0
        %v1029 = vadd.f32 0.0, %v1028
        %v1030 = vpop.f32.mrf.mxu0
        %1031 = vmatprep.mubr.f32.mxu0 0.0
        %1032 = vmatmul.mubr.f32.gmra.mxu0 %v930
        %v1033 = vpop.f32.mrf.mxu0
        %v1034 = vadd.f32 0.0, %v1033
        %v1035 = vpop.f32.mrf.mxu0
        %1036 = vdwg.mxu0
        %v1038 = vsel %vm350, %v332, 0
        %1040 = vmatprep.subr.mxu0 0.0
        %1041 = vmatpush1.msra.mxu0 0.0
        %1042 = vmatprep.subr.mxu0 0.0
        %1043 = vmatpush1.msra.mxu0 0.0
        %1044 = vmatprep.subr.mxu0 0.0
        %1045 = vmatpush1.msra.mxu0 0.0
        %1046 = vmatprep.subr.mxu0 0.0
        %1047 = vmatpush1.msra.mxu0 0.0
        %1048 = vmatprep.subr.mxu0 0.0
        %1049 = vmatpush1.msra.mxu0 0.0
        %1050 = vmatprep.subr.mxu0 0.0
        %1051 = vmatpush1.msra.mxu0 0.0
        %1052 = vmatprep.subr.mxu0 0.0
        %1053 = vmatpush1.msra.mxu0 0.0
        %1054 = vmatprep.subr.mxu0 0.0
        %1055 = vmatpush1.msra.mxu0 0.0
        %1056 = vmatprep.subr.mxu0 0.0
        %1057 = vmatpush1.msra.mxu0 0.0
        %1058 = vmatprep.subr.mxu0 0.0
        %1059 = vmatpush1.msra.mxu0 0.0
        %1060 = vmatprep.subr.mxu0 0.0
        %1061 = vmatpush1.msra.mxu0 0.0
        %1062 = vmatprep.subr.mxu0 0.0
        %1063 = vmatpush1.msra.mxu0 0.0
        %1064 = vmatprep.subr.mxu0 0.0
        %1065 = vmatpush1.msra.mxu0 0.0
        %1066 = vmatprep.subr.mxu0 0.0
        %1067 = vmatpush1.msra.mxu0 0.0
        %1068 = vmatprep.subr.mxu0 0.0
        %1069 = vmatpush1.msra.mxu0 %v464
        %1070 = vmatprep.subr.mxu0 0.0
        %1071 = vmatpush1.msra.mxu0 %v459
        %1072 = vmatprep.subr.mxu0 0.0
        %1073 = vmatpush2.msra.mxu0 0.0
        %1074 = vmatprep.subr.mxu0 0.0
        %1075 = vmatpush2.msra.mxu0 0.0
        %1076 = vmatprep.subr.mxu0 0.0
        %1077 = vmatpush2.msra.mxu0 0.0
        %1078 = vmatprep.subr.mxu0 0.0
        %1079 = vmatpush2.msra.mxu0 0.0
        %1080 = vmatprep.subr.mxu0 0.0
        %1081 = vmatpush2.msra.mxu0 0.0
        %1082 = vmatprep.subr.mxu0 0.0
        %1083 = vmatpush2.msra.mxu0 0.0
        %1084 = vmatprep.subr.mxu0 0.0
        %1085 = vmatpush2.msra.mxu0 0.0
        %1086 = vmatprep.subr.mxu0 0.0
        %1087 = vmatpush2.msra.mxu0 0.0
        %1088 = vmatprep.subr.mxu0 0.0
        %1089 = vmatpush2.msra.mxu0 0.0
        %1090 = vmatprep.subr.mxu0 0.0
        %1091 = vmatpush2.msra.mxu0 0.0
        %1092 = vmatprep.subr.mxu0 0.0
        %1093 = vmatpush2.msra.mxu0 0.0
        %1094 = vmatprep.subr.mxu0 0.0
        %1095 = vmatpush2.msra.mxu0 0.0
        %1096 = vmatprep.subr.mxu0 0.0
        %1097 = vmatpush2.msra.mxu0 0.0
        %1098 = vmatprep.subr.mxu0 0.0
        %1099 = vmatpush2.msra.mxu0 0.0
        %1100 = vmatprep.subr.mxu0 0.0
        %1101 = vmatpush2.msra.mxu0 0.0
        %1102 = vmatprep.subr.mxu0 0.0
        %1103 = vmatpush2.msra.mxu0 0.0
        %1104 = vmatprep.mubr.f32.mxu0 0.0
        %1105 = vmatmul.mubr.f32.gmra.mxu0 %v1038
        %v1106 = vpop.f32.mrf.mxu0
        %v1107 = vadd.f32 0.0, %v1106
        %v1108 = vpop.f32.mrf.mxu0
        %1109 = vdwg.mxu0
        %1110 = vmatprep.subr.mxu0 0.0
        %1111 = vmatpush1.msra.mxu0 0.0
        %1112 = vmatprep.subr.mxu0 0.0
        %1113 = vmatpush1.msra.mxu0 0.0
        %1114 = vmatprep.subr.mxu0 0.0
        %1115 = vmatpush1.msra.mxu0 0.0
        %1116 = vmatprep.subr.mxu0 0.0
        %1117 = vmatpush1.msra.mxu0 0.0
        %1118 = vmatprep.subr.mxu0 0.0
        %1119 = vmatpush1.msra.mxu0 0.0
        %1120 = vmatprep.subr.mxu0 0.0
        %1121 = vmatpush1.msra.mxu0 0.0
        %1122 = vmatprep.subr.mxu0 0.0
        %1123 = vmatpush1.msra.mxu0 0.0
        %1124 = vmatprep.subr.mxu0 0.0
        %1125 = vmatpush1.msra.mxu0 0.0
        %1126 = vmatprep.subr.mxu0 0.0
        %1127 = vmatpush1.msra.mxu0 0.0
        %1128 = vmatprep.subr.mxu0 0.0
        %1129 = vmatpush1.msra.mxu0 0.0
        %1130 = vmatprep.subr.mxu0 0.0
        %1131 = vmatpush1.msra.mxu0 0.0
        %1132 = vmatprep.subr.mxu0 0.0
        %1133 = vmatpush1.msra.mxu0 0.0
        %1134 = vmatprep.subr.mxu0 0.0
        %1135 = vmatpush1.msra.mxu0 0.0
        %1136 = vmatprep.subr.mxu0 0.0
        %1137 = vmatpush1.msra.mxu0 0.0
        %1138 = vmatprep.subr.mxu0 0.0
        %1139 = vmatpush1.msra.mxu0 %v593
        %1140 = vmatprep.subr.mxu0 0.0
        %1141 = vmatpush1.msra.mxu0 %v588
        %1142 = vmatprep.subr.mxu0 0.0
        %1143 = vmatpush2.msra.mxu0 0.0
        %1144 = vmatprep.subr.mxu0 0.0
        %1145 = vmatpush2.msra.mxu0 0.0
        %1146 = vmatprep.subr.mxu0 0.0
        %1147 = vmatpush2.msra.mxu0 0.0
        %1148 = vmatprep.subr.mxu0 0.0
        %1149 = vmatpush2.msra.mxu0 0.0
        %1150 = vmatprep.subr.mxu0 0.0
        %1151 = vmatpush2.msra.mxu0 0.0
        %1152 = vmatprep.subr.mxu0 0.0
        %1153 = vmatpush2.msra.mxu0 0.0
        %1154 = vmatprep.subr.mxu0 0.0
        %1155 = vmatpush2.msra.mxu0 0.0
        %1156 = vmatprep.subr.mxu0 0.0
        %1157 = vmatpush2.msra.mxu0 0.0
        %1158 = vmatprep.subr.mxu0 0.0
        %1159 = vmatpush2.msra.mxu0 0.0
        %1160 = vmatprep.subr.mxu0 0.0
        %1161 = vmatpush2.msra.mxu0 0.0
        %1162 = vmatprep.subr.mxu0 0.0
        %1163 = vmatpush2.msra.mxu0 0.0
        %1164 = vmatprep.subr.mxu0 0.0
        %1165 = vmatpush2.msra.mxu0 0.0
        %1166 = vmatprep.subr.mxu0 0.0
        %1167 = vmatpush2.msra.mxu0 0.0
        %1168 = vmatprep.subr.mxu0 0.0
        %1169 = vmatpush2.msra.mxu0 0.0
        %1170 = vmatprep.subr.mxu0 0.0
        %1171 = vmatpush2.msra.mxu0 0.0
        %1172 = vmatprep.subr.mxu0 0.0
        %1173 = vmatpush2.msra.mxu0 0.0
        %1174 = vmatprep.mubr.f32.mxu0 0.0
        %1175 = vmatmul.mubr.f32.gmra.mxu0 %v1038
        %v1176 = vpop.f32.mrf.mxu0
        %v1177 = vadd.f32 0.0, %v1176
        %v1178 = vpop.f32.mrf.mxu0
        %1179 = vdwg.mxu0
        %1180 = vmatprep.subr.mxu0 0.0
        %1181 = vmatpush1.msra.mxu0 0.0
        %1182 = vmatprep.subr.mxu0 0.0
        %1183 = vmatpush1.msra.mxu0 0.0
        %1184 = vmatprep.subr.mxu0 0.0
        %1185 = vmatpush1.msra.mxu0 0.0
        %1186 = vmatprep.subr.mxu0 0.0
        %1187 = vmatpush1.msra.mxu0 0.0
        %1188 = vmatprep.subr.mxu0 0.0
        %1189 = vmatpush1.msra.mxu0 0.0
        %1190 = vmatprep.subr.mxu0 0.0
        %1191 = vmatpush1.msra.mxu0 0.0
        %1192 = vmatprep.subr.mxu0 0.0
        %1193 = vmatpush1.msra.mxu0 0.0
        %1194 = vmatprep.subr.mxu0 0.0
        %1195 = vmatpush1.msra.mxu0 0.0
        %1196 = vmatprep.subr.mxu0 0.0
        %1197 = vmatpush1.msra.mxu0 0.0
        %1198 = vmatprep.subr.mxu0 0.0
        %1199 = vmatpush1.msra.mxu0 0.0
        %1200 = vmatprep.subr.mxu0 0.0
        %1201 = vmatpush1.msra.mxu0 0.0
        %1202 = vmatprep.subr.mxu0 0.0
        %1203 = vmatpush1.msra.mxu0 0.0
        %1204 = vmatprep.subr.mxu0 0.0
        %1205 = vmatpush1.msra.mxu0 0.0
        %1206 = vmatprep.subr.mxu0 0.0
        %1207 = vmatpush1.msra.mxu0 0.0
        %1208 = vmatprep.subr.mxu0 0.0
        %1209 = vmatpush1.msra.mxu0 %v730
        %1210 = vmatprep.subr.mxu0 0.0
        %1211 = vmatpush1.msra.mxu0 %v725
        %1212 = vmatprep.subr.mxu0 0.0
        %1213 = vmatpush2.msra.mxu0 0.0
        %1214 = vmatprep.subr.mxu0 0.0
        %1215 = vmatpush2.msra.mxu0 0.0
        %1216 = vmatprep.subr.mxu0 0.0
        %1217 = vmatpush2.msra.mxu0 0.0
        %1218 = vmatprep.subr.mxu0 0.0
        %1219 = vmatpush2.msra.mxu0 0.0
        %1220 = vmatprep.subr.mxu0 0.0
        %1221 = vmatpush2.msra.mxu0 0.0
        %1222 = vmatprep.subr.mxu0 0.0
        %1223 = vmatpush2.msra.mxu0 0.0
        %1224 = vmatprep.subr.mxu0 0.0
        %1225 = vmatpush2.msra.mxu0 0.0
        %1226 = vmatprep.subr.mxu0 0.0
        %1227 = vmatpush2.msra.mxu0 0.0
        %1228 = vmatprep.subr.mxu0 0.0
        %1229 = vmatpush2.msra.mxu0 0.0
        %1230 = vmatprep.subr.mxu0 0.0
        %1231 = vmatpush2.msra.mxu0 0.0
        %1232 = vmatprep.subr.mxu0 0.0
        %1233 = vmatpush2.msra.mxu0 0.0
        %1234 = vmatprep.subr.mxu0 0.0
        %1235 = vmatpush2.msra.mxu0 0.0
        %1236 = vmatprep.subr.mxu0 0.0
        %1237 = vmatpush2.msra.mxu0 0.0
        %1238 = vmatprep.subr.mxu0 0.0
        %1239 = vmatpush2.msra.mxu0 0.0
        %1240 = vmatprep.subr.mxu0 0.0
        %1241 = vmatpush2.msra.mxu0 0.0
        %1242 = vmatprep.subr.mxu0 0.0
        %1243 = vmatpush2.msra.mxu0 0.0
        %1244 = vmatprep.mubr.f32.mxu0 0.0
        %1245 = vmatmul.mubr.f32.gmra.mxu0 %v1038
        %v1246 = vpop.f32.mrf.mxu0
        %v1247 = vadd.f32 0.0, %v1246
        %v1248 = vpop.f32.mrf.mxu0
        %1249 = vdwg.mxu0
        %1250 = vmatprep.subr.mxu0 0.0
        %1251 = vmatpush1.msra.mxu0 0.0
        %1252 = vmatprep.subr.mxu0 0.0
        %1253 = vmatpush1.msra.mxu0 0.0
        %1254 = vmatprep.subr.mxu0 0.0
        %1255 = vmatpush1.msra.mxu0 0.0
        %1256 = vmatprep.subr.mxu0 0.0
        %1257 = vmatpush1.msra.mxu0 0.0
        %1258 = vmatprep.subr.mxu0 0.0
        %1259 = vmatpush1.msra.mxu0 0.0
        %1260 = vmatprep.subr.mxu0 0.0
        %1261 = vmatpush1.msra.mxu0 0.0
        %1262 = vmatprep.subr.mxu0 0.0
        %1263 = vmatpush1.msra.mxu0 0.0
        %1264 = vmatprep.subr.mxu0 0.0
        %1265 = vmatpush1.msra.mxu0 0.0
        %1266 = vmatprep.subr.mxu0 0.0
        %1267 = vmatpush1.msra.mxu0 0.0
        %1268 = vmatprep.subr.mxu0 0.0
        %1269 = vmatpush1.msra.mxu0 0.0
        %1270 = vmatprep.subr.mxu0 0.0
        %1271 = vmatpush1.msra.mxu0 0.0
        %1272 = vmatprep.subr.mxu0 0.0
        %1273 = vmatpush1.msra.mxu0 0.0
        %1274 = vmatprep.subr.mxu0 0.0
        %1275 = vmatpush1.msra.mxu0 0.0
        %1276 = vmatprep.subr.mxu0 0.0
        %1277 = vmatpush1.msra.mxu0 0.0
        %1278 = vmatprep.subr.mxu0 0.0
        %1279 = vmatpush1.msra.mxu0 %v867
        %1280 = vmatprep.subr.mxu0 0.0
        %1281 = vmatpush1.msra.mxu0 %v862
        %1282 = vmatprep.subr.mxu0 0.0
        %1283 = vmatpush2.msra.mxu0 0.0
        %1284 = vmatprep.subr.mxu0 0.0
        %1285 = vmatpush2.msra.mxu0 0.0
        %1286 = vmatprep.subr.mxu0 0.0
        %1287 = vmatpush2.msra.mxu0 0.0
        %1288 = vmatprep.subr.mxu0 0.0
        %1289 = vmatpush2.msra.mxu0 0.0
        %1290 = vmatprep.subr.mxu0 0.0
        %1291 = vmatpush2.msra.mxu0 0.0
        %1292 = vmatprep.subr.mxu0 0.0
        %1293 = vmatpush2.msra.mxu0 0.0
        %1294 = vmatprep.subr.mxu0 0.0
        %1295 = vmatpush2.msra.mxu0 0.0
        %1296 = vmatprep.subr.mxu0 0.0
        %1297 = vmatpush2.msra.mxu0 0.0
        %1298 = vmatprep.subr.mxu0 0.0
        %1299 = vmatpush2.msra.mxu0 0.0
        %1300 = vmatprep.subr.mxu0 0.0
        %1301 = vmatpush2.msra.mxu0 0.0
        %1302 = vmatprep.subr.mxu0 0.0
        %1303 = vmatpush2.msra.mxu0 0.0
        %1304 = vmatprep.subr.mxu0 0.0
        %1305 = vmatpush2.msra.mxu0 0.0
        %1306 = vmatprep.subr.mxu0 0.0
        %1307 = vmatpush2.msra.mxu0 0.0
        %1308 = vmatprep.subr.mxu0 0.0
        %1309 = vmatpush2.msra.mxu0 0.0
        %1310 = vmatprep.subr.mxu0 0.0
        %1311 = vmatpush2.msra.mxu0 0.0
        %1312 = vmatprep.subr.mxu0 0.0
        %1313 = vmatpush2.msra.mxu0 0.0
        %1314 = vmatprep.mubr.f32.mxu0 0.0
        %1315 = vmatmul.mubr.f32.gmra.mxu0 %v1038
        %v1316 = vpop.f32.mrf.mxu0
        %v1317 = vadd.f32 0.0, %v1316
        %v1318 = vpop.f32.mrf.mxu0
        %1319 = vdwg.mxu0
        %1320 = vmatprep.subr.mxu0 0.0
        %1321 = vmatpush1.msra.mxu0 0.0
        %1322 = vmatprep.subr.mxu0 0.0
        %1323 = vmatpush1.msra.mxu0 0.0
        %1324 = vmatprep.subr.mxu0 0.0
        %1325 = vmatpush1.msra.mxu0 0.0
        %1326 = vmatprep.subr.mxu0 0.0
        %1327 = vmatpush1.msra.mxu0 0.0
        %1328 = vmatprep.subr.mxu0 0.0
        %1329 = vmatpush1.msra.mxu0 0.0
        %1330 = vmatprep.subr.mxu0 0.0
        %1331 = vmatpush1.msra.mxu0 0.0
        %1332 = vmatprep.subr.mxu0 0.0
        %1333 = vmatpush1.msra.mxu0 0.0
        %1334 = vmatprep.subr.mxu0 0.0
        %1335 = vmatpush1.msra.mxu0 0.0
        %1336 = vmatprep.subr.mxu0 0.0
        %1337 = vmatpush1.msra.mxu0 0.0
        %1338 = vmatprep.subr.mxu0 0.0
        %1339 = vmatpush1.msra.mxu0 0.0
        %1340 = vmatprep.subr.mxu0 0.0
        %1341 = vmatpush1.msra.mxu0 0.0
        %1342 = vmatprep.subr.mxu0 0.0
        %1343 = vmatpush1.msra.mxu0 0.0
        %1344 = vmatprep.subr.mxu0 0.0
        %1345 = vmatpush1.msra.mxu0 0.0
        %1346 = vmatprep.subr.mxu0 0.0
        %1347 = vmatpush1.msra.mxu0 0.0
        %1348 = vmatprep.subr.mxu0 0.0
        %1349 = vmatpush1.msra.mxu0 %v1004
        %1350 = vmatprep.subr.mxu0 0.0
        %1351 = vmatpush1.msra.mxu0 %v999
        %1352 = vmatprep.subr.mxu0 0.0
        %1353 = vmatpush2.msra.mxu0 0.0
        %1354 = vmatprep.subr.mxu0 0.0
        %1355 = vmatpush2.msra.mxu0 0.0
        %1356 = vmatprep.subr.mxu0 0.0
        %1357 = vmatpush2.msra.mxu0 0.0
        %1358 = vmatprep.subr.mxu0 0.0
        %1359 = vmatpush2.msra.mxu0 0.0
        %1360 = vmatprep.subr.mxu0 0.0
        %1361 = vmatpush2.msra.mxu0 0.0
        %1362 = vmatprep.subr.mxu0 0.0
        %1363 = vmatpush2.msra.mxu0 0.0
        %1364 = vmatprep.subr.mxu0 0.0
        %1365 = vmatpush2.msra.mxu0 0.0
        %1366 = vmatprep.subr.mxu0 0.0
        %1367 = vmatpush2.msra.mxu0 0.0
        %1368 = vmatprep.subr.mxu0 0.0
        %1369 = vmatpush2.msra.mxu0 0.0
        %1370 = vmatprep.subr.mxu0 0.0
        %1371 = vmatpush2.msra.mxu0 0.0
        %1372 = vmatprep.subr.mxu0 0.0
        %1373 = vmatpush2.msra.mxu0 0.0
        %1374 = vmatprep.subr.mxu0 0.0
        %1375 = vmatpush2.msra.mxu0 0.0
        %1376 = vmatprep.subr.mxu0 0.0
        %1377 = vmatpush2.msra.mxu0 0.0
        %1378 = vmatprep.subr.mxu0 0.0
        %1379 = vmatpush2.msra.mxu0 0.0
        %1380 = vmatprep.subr.mxu0 0.0
        %1381 = vmatpush2.msra.mxu0 0.0
        %1382 = vmatprep.subr.mxu0 0.0
        %1383 = vmatpush2.msra.mxu0 0.0
        %1384 = vmatprep.mubr.f32.mxu0 0.0
        %1385 = vmatmul.mubr.f32.gmra.mxu0 %v1038
        %v1386 = vpop.f32.mrf.mxu0
        %v1387 = vadd.f32 0.0, %v1386
        %v1388 = vpop.f32.mrf.mxu0
        %1389 = vdwg.mxu0
        %v1390 = vmul.f32 %v1107, %v1107
        %v1391 = vmul.f32 %v1177, %v1177
        %v1392 = vmul.f32 %v1107, %v1177
        %v1393 = vsub.f32 %v1247, %v1390
        %v1394 = vsub.f32 %v1317, %v1391
        %v1395 = vsub.f32 %v1387, %v1392
        %v1396 = vmul.f32 %v1392, 2.0
        %v1397 = vadd.f32 %v1396, 0.0001
        %v1398 = vmul.f32 %v1395, 2.0
        %v1399 = vadd.f32 %v1398, 0.0009
        %v1400 = vmul.f32 %v1397, %v1399
        %v1401 = vadd.f32 %v1390, %v1391
        %v1402 = vadd.f32 %v1401, 0.0001
        %v1403 = vadd.f32 %v1393, %v1394
        %v1404 = vadd.f32 %v1403, 0.0009
        %v1405 = vmul.f32 %v1402, %v1404
        %v1406 = vrcp.pop %v1405
        %v1407 = vmul.f32 %v1405, %v1406
        %v1408 = vsub.f32 2.0, %v1407
        %v1409 = vmul.f32 %v1406, %v1408
        %v1410 = vmul.f32 %v1400, %v1409
        %v1411 = vsub.f32 %v1410, 1.0
        %v1412 = vadd.f32 %v1411, 0.0
        %v1413 = vadd.f32 %v1412, 0.0
        %1414 = vmatprep.subr.mxu0 0.0
        %1415 = vmatpush1.msra.mxu0 0.0
        %1416 = vmatprep.subr.mxu0 0.0
        %1417 = vmatpush1.msra.mxu0 0.0
        %1418 = vmatprep.subr.mxu0 0.0
        %1419 = vmatpush1.msra.mxu0 0.0
        %1420 = vmatprep.subr.mxu0 0.0
        %1421 = vmatpush1.msra.mxu0 0.0
        %1422 = vmatprep.subr.mxu0 0.0
        %1423 = vmatpush1.msra.mxu0 0.0
        %1424 = vmatprep.subr.mxu0 0.0
        %1425 = vmatpush1.msra.mxu0 0.0
        %1426 = vmatprep.subr.mxu0 0.0
        %1427 = vmatpush1.msra.mxu0 0.0
        %1428 = vmatprep.subr.mxu0 0.0
        %1429 = vmatpush1.msra.mxu0 0.0
        %1430 = vmatprep.subr.mxu0 0.0
        %1431 = vmatpush1.msra.mxu0 0.0
        %1432 = vmatprep.subr.mxu0 0.0
        %1433 = vmatpush1.msra.mxu0 0.0
        %1434 = vmatprep.subr.mxu0 0.0
        %1435 = vmatpush1.msra.mxu0 0.0
        %1436 = vmatprep.subr.mxu0 0.0
        %1437 = vmatpush1.msra.mxu0 0.0
        %1438 = vmatprep.subr.mxu0 0.0
        %1439 = vmatpush1.msra.mxu0 0.0
        %1440 = vmatprep.subr.mxu0 0.0
        %1441 = vmatpush1.msra.mxu0 0.0
        %1442 = vmatprep.subr.mxu0 0.0
        %1443 = vmatpush1.msra.mxu0 %v474
        %1444 = vmatprep.subr.mxu0 0.0
        %1445 = vmatpush1.msra.mxu0 %v469
        %1446 = vmatprep.subr.mxu0 0.0
        %1447 = vmatpush2.msra.mxu0 0.0
        %1448 = vmatprep.subr.mxu0 0.0
        %1449 = vmatpush2.msra.mxu0 0.0
        %1450 = vmatprep.subr.mxu0 0.0
        %1451 = vmatpush2.msra.mxu0 0.0
        %1452 = vmatprep.subr.mxu0 0.0
        %1453 = vmatpush2.msra.mxu0 0.0
        %1454 = vmatprep.subr.mxu0 0.0
        %1455 = vmatpush2.msra.mxu0 0.0
        %1456 = vmatprep.subr.mxu0 0.0
        %1457 = vmatpush2.msra.mxu0 0.0
        %1458 = vmatprep.subr.mxu0 0.0
        %1459 = vmatpush2.msra.mxu0 0.0
        %1460 = vmatprep.subr.mxu0 0.0
        %1461 = vmatpush2.msra.mxu0 0.0
        %1462 = vmatprep.subr.mxu0 0.0
        %1463 = vmatpush2.msra.mxu0 0.0
        %1464 = vmatprep.subr.mxu0 0.0
        %1465 = vmatpush2.msra.mxu0 0.0
        %1466 = vmatprep.subr.mxu0 0.0
        %1467 = vmatpush2.msra.mxu0 0.0
        %1468 = vmatprep.subr.mxu0 0.0
        %1469 = vmatpush2.msra.mxu0 0.0
        %1470 = vmatprep.subr.mxu0 0.0
        %1471 = vmatpush2.msra.mxu0 0.0
        %1472 = vmatprep.subr.mxu0 0.0
        %1473 = vmatpush2.msra.mxu0 0.0
        %1474 = vmatprep.subr.mxu0 0.0
        %1475 = vmatpush2.msra.mxu0 0.0
        %1476 = vmatprep.subr.mxu0 0.0
        %1477 = vmatpush2.msra.mxu0 0.0
        %1478 = vmatprep.mubr.f32.mxu0 0.0
        %1479 = vmatmul.mubr.f32.gmra.mxu0 %v1038
        %v1480 = vpop.f32.mrf.mxu0
        %v1481 = vadd.f32 0.0, %v1480
        %v1482 = vpop.f32.mrf.mxu0
        %1483 = vdwg.mxu0
        %1484 = vmatprep.subr.mxu0 0.0
        %1485 = vmatpush1.msra.mxu0 0.0
        %1486 = vmatprep.subr.mxu0 0.0
        %1487 = vmatpush1.msra.mxu0 0.0
        %1488 = vmatprep.subr.mxu0 0.0
        %1489 = vmatpush1.msra.mxu0 0.0
        %1490 = vmatprep.subr.mxu0 0.0
        %1491 = vmatpush1.msra.mxu0 0.0
        %1492 = vmatprep.subr.mxu0 0.0
        %1493 = vmatpush1.msra.mxu0 0.0
        %1494 = vmatprep.subr.mxu0 0.0
        %1495 = vmatpush1.msra.mxu0 0.0
        %1496 = vmatprep.subr.mxu0 0.0
        %1497 = vmatpush1.msra.mxu0 0.0
        %1498 = vmatprep.subr.mxu0 0.0
        %1499 = vmatpush1.msra.mxu0 0.0
        %1500 = vmatprep.subr.mxu0 0.0
        %1501 = vmatpush1.msra.mxu0 0.0
        %1502 = vmatprep.subr.mxu0 0.0
        %1503 = vmatpush1.msra.mxu0 0.0
        %1504 = vmatprep.subr.mxu0 0.0
        %1505 = vmatpush1.msra.mxu0 0.0
        %1506 = vmatprep.subr.mxu0 0.0
        %1507 = vmatpush1.msra.mxu0 0.0
        %1508 = vmatprep.subr.mxu0 0.0
        %1509 = vmatpush1.msra.mxu0 0.0
        %1510 = vmatprep.subr.mxu0 0.0
        %1511 = vmatpush1.msra.mxu0 0.0
        %1512 = vmatprep.subr.mxu0 0.0
        %1513 = vmatpush1.msra.mxu0 %v603
        %1514 = vmatprep.subr.mxu0 0.0
        %1515 = vmatpush1.msra.mxu0 %v598
        %1516 = vmatprep.subr.mxu0 0.0
        %1517 = vmatpush2.msra.mxu0 0.0
        %1518 = vmatprep.subr.mxu0 0.0
        %1519 = vmatpush2.msra.mxu0 0.0
        %1520 = vmatprep.subr.mxu0 0.0
        %1521 = vmatpush2.msra.mxu0 0.0
        %1522 = vmatprep.subr.mxu0 0.0
        %1523 = vmatpush2.msra.mxu0 0.0
        %1524 = vmatprep.subr.mxu0 0.0
        %1525 = vmatpush2.msra.mxu0 0.0
        %1526 = vmatprep.subr.mxu0 0.0
        %1527 = vmatpush2.msra.mxu0 0.0
        %1528 = vmatprep.subr.mxu0 0.0
        %1529 = vmatpush2.msra.mxu0 0.0
        %1530 = vmatprep.subr.mxu0 0.0
        %1531 = vmatpush2.msra.mxu0 0.0
        %1532 = vmatprep.subr.mxu0 0.0
        %1533 = vmatpush2.msra.mxu0 0.0
        %1534 = vmatprep.subr.mxu0 0.0
        %1535 = vmatpush2.msra.mxu0 0.0
        %1536 = vmatprep.subr.mxu0 0.0
        %1537 = vmatpush2.msra.mxu0 0.0
        %1538 = vmatprep.subr.mxu0 0.0
        %1539 = vmatpush2.msra.mxu0 0.0
        %1540 = vmatprep.subr.mxu0 0.0
        %1541 = vmatpush2.msra.mxu0 0.0
        %1542 = vmatprep.subr.mxu0 0.0
        %1543 = vmatpush2.msra.mxu0 0.0
        %1544 = vmatprep.subr.mxu0 0.0
        %1545 = vmatpush2.msra.mxu0 0.0
        %1546 = vmatprep.subr.mxu0 0.0
        %1547 = vmatpush2.msra.mxu0 0.0
        %1548 = vmatprep.mubr.f32.mxu0 0.0
        %1549 = vmatmul.mubr.f32.gmra.mxu0 %v1038
        %v1550 = vpop.f32.mrf.mxu0
        %v1551 = vadd.f32 0.0, %v1550
        %v1552 = vpop.f32.mrf.mxu0
        %1553 = vdwg.mxu0
        %1554 = vmatprep.subr.mxu0 0.0
        %1555 = vmatpush1.msra.mxu0 0.0
        %1556 = vmatprep.subr.mxu0 0.0
        %1557 = vmatpush1.msra.mxu0 0.0
        %1558 = vmatprep.subr.mxu0 0.0
        %1559 = vmatpush1.msra.mxu0 0.0
        %1560 = vmatprep.subr.mxu0 0.0
        %1561 = vmatpush1.msra.mxu0 0.0
        %1562 = vmatprep.subr.mxu0 0.0
        %1563 = vmatpush1.msra.mxu0 0.0
        %1564 = vmatprep.subr.mxu0 0.0
        %1565 = vmatpush1.msra.mxu0 0.0
        %1566 = vmatprep.subr.mxu0 0.0
        %1567 = vmatpush1.msra.mxu0 0.0
        %1568 = vmatprep.subr.mxu0 0.0
        %1569 = vmatpush1.msra.mxu0 0.0
        %1570 = vmatprep.subr.mxu0 0.0
        %1571 = vmatpush1.msra.mxu0 0.0
        %1572 = vmatprep.subr.mxu0 0.0
        %1573 = vmatpush1.msra.mxu0 0.0
        %1574 = vmatprep.subr.mxu0 0.0
        %1575 = vmatpush1.msra.mxu0 0.0
        %1576 = vmatprep.subr.mxu0 0.0
        %1577 = vmatpush1.msra.mxu0 0.0
        %1578 = vmatprep.subr.mxu0 0.0
        %1579 = vmatpush1.msra.mxu0 0.0
        %1580 = vmatprep.subr.mxu0 0.0
        %1581 = vmatpush1.msra.mxu0 0.0
        %1582 = vmatprep.subr.mxu0 0.0
        %1583 = vmatpush1.msra.mxu0 %v740
        %1584 = vmatprep.subr.mxu0 0.0
        %1585 = vmatpush1.msra.mxu0 %v735
        %1586 = vmatprep.subr.mxu0 0.0
        %1587 = vmatpush2.msra.mxu0 0.0
        %1588 = vmatprep.subr.mxu0 0.0
        %1589 = vmatpush2.msra.mxu0 0.0
        %1590 = vmatprep.subr.mxu0 0.0
        %1591 = vmatpush2.msra.mxu0 0.0
        %1592 = vmatprep.subr.mxu0 0.0
        %1593 = vmatpush2.msra.mxu0 0.0
        %1594 = vmatprep.subr.mxu0 0.0
        %1595 = vmatpush2.msra.mxu0 0.0
        %1596 = vmatprep.subr.mxu0 0.0
        %1597 = vmatpush2.msra.mxu0 0.0
        %1598 = vmatprep.subr.mxu0 0.0
        %1599 = vmatpush2.msra.mxu0 0.0
        %1600 = vmatprep.subr.mxu0 0.0
        %1601 = vmatpush2.msra.mxu0 0.0
        %1602 = vmatprep.subr.mxu0 0.0
        %1603 = vmatpush2.msra.mxu0 0.0
        %1604 = vmatprep.subr.mxu0 0.0
        %1605 = vmatpush2.msra.mxu0 0.0
        %1606 = vmatprep.subr.mxu0 0.0
        %1607 = vmatpush2.msra.mxu0 0.0
        %1608 = vmatprep.subr.mxu0 0.0
        %1609 = vmatpush2.msra.mxu0 0.0
        %1610 = vmatprep.subr.mxu0 0.0
        %1611 = vmatpush2.msra.mxu0 0.0
        %1612 = vmatprep.subr.mxu0 0.0
        %1613 = vmatpush2.msra.mxu0 0.0
        %1614 = vmatprep.subr.mxu0 0.0
        %1615 = vmatpush2.msra.mxu0 0.0
        %1616 = vmatprep.subr.mxu0 0.0
        %1617 = vmatpush2.msra.mxu0 0.0
        %1618 = vmatprep.mubr.f32.mxu0 0.0
        %1619 = vmatmul.mubr.f32.gmra.mxu0 %v1038
        %v1620 = vpop.f32.mrf.mxu0
        %v1621 = vadd.f32 0.0, %v1620
        %v1622 = vpop.f32.mrf.mxu0
        %1623 = vdwg.mxu0
        %1624 = vmatprep.subr.mxu0 0.0
        %1625 = vmatpush1.msra.mxu0 0.0
        %1626 = vmatprep.subr.mxu0 0.0
        %1627 = vmatpush1.msra.mxu0 0.0
        %1628 = vmatprep.subr.mxu0 0.0
        %1629 = vmatpush1.msra.mxu0 0.0
        %1630 = vmatprep.subr.mxu0 0.0
        %1631 = vmatpush1.msra.mxu0 0.0
        %1632 = vmatprep.subr.mxu0 0.0
        %1633 = vmatpush1.msra.mxu0 0.0
        %1634 = vmatprep.subr.mxu0 0.0
        %1635 = vmatpush1.msra.mxu0 0.0
        %1636 = vmatprep.subr.mxu0 0.0
        %1637 = vmatpush1.msra.mxu0 0.0
        %1638 = vmatprep.subr.mxu0 0.0
        %1639 = vmatpush1.msra.mxu0 0.0
        %1640 = vmatprep.subr.mxu0 0.0
        %1641 = vmatpush1.msra.mxu0 0.0
        %1642 = vmatprep.subr.mxu0 0.0
        %1643 = vmatpush1.msra.mxu0 0.0
        %1644 = vmatprep.subr.mxu0 0.0
        %1645 = vmatpush1.msra.mxu0 0.0
        %1646 = vmatprep.subr.mxu0 0.0
        %1647 = vmatpush1.msra.mxu0 0.0
        %1648 = vmatprep.subr.mxu0 0.0
        %1649 = vmatpush1.msra.mxu0 0.0
        %1650 = vmatprep.subr.mxu0 0.0
        %1651 = vmatpush1.msra.mxu0 0.0
        %1652 = vmatprep.subr.mxu0 0.0
        %1653 = vmatpush1.msra.mxu0 %v877
        %1654 = vmatprep.subr.mxu0 0.0
        %1655 = vmatpush1.msra.mxu0 %v872
        %1656 = vmatprep.subr.mxu0 0.0
        %1657 = vmatpush2.msra.mxu0 0.0
        %1658 = vmatprep.subr.mxu0 0.0
        %1659 = vmatpush2.msra.mxu0 0.0
        %1660 = vmatprep.subr.mxu0 0.0
        %1661 = vmatpush2.msra.mxu0 0.0
        %1662 = vmatprep.subr.mxu0 0.0
        %1663 = vmatpush2.msra.mxu0 0.0
        %1664 = vmatprep.subr.mxu0 0.0
        %1665 = vmatpush2.msra.mxu0 0.0
        %1666 = vmatprep.subr.mxu0 0.0
        %1667 = vmatpush2.msra.mxu0 0.0
        %1668 = vmatprep.subr.mxu0 0.0
        %1669 = vmatpush2.msra.mxu0 0.0
        %1670 = vmatprep.subr.mxu0 0.0
        %1671 = vmatpush2.msra.mxu0 0.0
        %1672 = vmatprep.subr.mxu0 0.0
        %1673 = vmatpush2.msra.mxu0 0.0
        %1674 = vmatprep.subr.mxu0 0.0
        %1675 = vmatpush2.msra.mxu0 0.0
        %1676 = vmatprep.subr.mxu0 0.0
        %1677 = vmatpush2.msra.mxu0 0.0
        %1678 = vmatprep.subr.mxu0 0.0
        %1679 = vmatpush2.msra.mxu0 0.0
        %1680 = vmatprep.subr.mxu0 0.0
        %1681 = vmatpush2.msra.mxu0 0.0
        %1682 = vmatprep.subr.mxu0 0.0
        %1683 = vmatpush2.msra.mxu0 0.0
        %1684 = vmatprep.subr.mxu0 0.0
        %1685 = vmatpush2.msra.mxu0 0.0
        %1686 = vmatprep.subr.mxu0 0.0
        %1687 = vmatpush2.msra.mxu0 0.0
        %1688 = vmatprep.mubr.f32.mxu0 0.0
        %1689 = vmatmul.mubr.f32.gmra.mxu0 %v1038
        %v1690 = vpop.f32.mrf.mxu0
        %v1691 = vadd.f32 0.0, %v1690
        %v1692 = vpop.f32.mrf.mxu0
        %1693 = vdwg.mxu0
        %1694 = vmatprep.subr.mxu0 0.0
        %1695 = vmatpush1.msra.mxu0 0.0
        %1696 = vmatprep.subr.mxu0 0.0
        %1697 = vmatpush1.msra.mxu0 0.0
        %1698 = vmatprep.subr.mxu0 0.0
        %1699 = vmatpush1.msra.mxu0 0.0
        %1700 = vmatprep.subr.mxu0 0.0
        %1701 = vmatpush1.msra.mxu0 0.0
        %1702 = vmatprep.subr.mxu0 0.0
        %1703 = vmatpush1.msra.mxu0 0.0
        %1704 = vmatprep.subr.mxu0 0.0
        %1705 = vmatpush1.msra.mxu0 0.0
        %1706 = vmatprep.subr.mxu0 0.0
        %1707 = vmatpush1.msra.mxu0 0.0
        %1708 = vmatprep.subr.mxu0 0.0
        %1709 = vmatpush1.msra.mxu0 0.0
        %1710 = vmatprep.subr.mxu0 0.0
        %1711 = vmatpush1.msra.mxu0 0.0
        %1712 = vmatprep.subr.mxu0 0.0
        %1713 = vmatpush1.msra.mxu0 0.0
        %1714 = vmatprep.subr.mxu0 0.0
        %1715 = vmatpush1.msra.mxu0 0.0
        %1716 = vmatprep.subr.mxu0 0.0
        %1717 = vmatpush1.msra.mxu0 0.0
        %1718 = vmatprep.subr.mxu0 0.0
        %1719 = vmatpush1.msra.mxu0 0.0
        %1720 = vmatprep.subr.mxu0 0.0
        %1721 = vmatpush1.msra.mxu0 0.0
        %1722 = vmatprep.subr.mxu0 0.0
        %1723 = vmatpush1.msra.mxu0 %v1014
        %1724 = vmatprep.subr.mxu0 0.0
        %1725 = vmatpush1.msra.mxu0 %v1009
        %1726 = vmatprep.subr.mxu0 0.0
        %1727 = vmatpush2.msra.mxu0 0.0
        %1728 = vmatprep.subr.mxu0 0.0
        %1729 = vmatpush2.msra.mxu0 0.0
        %1730 = vmatprep.subr.mxu0 0.0
        %1731 = vmatpush2.msra.mxu0 0.0
        %1732 = vmatprep.subr.mxu0 0.0
        %1733 = vmatpush2.msra.mxu0 0.0
        %1734 = vmatprep.subr.mxu0 0.0
        %1735 = vmatpush2.msra.mxu0 0.0
        %1736 = vmatprep.subr.mxu0 0.0
        %1737 = vmatpush2.msra.mxu0 0.0
        %1738 = vmatprep.subr.mxu0 0.0
        %1739 = vmatpush2.msra.mxu0 0.0
        %1740 = vmatprep.subr.mxu0 0.0
        %1741 = vmatpush2.msra.mxu0 0.0
        %1742 = vmatprep.subr.mxu0 0.0
        %1743 = vmatpush2.msra.mxu0 0.0
        %1744 = vmatprep.subr.mxu0 0.0
        %1745 = vmatpush2.msra.mxu0 0.0
        %1746 = vmatprep.subr.mxu0 0.0
        %1747 = vmatpush2.msra.mxu0 0.0
        %1748 = vmatprep.subr.mxu0 0.0
        %1749 = vmatpush2.msra.mxu0 0.0
        %1750 = vmatprep.subr.mxu0 0.0
        %1751 = vmatpush2.msra.mxu0 0.0
        %1752 = vmatprep.subr.mxu0 0.0
        %1753 = vmatpush2.msra.mxu0 0.0
        %1754 = vmatprep.subr.mxu0 0.0
        %1755 = vmatpush2.msra.mxu0 0.0
        %1756 = vmatprep.subr.mxu0 0.0
        %1757 = vmatpush2.msra.mxu0 0.0
        %1758 = vmatprep.mubr.f32.mxu0 0.0
        %1759 = vmatmul.mubr.f32.gmra.mxu0 %v1038
        %v1760 = vpop.f32.mrf.mxu0
        %v1761 = vadd.f32 0.0, %v1760
        %v1762 = vpop.f32.mrf.mxu0
        %1763 = vdwg.mxu0
        %v1764 = vmul.f32 %v1481, %v1481
        %v1765 = vmul.f32 %v1551, %v1551
        %v1766 = vmul.f32 %v1481, %v1551
        %v1767 = vsub.f32 %v1621, %v1764
        %v1768 = vsub.f32 %v1691, %v1765
        %v1769 = vsub.f32 %v1761, %v1766
        %v1770 = vmul.f32 %v1766, 2.0
        %v1771 = vadd.f32 %v1770, 0.0001
        %v1772 = vmul.f32 %v1769, 2.0
        %v1773 = vadd.f32 %v1772, 0.0009
        %v1774 = vmul.f32 %v1771, %v1773
        %v1775 = vadd.f32 %v1764, %v1765
        %v1776 = vadd.f32 %v1775, 0.0001
        %v1777 = vadd.f32 %v1767, %v1768
        %v1778 = vadd.f32 %v1777, 0.0009
        %v1779 = vmul.f32 %v1776, %v1778
        %v1780 = vrcp.pop %v1779
        %v1781 = vmul.f32 %v1779, %v1780
        %v1782 = vsub.f32 2.0, %v1781
        %v1783 = vmul.f32 %v1780, %v1782
        %v1784 = vmul.f32 %v1774, %v1783
        %v1785 = vsub.f32 %v1784, 1.0
        %v1786 = vadd.f32 %v1785, 0.0
        %v1787 = vadd.f32 %v1413, %v1786
        %1788 = vmatprep.subr.mxu0 0.0
        %1789 = vmatpush1.msra.mxu0 0.0
        %1790 = vmatprep.subr.mxu0 0.0
        %1791 = vmatpush1.msra.mxu0 0.0
        %1792 = vmatprep.subr.mxu0 0.0
        %1793 = vmatpush1.msra.mxu0 0.0
        %1794 = vmatprep.subr.mxu0 0.0
        %1795 = vmatpush1.msra.mxu0 0.0
        %1796 = vmatprep.subr.mxu0 0.0
        %1797 = vmatpush1.msra.mxu0 0.0
        %1798 = vmatprep.subr.mxu0 0.0
        %1799 = vmatpush1.msra.mxu0 0.0
        %1800 = vmatprep.subr.mxu0 0.0
        %1801 = vmatpush1.msra.mxu0 0.0
        %1802 = vmatprep.subr.mxu0 0.0
        %1803 = vmatpush1.msra.mxu0 0.0
        %1804 = vmatprep.subr.mxu0 0.0
        %1805 = vmatpush1.msra.mxu0 0.0
        %1806 = vmatprep.subr.mxu0 0.0
        %1807 = vmatpush1.msra.mxu0 0.0
        %1808 = vmatprep.subr.mxu0 0.0
        %1809 = vmatpush1.msra.mxu0 0.0
        %1810 = vmatprep.subr.mxu0 0.0
        %1811 = vmatpush1.msra.mxu0 0.0
        %1812 = vmatprep.subr.mxu0 0.0
        %1813 = vmatpush1.msra.mxu0 0.0
        %1814 = vmatprep.subr.mxu0 0.0
        %1815 = vmatpush1.msra.mxu0 0.0
        %1816 = vmatprep.subr.mxu0 0.0
        %1817 = vmatpush1.msra.mxu0 %v484
        %1818 = vmatprep.subr.mxu0 0.0
        %1819 = vmatpush1.msra.mxu0 %v479
        %1820 = vmatprep.subr.mxu0 0.0
        %1821 = vmatpush2.msra.mxu0 0.0
        %1822 = vmatprep.subr.mxu0 0.0
        %1823 = vmatpush2.msra.mxu0 0.0
        %1824 = vmatprep.subr.mxu0 0.0
        %1825 = vmatpush2.msra.mxu0 0.0
        %1826 = vmatprep.subr.mxu0 0.0
        %1827 = vmatpush2.msra.mxu0 0.0
        %1828 = vmatprep.subr.mxu0 0.0
        %1829 = vmatpush2.msra.mxu0 0.0
        %1830 = vmatprep.subr.mxu0 0.0
        %1831 = vmatpush2.msra.mxu0 0.0
        %1832 = vmatprep.subr.mxu0 0.0
        %1833 = vmatpush2.msra.mxu0 0.0
        %1834 = vmatprep.subr.mxu0 0.0
        %1835 = vmatpush2.msra.mxu0 0.0
        %1836 = vmatprep.subr.mxu0 0.0
        %1837 = vmatpush2.msra.mxu0 0.0
        %1838 = vmatprep.subr.mxu0 0.0
        %1839 = vmatpush2.msra.mxu0 0.0
        %1840 = vmatprep.subr.mxu0 0.0
        %1841 = vmatpush2.msra.mxu0 0.0
        %1842 = vmatprep.subr.mxu0 0.0
        %1843 = vmatpush2.msra.mxu0 0.0
        %1844 = vmatprep.subr.mxu0 0.0
        %1845 = vmatpush2.msra.mxu0 0.0
        %1846 = vmatprep.subr.mxu0 0.0
        %1847 = vmatpush2.msra.mxu0 0.0
        %1848 = vmatprep.subr.mxu0 0.0
        %1849 = vmatpush2.msra.mxu0 0.0
        %1850 = vmatprep.subr.mxu0 0.0
        %1851 = vmatpush2.msra.mxu0 0.0
        %1852 = vmatprep.mubr.f32.mxu0 0.0
        %1853 = vmatmul.mubr.f32.gmra.mxu0 %v1038
        %v1854 = vpop.f32.mrf.mxu0
        %v1855 = vadd.f32 0.0, %v1854
        %v1856 = vpop.f32.mrf.mxu0
        %1857 = vdwg.mxu0
        %1858 = vmatprep.subr.mxu0 0.0
        %1859 = vmatpush1.msra.mxu0 0.0
        %1860 = vmatprep.subr.mxu0 0.0
        %1861 = vmatpush1.msra.mxu0 0.0
        %1862 = vmatprep.subr.mxu0 0.0
        %1863 = vmatpush1.msra.mxu0 0.0
        %1864 = vmatprep.subr.mxu0 0.0
        %1865 = vmatpush1.msra.mxu0 0.0
        %1866 = vmatprep.subr.mxu0 0.0
        %1867 = vmatpush1.msra.mxu0 0.0
        %1868 = vmatprep.subr.mxu0 0.0
        %1869 = vmatpush1.msra.mxu0 0.0
        %1870 = vmatprep.subr.mxu0 0.0
        %1871 = vmatpush1.msra.mxu0 0.0
        %1872 = vmatprep.subr.mxu0 0.0
        %1873 = vmatpush1.msra.mxu0 0.0
        %1874 = vmatprep.subr.mxu0 0.0
        %1875 = vmatpush1.msra.mxu0 0.0
        %1876 = vmatprep.subr.mxu0 0.0
        %1877 = vmatpush1.msra.mxu0 0.0
        %1878 = vmatprep.subr.mxu0 0.0
        %1879 = vmatpush1.msra.mxu0 0.0
        %1880 = vmatprep.subr.mxu0 0.0
        %1881 = vmatpush1.msra.mxu0 0.0
        %1882 = vmatprep.subr.mxu0 0.0
        %1883 = vmatpush1.msra.mxu0 0.0
        %1884 = vmatprep.subr.mxu0 0.0
        %1885 = vmatpush1.msra.mxu0 0.0
        %1886 = vmatprep.subr.mxu0 0.0
        %1887 = vmatpush1.msra.mxu0 %v613
        %1888 = vmatprep.subr.mxu0 0.0
        %1889 = vmatpush1.msra.mxu0 %v608
        %1890 = vmatprep.subr.mxu0 0.0
        %1891 = vmatpush2.msra.mxu0 0.0
        %1892 = vmatprep.subr.mxu0 0.0
        %1893 = vmatpush2.msra.mxu0 0.0
        %1894 = vmatprep.subr.mxu0 0.0
        %1895 = vmatpush2.msra.mxu0 0.0
        %1896 = vmatprep.subr.mxu0 0.0
        %1897 = vmatpush2.msra.mxu0 0.0
        %1898 = vmatprep.subr.mxu0 0.0
        %1899 = vmatpush2.msra.mxu0 0.0
        %1900 = vmatprep.subr.mxu0 0.0
        %1901 = vmatpush2.msra.mxu0 0.0
        %1902 = vmatprep.subr.mxu0 0.0
        %1903 = vmatpush2.msra.mxu0 0.0
        %1904 = vmatprep.subr.mxu0 0.0
        %1905 = vmatpush2.msra.mxu0 0.0
        %1906 = vmatprep.subr.mxu0 0.0
        %1907 = vmatpush2.msra.mxu0 0.0
        %1908 = vmatprep.subr.mxu0 0.0
        %1909 = vmatpush2.msra.mxu0 0.0
        %1910 = vmatprep.subr.mxu0 0.0
        %1911 = vmatpush2.msra.mxu0 0.0
        %1912 = vmatprep.subr.mxu0 0.0
        %1913 = vmatpush2.msra.mxu0 0.0
        %1914 = vmatprep.subr.mxu0 0.0
        %1915 = vmatpush2.msra.mxu0 0.0
        %1916 = vmatprep.subr.mxu0 0.0
        %1917 = vmatpush2.msra.mxu0 0.0
        %1918 = vmatprep.subr.mxu0 0.0
        %1919 = vmatpush2.msra.mxu0 0.0
        %1920 = vmatprep.subr.mxu0 0.0
        %1921 = vmatpush2.msra.mxu0 0.0
        %1922 = vmatprep.mubr.f32.mxu0 0.0
        %1923 = vmatmul.mubr.f32.gmra.mxu0 %v1038
        %v1924 = vpop.f32.mrf.mxu0
        %v1925 = vadd.f32 0.0, %v1924
        %v1926 = vpop.f32.mrf.mxu0
        %1927 = vdwg.mxu0
        %1928 = vmatprep.subr.mxu0 0.0
        %1929 = vmatpush1.msra.mxu0 0.0
        %1930 = vmatprep.subr.mxu0 0.0
        %1931 = vmatpush1.msra.mxu0 0.0
        %1932 = vmatprep.subr.mxu0 0.0
        %1933 = vmatpush1.msra.mxu0 0.0
        %1934 = vmatprep.subr.mxu0 0.0
        %1935 = vmatpush1.msra.mxu0 0.0
        %1936 = vmatprep.subr.mxu0 0.0
        %1937 = vmatpush1.msra.mxu0 0.0
        %1938 = vmatprep.subr.mxu0 0.0
        %1939 = vmatpush1.msra.mxu0 0.0
        %1940 = vmatprep.subr.mxu0 0.0
        %1941 = vmatpush1.msra.mxu0 0.0
        %1942 = vmatprep.subr.mxu0 0.0
        %1943 = vmatpush1.msra.mxu0 0.0
        %1944 = vmatprep.subr.mxu0 0.0
        %1945 = vmatpush1.msra.mxu0 0.0
        %1946 = vmatprep.subr.mxu0 0.0
        %1947 = vmatpush1.msra.mxu0 0.0
        %1948 = vmatprep.subr.mxu0 0.0
        %1949 = vmatpush1.msra.mxu0 0.0
        %1950 = vmatprep.subr.mxu0 0.0
        %1951 = vmatpush1.msra.mxu0 0.0
        %1952 = vmatprep.subr.mxu0 0.0
        %1953 = vmatpush1.msra.mxu0 0.0
        %1954 = vmatprep.subr.mxu0 0.0
        %1955 = vmatpush1.msra.mxu0 0.0
        %1956 = vmatprep.subr.mxu0 0.0
        %1957 = vmatpush1.msra.mxu0 %v750
        %1958 = vmatprep.subr.mxu0 0.0
        %1959 = vmatpush1.msra.mxu0 %v745
        %1960 = vmatprep.subr.mxu0 0.0
        %1961 = vmatpush2.msra.mxu0 0.0
        %1962 = vmatprep.subr.mxu0 0.0
        %1963 = vmatpush2.msra.mxu0 0.0
        %1964 = vmatprep.subr.mxu0 0.0
        %1965 = vmatpush2.msra.mxu0 0.0
        %1966 = vmatprep.subr.mxu0 0.0
        %1967 = vmatpush2.msra.mxu0 0.0
        %1968 = vmatprep.subr.mxu0 0.0
        %1969 = vmatpush2.msra.mxu0 0.0
        %1970 = vmatprep.subr.mxu0 0.0
        %1971 = vmatpush2.msra.mxu0 0.0
        %1972 = vmatprep.subr.mxu0 0.0
        %1973 = vmatpush2.msra.mxu0 0.0
        %1974 = vmatprep.subr.mxu0 0.0
        %1975 = vmatpush2.msra.mxu0 0.0
        %1976 = vmatprep.subr.mxu0 0.0
        %1977 = vmatpush2.msra.mxu0 0.0
        %1978 = vmatprep.subr.mxu0 0.0
        %1979 = vmatpush2.msra.mxu0 0.0
        %1980 = vmatprep.subr.mxu0 0.0
        %1981 = vmatpush2.msra.mxu0 0.0
        %1982 = vmatprep.subr.mxu0 0.0
        %1983 = vmatpush2.msra.mxu0 0.0
        %1984 = vmatprep.subr.mxu0 0.0
        %1985 = vmatpush2.msra.mxu0 0.0
        %1986 = vmatprep.subr.mxu0 0.0
        %1987 = vmatpush2.msra.mxu0 0.0
        %1988 = vmatprep.subr.mxu0 0.0
        %1989 = vmatpush2.msra.mxu0 0.0
        %1990 = vmatprep.subr.mxu0 0.0
        %1991 = vmatpush2.msra.mxu0 0.0
        %1992 = vmatprep.mubr.f32.mxu0 0.0
        %1993 = vmatmul.mubr.f32.gmra.mxu0 %v1038
        %v1994 = vpop.f32.mrf.mxu0
        %v1995 = vadd.f32 0.0, %v1994
        %v1996 = vpop.f32.mrf.mxu0
        %1997 = vdwg.mxu0
        %1998 = vmatprep.subr.mxu0 0.0
        %1999 = vmatpush1.msra.mxu0 0.0
        %2000 = vmatprep.subr.mxu0 0.0
        %2001 = vmatpush1.msra.mxu0 0.0
        %2002 = vmatprep.subr.mxu0 0.0
        %2003 = vmatpush1.msra.mxu0 0.0
        %2004 = vmatprep.subr.mxu0 0.0
        %2005 = vmatpush1.msra.mxu0 0.0
        %2006 = vmatprep.subr.mxu0 0.0
        %2007 = vmatpush1.msra.mxu0 0.0
        %2008 = vmatprep.subr.mxu0 0.0
        %2009 = vmatpush1.msra.mxu0 0.0
        %2010 = vmatprep.subr.mxu0 0.0
        %2011 = vmatpush1.msra.mxu0 0.0
        %2012 = vmatprep.subr.mxu0 0.0
        %2013 = vmatpush1.msra.mxu0 0.0
        %2014 = vmatprep.subr.mxu0 0.0
        %2015 = vmatpush1.msra.mxu0 0.0
        %2016 = vmatprep.subr.mxu0 0.0
        %2017 = vmatpush1.msra.mxu0 0.0
        %2018 = vmatprep.subr.mxu0 0.0
        %2019 = vmatpush1.msra.mxu0 0.0
        %2020 = vmatprep.subr.mxu0 0.0
        %2021 = vmatpush1.msra.mxu0 0.0
        %2022 = vmatprep.subr.mxu0 0.0
        %2023 = vmatpush1.msra.mxu0 0.0
        %2024 = vmatprep.subr.mxu0 0.0
        %2025 = vmatpush1.msra.mxu0 0.0
        %2026 = vmatprep.subr.mxu0 0.0
        %2027 = vmatpush1.msra.mxu0 %v887
        %2028 = vmatprep.subr.mxu0 0.0
        %2029 = vmatpush1.msra.mxu0 %v882
        %2030 = vmatprep.subr.mxu0 0.0
        %2031 = vmatpush2.msra.mxu0 0.0
        %2032 = vmatprep.subr.mxu0 0.0
        %2033 = vmatpush2.msra.mxu0 0.0
        %2034 = vmatprep.subr.mxu0 0.0
        %2035 = vmatpush2.msra.mxu0 0.0
        %2036 = vmatprep.subr.mxu0 0.0
        %2037 = vmatpush2.msra.mxu0 0.0
        %2038 = vmatprep.subr.mxu0 0.0
        %2039 = vmatpush2.msra.mxu0 0.0
        %2040 = vmatprep.subr.mxu0 0.0
        %2041 = vmatpush2.msra.mxu0 0.0
        %2042 = vmatprep.subr.mxu0 0.0
        %2043 = vmatpush2.msra.mxu0 0.0
        %2044 = vmatprep.subr.mxu0 0.0
        %2045 = vmatpush2.msra.mxu0 0.0
        %2046 = vmatprep.subr.mxu0 0.0
        %2047 = vmatpush2.msra.mxu0 0.0
        %2048 = vmatprep.subr.mxu0 0.0
        %2049 = vmatpush2.msra.mxu0 0.0
        %2050 = vmatprep.subr.mxu0 0.0
        %2051 = vmatpush2.msra.mxu0 0.0
        %2052 = vmatprep.subr.mxu0 0.0
        %2053 = vmatpush2.msra.mxu0 0.0
        %2054 = vmatprep.subr.mxu0 0.0
        %2055 = vmatpush2.msra.mxu0 0.0
        %2056 = vmatprep.subr.mxu0 0.0
        %2057 = vmatpush2.msra.mxu0 0.0
        %2058 = vmatprep.subr.mxu0 0.0
        %2059 = vmatpush2.msra.mxu0 0.0
        %2060 = vmatprep.subr.mxu0 0.0
        %2061 = vmatpush2.msra.mxu0 0.0
        %2062 = vmatprep.mubr.f32.mxu0 0.0
        %2063 = vmatmul.mubr.f32.gmra.mxu0 %v1038
        %v2064 = vpop.f32.mrf.mxu0
        %v2065 = vadd.f32 0.0, %v2064
        %v2066 = vpop.f32.mrf.mxu0
        %2067 = vdwg.mxu0
        %2068 = vmatprep.subr.mxu0 0.0
        %2069 = vmatpush1.msra.mxu0 0.0
        %2070 = vmatprep.subr.mxu0 0.0
        %2071 = vmatpush1.msra.mxu0 0.0
        %2072 = vmatprep.subr.mxu0 0.0
        %2073 = vmatpush1.msra.mxu0 0.0
        %2074 = vmatprep.subr.mxu0 0.0
        %2075 = vmatpush1.msra.mxu0 0.0
        %2076 = vmatprep.subr.mxu0 0.0
        %2077 = vmatpush1.msra.mxu0 0.0
        %2078 = vmatprep.subr.mxu0 0.0
        %2079 = vmatpush1.msra.mxu0 0.0
        %2080 = vmatprep.subr.mxu0 0.0
        %2081 = vmatpush1.msra.mxu0 0.0
        %2082 = vmatprep.subr.mxu0 0.0
        %2083 = vmatpush1.msra.mxu0 0.0
        %2084 = vmatprep.subr.mxu0 0.0
        %2085 = vmatpush1.msra.mxu0 0.0
        %2086 = vmatprep.subr.mxu0 0.0
        %2087 = vmatpush1.msra.mxu0 0.0
        %2088 = vmatprep.subr.mxu0 0.0
        %2089 = vmatpush1.msra.mxu0 0.0
        %2090 = vmatprep.subr.mxu0 0.0
        %2091 = vmatpush1.msra.mxu0 0.0
        %2092 = vmatprep.subr.mxu0 0.0
        %2093 = vmatpush1.msra.mxu0 0.0
        %2094 = vmatprep.subr.mxu0 0.0
        %2095 = vmatpush1.msra.mxu0 0.0
        %2096 = vmatprep.subr.mxu0 0.0
        %2097 = vmatpush1.msra.mxu0 %v1024
        %2098 = vmatprep.subr.mxu0 0.0
        %2099 = vmatpush1.msra.mxu0 %v1019
        %2100 = vmatprep.subr.mxu0 0.0
        %2101 = vmatpush2.msra.mxu0 0.0
        %2102 = vmatprep.subr.mxu0 0.0
        %2103 = vmatpush2.msra.mxu0 0.0
        %2104 = vmatprep.subr.mxu0 0.0
        %2105 = vmatpush2.msra.mxu0 0.0
        %2106 = vmatprep.subr.mxu0 0.0
        %2107 = vmatpush2.msra.mxu0 0.0
        %2108 = vmatprep.subr.mxu0 0.0
        %2109 = vmatpush2.msra.mxu0 0.0
        %2110 = vmatprep.subr.mxu0 0.0
        %2111 = vmatpush2.msra.mxu0 0.0
        %2112 = vmatprep.subr.mxu0 0.0
        %2113 = vmatpush2.msra.mxu0 0.0
        %2114 = vmatprep.subr.mxu0 0.0
        %2115 = vmatpush2.msra.mxu0 0.0
        %2116 = vmatprep.subr.mxu0 0.0
        %2117 = vmatpush2.msra.mxu0 0.0
        %2118 = vmatprep.subr.mxu0 0.0
        %2119 = vmatpush2.msra.mxu0 0.0
        %2120 = vmatprep.subr.mxu0 0.0
        %2121 = vmatpush2.msra.mxu0 0.0
        %2122 = vmatprep.subr.mxu0 0.0
        %2123 = vmatpush2.msra.mxu0 0.0
        %2124 = vmatprep.subr.mxu0 0.0
        %2125 = vmatpush2.msra.mxu0 0.0
        %2126 = vmatprep.subr.mxu0 0.0
        %2127 = vmatpush2.msra.mxu0 0.0
        %2128 = vmatprep.subr.mxu0 0.0
        %2129 = vmatpush2.msra.mxu0 0.0
        %2130 = vmatprep.subr.mxu0 0.0
        %2131 = vmatpush2.msra.mxu0 0.0
        %2132 = vmatprep.mubr.f32.mxu0 0.0
        %2133 = vmatmul.mubr.f32.gmra.mxu0 %v1038
        %v2134 = vpop.f32.mrf.mxu0
        %v2135 = vadd.f32 0.0, %v2134
        %v2136 = vpop.f32.mrf.mxu0
        %2137 = vdwg.mxu0
        %v2138 = vmul.f32 %v1855, %v1855
        %v2139 = vmul.f32 %v1925, %v1925
        %v2140 = vmul.f32 %v1855, %v1925
        %v2141 = vsub.f32 %v1995, %v2138
        %v2142 = vsub.f32 %v2065, %v2139
        %v2143 = vsub.f32 %v2135, %v2140
        %v2144 = vmul.f32 %v2140, 2.0
        %v2145 = vadd.f32 %v2144, 0.0001
        %v2146 = vmul.f32 %v2143, 2.0
        %v2147 = vadd.f32 %v2146, 0.0009
        %v2148 = vmul.f32 %v2145, %v2147
        %v2149 = vadd.f32 %v2138, %v2139
        %v2150 = vadd.f32 %v2149, 0.0001
        %v2151 = vadd.f32 %v2141, %v2142
        %v2152 = vadd.f32 %v2151, 0.0009
        %v2153 = vmul.f32 %v2150, %v2152
        %v2154 = vrcp.pop %v2153
        %v2155 = vmul.f32 %v2153, %v2154
        %v2156 = vsub.f32 2.0, %v2155
        %v2157 = vmul.f32 %v2154, %v2156
        %v2158 = vmul.f32 %v2148, %v2157
        %v2159 = vsub.f32 %v2158, 1.0
        %v2160 = vadd.f32 %v2159, 0.0
        %v2161 = vadd.f32 %v1787, %v2160
        %2162 = vmatprep.subr.mxu0 0.0
        %2163 = vmatpush1.msra.mxu0 0.0
        %2164 = vmatprep.subr.mxu0 0.0
        %2165 = vmatpush1.msra.mxu0 0.0
        %2166 = vmatprep.subr.mxu0 0.0
        %2167 = vmatpush1.msra.mxu0 0.0
        %2168 = vmatprep.subr.mxu0 0.0
        %2169 = vmatpush1.msra.mxu0 0.0
        %2170 = vmatprep.subr.mxu0 0.0
        %2171 = vmatpush1.msra.mxu0 0.0
        %2172 = vmatprep.subr.mxu0 0.0
        %2173 = vmatpush1.msra.mxu0 0.0
        %2174 = vmatprep.subr.mxu0 0.0
        %2175 = vmatpush1.msra.mxu0 0.0
        %2176 = vmatprep.subr.mxu0 0.0
        %2177 = vmatpush1.msra.mxu0 0.0
        %2178 = vmatprep.subr.mxu0 0.0
        %2179 = vmatpush1.msra.mxu0 0.0
        %2180 = vmatprep.subr.mxu0 0.0
        %2181 = vmatpush1.msra.mxu0 0.0
        %2182 = vmatprep.subr.mxu0 0.0
        %2183 = vmatpush1.msra.mxu0 0.0
        %2184 = vmatprep.subr.mxu0 0.0
        %2185 = vmatpush1.msra.mxu0 0.0
        %2186 = vmatprep.subr.mxu0 0.0
        %2187 = vmatpush1.msra.mxu0 0.0
        %2188 = vmatprep.subr.mxu0 0.0
        %2189 = vmatpush1.msra.mxu0 0.0
        %2190 = vmatprep.subr.mxu0 0.0
        %2191 = vmatpush1.msra.mxu0 %v494
        %2192 = vmatprep.subr.mxu0 0.0
        %2193 = vmatpush1.msra.mxu0 %v489
        %2194 = vmatprep.subr.mxu0 0.0
        %2195 = vmatpush2.msra.mxu0 0.0
        %2196 = vmatprep.subr.mxu0 0.0
        %2197 = vmatpush2.msra.mxu0 0.0
        %2198 = vmatprep.subr.mxu0 0.0
        %2199 = vmatpush2.msra.mxu0 0.0
        %2200 = vmatprep.subr.mxu0 0.0
        %2201 = vmatpush2.msra.mxu0 0.0
        %2202 = vmatprep.subr.mxu0 0.0
        %2203 = vmatpush2.msra.mxu0 0.0
        %2204 = vmatprep.subr.mxu0 0.0
        %2205 = vmatpush2.msra.mxu0 0.0
        %2206 = vmatprep.subr.mxu0 0.0
        %2207 = vmatpush2.msra.mxu0 0.0
        %2208 = vmatprep.subr.mxu0 0.0
        %2209 = vmatpush2.msra.mxu0 0.0
        %2210 = vmatprep.subr.mxu0 0.0
        %2211 = vmatpush2.msra.mxu0 0.0
        %2212 = vmatprep.subr.mxu0 0.0
        %2213 = vmatpush2.msra.mxu0 0.0
        %2214 = vmatprep.subr.mxu0 0.0
        %2215 = vmatpush2.msra.mxu0 0.0
        %2216 = vmatprep.subr.mxu0 0.0
        %2217 = vmatpush2.msra.mxu0 0.0
        %2218 = vmatprep.subr.mxu0 0.0
        %2219 = vmatpush2.msra.mxu0 0.0
        %2220 = vmatprep.subr.mxu0 0.0
        %2221 = vmatpush2.msra.mxu0 0.0
        %2222 = vmatprep.subr.mxu0 0.0
        %2223 = vmatpush2.msra.mxu0 0.0
        %2224 = vmatprep.subr.mxu0 0.0
        %2225 = vmatpush2.msra.mxu0 0.0
        %2226 = vmatprep.mubr.f32.mxu0 0.0
        %2227 = vmatmul.mubr.f32.gmra.mxu0 %v1038
        %v2228 = vpop.f32.mrf.mxu0
        %v2229 = vadd.f32 0.0, %v2228
        %v2230 = vpop.f32.mrf.mxu0
        %2231 = vdwg.mxu0
        %2232 = vmatprep.subr.mxu0 0.0
        %2233 = vmatpush1.msra.mxu0 0.0
        %2234 = vmatprep.subr.mxu0 0.0
        %2235 = vmatpush1.msra.mxu0 0.0
        %2236 = vmatprep.subr.mxu0 0.0
        %2237 = vmatpush1.msra.mxu0 0.0
        %2238 = vmatprep.subr.mxu0 0.0
        %2239 = vmatpush1.msra.mxu0 0.0
        %2240 = vmatprep.subr.mxu0 0.0
        %2241 = vmatpush1.msra.mxu0 0.0
        %2242 = vmatprep.subr.mxu0 0.0
        %2243 = vmatpush1.msra.mxu0 0.0
        %2244 = vmatprep.subr.mxu0 0.0
        %2245 = vmatpush1.msra.mxu0 0.0
        %2246 = vmatprep.subr.mxu0 0.0
        %2247 = vmatpush1.msra.mxu0 0.0
        %2248 = vmatprep.subr.mxu0 0.0
        %2249 = vmatpush1.msra.mxu0 0.0
        %2250 = vmatprep.subr.mxu0 0.0
        %2251 = vmatpush1.msra.mxu0 0.0
        %2252 = vmatprep.subr.mxu0 0.0
        %2253 = vmatpush1.msra.mxu0 0.0
        %2254 = vmatprep.subr.mxu0 0.0
        %2255 = vmatpush1.msra.mxu0 0.0
        %2256 = vmatprep.subr.mxu0 0.0
        %2257 = vmatpush1.msra.mxu0 0.0
        %2258 = vmatprep.subr.mxu0 0.0
        %2259 = vmatpush1.msra.mxu0 0.0
        %2260 = vmatprep.subr.mxu0 0.0
        %2261 = vmatpush1.msra.mxu0 %v623
        %2262 = vmatprep.subr.mxu0 0.0
        %2263 = vmatpush1.msra.mxu0 %v618
        %2264 = vmatprep.subr.mxu0 0.0
        %2265 = vmatpush2.msra.mxu0 0.0
        %2266 = vmatprep.subr.mxu0 0.0
        %2267 = vmatpush2.msra.mxu0 0.0
        %2268 = vmatprep.subr.mxu0 0.0
        %2269 = vmatpush2.msra.mxu0 0.0
        %2270 = vmatprep.subr.mxu0 0.0
        %2271 = vmatpush2.msra.mxu0 0.0
        %2272 = vmatprep.subr.mxu0 0.0
        %2273 = vmatpush2.msra.mxu0 0.0
        %2274 = vmatprep.subr.mxu0 0.0
        %2275 = vmatpush2.msra.mxu0 0.0
        %2276 = vmatprep.subr.mxu0 0.0
        %2277 = vmatpush2.msra.mxu0 0.0
        %2278 = vmatprep.subr.mxu0 0.0
        %2279 = vmatpush2.msra.mxu0 0.0
        %2280 = vmatprep.subr.mxu0 0.0
        %2281 = vmatpush2.msra.mxu0 0.0
        %2282 = vmatprep.subr.mxu0 0.0
        %2283 = vmatpush2.msra.mxu0 0.0
        %2284 = vmatprep.subr.mxu0 0.0
        %2285 = vmatpush2.msra.mxu0 0.0
        %2286 = vmatprep.subr.mxu0 0.0
        %2287 = vmatpush2.msra.mxu0 0.0
        %2288 = vmatprep.subr.mxu0 0.0
        %2289 = vmatpush2.msra.mxu0 0.0
        %2290 = vmatprep.subr.mxu0 0.0
        %2291 = vmatpush2.msra.mxu0 0.0
        %2292 = vmatprep.subr.mxu0 0.0
        %2293 = vmatpush2.msra.mxu0 0.0
        %2294 = vmatprep.subr.mxu0 0.0
        %2295 = vmatpush2.msra.mxu0 0.0
        %2296 = vmatprep.mubr.f32.mxu0 0.0
        %2297 = vmatmul.mubr.f32.gmra.mxu0 %v1038
        %v2298 = vpop.f32.mrf.mxu0
        %v2299 = vadd.f32 0.0, %v2298
        %v2300 = vpop.f32.mrf.mxu0
        %2301 = vdwg.mxu0
        %2302 = vmatprep.subr.mxu0 0.0
        %2303 = vmatpush1.msra.mxu0 0.0
        %2304 = vmatprep.subr.mxu0 0.0
        %2305 = vmatpush1.msra.mxu0 0.0
        %2306 = vmatprep.subr.mxu0 0.0
        %2307 = vmatpush1.msra.mxu0 0.0
        %2308 = vmatprep.subr.mxu0 0.0
        %2309 = vmatpush1.msra.mxu0 0.0
        %2310 = vmatprep.subr.mxu0 0.0
        %2311 = vmatpush1.msra.mxu0 0.0
        %2312 = vmatprep.subr.mxu0 0.0
        %2313 = vmatpush1.msra.mxu0 0.0
        %2314 = vmatprep.subr.mxu0 0.0
        %2315 = vmatpush1.msra.mxu0 0.0
        %2316 = vmatprep.subr.mxu0 0.0
        %2317 = vmatpush1.msra.mxu0 0.0
        %2318 = vmatprep.subr.mxu0 0.0
        %2319 = vmatpush1.msra.mxu0 0.0
        %2320 = vmatprep.subr.mxu0 0.0
        %2321 = vmatpush1.msra.mxu0 0.0
        %2322 = vmatprep.subr.mxu0 0.0
        %2323 = vmatpush1.msra.mxu0 0.0
        %2324 = vmatprep.subr.mxu0 0.0
        %2325 = vmatpush1.msra.mxu0 0.0
        %2326 = vmatprep.subr.mxu0 0.0
        %2327 = vmatpush1.msra.mxu0 0.0
        %2328 = vmatprep.subr.mxu0 0.0
        %2329 = vmatpush1.msra.mxu0 0.0
        %2330 = vmatprep.subr.mxu0 0.0
        %2331 = vmatpush1.msra.mxu0 %v760
        %2332 = vmatprep.subr.mxu0 0.0
        %2333 = vmatpush1.msra.mxu0 %v755
        %2334 = vmatprep.subr.mxu0 0.0
        %2335 = vmatpush2.msra.mxu0 0.0
        %2336 = vmatprep.subr.mxu0 0.0
        %2337 = vmatpush2.msra.mxu0 0.0
        %2338 = vmatprep.subr.mxu0 0.0
        %2339 = vmatpush2.msra.mxu0 0.0
        %2340 = vmatprep.subr.mxu0 0.0
        %2341 = vmatpush2.msra.mxu0 0.0
        %2342 = vmatprep.subr.mxu0 0.0
        %2343 = vmatpush2.msra.mxu0 0.0
        %2344 = vmatprep.subr.mxu0 0.0
        %2345 = vmatpush2.msra.mxu0 0.0
        %2346 = vmatprep.subr.mxu0 0.0
        %2347 = vmatpush2.msra.mxu0 0.0
        %2348 = vmatprep.subr.mxu0 0.0
        %2349 = vmatpush2.msra.mxu0 0.0
        %2350 = vmatprep.subr.mxu0 0.0
        %2351 = vmatpush2.msra.mxu0 0.0
        %2352 = vmatprep.subr.mxu0 0.0
        %2353 = vmatpush2.msra.mxu0 0.0
        %2354 = vmatprep.subr.mxu0 0.0
        %2355 = vmatpush2.msra.mxu0 0.0
        %2356 = vmatprep.subr.mxu0 0.0
        %2357 = vmatpush2.msra.mxu0 0.0
        %2358 = vmatprep.subr.mxu0 0.0
        %2359 = vmatpush2.msra.mxu0 0.0
        %2360 = vmatprep.subr.mxu0 0.0
        %2361 = vmatpush2.msra.mxu0 0.0
        %2362 = vmatprep.subr.mxu0 0.0
        %2363 = vmatpush2.msra.mxu0 0.0
        %2364 = vmatprep.subr.mxu0 0.0
        %2365 = vmatpush2.msra.mxu0 0.0
        %2366 = vmatprep.mubr.f32.mxu0 0.0
        %2367 = vmatmul.mubr.f32.gmra.mxu0 %v1038
        %v2368 = vpop.f32.mrf.mxu0
        %v2369 = vadd.f32 0.0, %v2368
        %v2370 = vpop.f32.mrf.mxu0
        %2371 = vdwg.mxu0
        %2372 = vmatprep.subr.mxu0 0.0
        %2373 = vmatpush1.msra.mxu0 0.0
        %2374 = vmatprep.subr.mxu0 0.0
        %2375 = vmatpush1.msra.mxu0 0.0
        %2376 = vmatprep.subr.mxu0 0.0
        %2377 = vmatpush1.msra.mxu0 0.0
        %2378 = vmatprep.subr.mxu0 0.0
        %2379 = vmatpush1.msra.mxu0 0.0
        %2380 = vmatprep.subr.mxu0 0.0
        %2381 = vmatpush1.msra.mxu0 0.0
        %2382 = vmatprep.subr.mxu0 0.0
        %2383 = vmatpush1.msra.mxu0 0.0
        %2384 = vmatprep.subr.mxu0 0.0
        %2385 = vmatpush1.msra.mxu0 0.0
        %2386 = vmatprep.subr.mxu0 0.0
        %2387 = vmatpush1.msra.mxu0 0.0
        %2388 = vmatprep.subr.mxu0 0.0
        %2389 = vmatpush1.msra.mxu0 0.0
        %2390 = vmatprep.subr.mxu0 0.0
        %2391 = vmatpush1.msra.mxu0 0.0
        %2392 = vmatprep.subr.mxu0 0.0
        %2393 = vmatpush1.msra.mxu0 0.0
        %2394 = vmatprep.subr.mxu0 0.0
        %2395 = vmatpush1.msra.mxu0 0.0
        %2396 = vmatprep.subr.mxu0 0.0
        %2397 = vmatpush1.msra.mxu0 0.0
        %2398 = vmatprep.subr.mxu0 0.0
        %2399 = vmatpush1.msra.mxu0 0.0
        %2400 = vmatprep.subr.mxu0 0.0
        %2401 = vmatpush1.msra.mxu0 %v897
        %2402 = vmatprep.subr.mxu0 0.0
        %2403 = vmatpush1.msra.mxu0 %v892
        %2404 = vmatprep.subr.mxu0 0.0
        %2405 = vmatpush2.msra.mxu0 0.0
        %2406 = vmatprep.subr.mxu0 0.0
        %2407 = vmatpush2.msra.mxu0 0.0
        %2408 = vmatprep.subr.mxu0 0.0
        %2409 = vmatpush2.msra.mxu0 0.0
        %2410 = vmatprep.subr.mxu0 0.0
        %2411 = vmatpush2.msra.mxu0 0.0
        %2412 = vmatprep.subr.mxu0 0.0
        %2413 = vmatpush2.msra.mxu0 0.0
        %2414 = vmatprep.subr.mxu0 0.0
        %2415 = vmatpush2.msra.mxu0 0.0
        %2416 = vmatprep.subr.mxu0 0.0
        %2417 = vmatpush2.msra.mxu0 0.0
        %2418 = vmatprep.subr.mxu0 0.0
        %2419 = vmatpush2.msra.mxu0 0.0
        %2420 = vmatprep.subr.mxu0 0.0
        %2421 = vmatpush2.msra.mxu0 0.0
        %2422 = vmatprep.subr.mxu0 0.0
        %2423 = vmatpush2.msra.mxu0 0.0
        %2424 = vmatprep.subr.mxu0 0.0
        %2425 = vmatpush2.msra.mxu0 0.0
        %2426 = vmatprep.subr.mxu0 0.0
        %2427 = vmatpush2.msra.mxu0 0.0
        %2428 = vmatprep.subr.mxu0 0.0
        %2429 = vmatpush2.msra.mxu0 0.0
        %2430 = vmatprep.subr.mxu0 0.0
        %2431 = vmatpush2.msra.mxu0 0.0
        %2432 = vmatprep.subr.mxu0 0.0
        %2433 = vmatpush2.msra.mxu0 0.0
        %2434 = vmatprep.subr.mxu0 0.0
        %2435 = vmatpush2.msra.mxu0 0.0
        %2436 = vmatprep.mubr.f32.mxu0 0.0
        %2437 = vmatmul.mubr.f32.gmra.mxu0 %v1038
        %v2438 = vpop.f32.mrf.mxu0
        %v2439 = vadd.f32 0.0, %v2438
        %v2440 = vpop.f32.mrf.mxu0
        %2441 = vdwg.mxu0
        %2442 = vmatprep.subr.mxu0 0.0
        %2443 = vmatpush1.msra.mxu0 0.0
        %2444 = vmatprep.subr.mxu0 0.0
        %2445 = vmatpush1.msra.mxu0 0.0
        %2446 = vmatprep.subr.mxu0 0.0
        %2447 = vmatpush1.msra.mxu0 0.0
        %2448 = vmatprep.subr.mxu0 0.0
        %2449 = vmatpush1.msra.mxu0 0.0
        %2450 = vmatprep.subr.mxu0 0.0
        %2451 = vmatpush1.msra.mxu0 0.0
        %2452 = vmatprep.subr.mxu0 0.0
        %2453 = vmatpush1.msra.mxu0 0.0
        %2454 = vmatprep.subr.mxu0 0.0
        %2455 = vmatpush1.msra.mxu0 0.0
        %2456 = vmatprep.subr.mxu0 0.0
        %2457 = vmatpush1.msra.mxu0 0.0
        %2458 = vmatprep.subr.mxu0 0.0
        %2459 = vmatpush1.msra.mxu0 0.0
        %2460 = vmatprep.subr.mxu0 0.0
        %2461 = vmatpush1.msra.mxu0 0.0
        %2462 = vmatprep.subr.mxu0 0.0
        %2463 = vmatpush1.msra.mxu0 0.0
        %2464 = vmatprep.subr.mxu0 0.0
        %2465 = vmatpush1.msra.mxu0 0.0
        %2466 = vmatprep.subr.mxu0 0.0
        %2467 = vmatpush1.msra.mxu0 0.0
        %2468 = vmatprep.subr.mxu0 0.0
        %2469 = vmatpush1.msra.mxu0 0.0
        %2470 = vmatprep.subr.mxu0 0.0
        %2471 = vmatpush1.msra.mxu0 %v1034
        %2472 = vmatprep.subr.mxu0 0.0
        %2473 = vmatpush1.msra.mxu0 %v1029
        %2474 = vmatprep.subr.mxu0 0.0
        %2475 = vmatpush2.msra.mxu0 0.0
        %2476 = vmatprep.subr.mxu0 0.0
        %2477 = vmatpush2.msra.mxu0 0.0
        %2478 = vmatprep.subr.mxu0 0.0
        %2479 = vmatpush2.msra.mxu0 0.0
        %2480 = vmatprep.subr.mxu0 0.0
        %2481 = vmatpush2.msra.mxu0 0.0
        %2482 = vmatprep.subr.mxu0 0.0
        %2483 = vmatpush2.msra.mxu0 0.0
        %2484 = vmatprep.subr.mxu0 0.0
        %2485 = vmatpush2.msra.mxu0 0.0
        %2486 = vmatprep.subr.mxu0 0.0
        %2487 = vmatpush2.msra.mxu0 0.0
        %2488 = vmatprep.subr.mxu0 0.0
        %2489 = vmatpush2.msra.mxu0 0.0
        %2490 = vmatprep.subr.mxu0 0.0
        %2491 = vmatpush2.msra.mxu0 0.0
        %2492 = vmatprep.subr.mxu0 0.0
        %2493 = vmatpush2.msra.mxu0 0.0
        %2494 = vmatprep.subr.mxu0 0.0
        %2495 = vmatpush2.msra.mxu0 0.0
        %2496 = vmatprep.subr.mxu0 0.0
        %2497 = vmatpush2.msra.mxu0 0.0
        %2498 = vmatprep.subr.mxu0 0.0
        %2499 = vmatpush2.msra.mxu0 0.0
        %2500 = vmatprep.subr.mxu0 0.0
        %2501 = vmatpush2.msra.mxu0 0.0
        %2502 = vmatprep.subr.mxu0 0.0
        %2503 = vmatpush2.msra.mxu0 0.0
        %2504 = vmatprep.subr.mxu0 0.0
        %2505 = vmatpush2.msra.mxu0 0.0
        %2506 = vmatprep.mubr.f32.mxu0 0.0
        %2507 = vmatmul.mubr.f32.gmra.mxu0 %v1038
        %v2508 = vpop.f32.mrf.mxu0
        %v2509 = vadd.f32 0.0, %v2508
        %v2510 = vpop.f32.mrf.mxu0
        %2511 = vdwg.mxu0
        %v2512 = vmul.f32 %v2229, %v2229
        %v2513 = vmul.f32 %v2299, %v2299
        %v2514 = vmul.f32 %v2229, %v2299
        %v2515 = vsub.f32 %v2369, %v2512
        %v2516 = vsub.f32 %v2439, %v2513
        %v2517 = vsub.f32 %v2509, %v2514
        %v2518 = vmul.f32 %v2514, 2.0
        %v2519 = vadd.f32 %v2518, 0.0001
        %v2520 = vmul.f32 %v2517, 2.0
        %v2521 = vadd.f32 %v2520, 0.0009
        %v2522 = vmul.f32 %v2519, %v2521
        %v2523 = vadd.f32 %v2512, %v2513
        %v2524 = vadd.f32 %v2523, 0.0001
        %v2525 = vadd.f32 %v2515, %v2516
        %v2526 = vadd.f32 %v2525, 0.0009
        %v2527 = vmul.f32 %v2524, %v2526
        %v2528 = vrcp.pop %v2527
        %v2529 = vmul.f32 %v2527, %v2528
        %v2530 = vsub.f32 2.0, %v2529
        %v2531 = vmul.f32 %v2528, %v2530
        %v2532 = vmul.f32 %v2522, %v2531
        %v2533 = vsub.f32 %v2532, 1.0
        %v2534 = vadd.f32 %v2533, 0.0
        %v2535 = vadd.f32 %v2161, %v2534
        %v2536 = vld [vmem:[#allocation3] sm:$0xff]
        %v2537 = vadd.f32 %v2536, %v2535
        %2538 = vst [vmem:[#allocation3] sm:$0xff] %v2537
        // Predicated region
        $region57: #{tpu_custom_call.1} parent=35 // pred_check
          %p2539 = pneg %p307
        $region58: #{tpu_custom_call.1} parent=35 // pred_check_branch
          %2541 = sbr.rel (%p2539) target = $region60
        $region59: #{tpu_custom_call.1} parent=35 // pred_region
          %v2542 = vld [vmem:[#allocation2] sm:$0xff]
          %v2543 = vsel %vm350, %v2542, 0.0
          %2544 = vadd.xlane.f32.xlu0 %v2543
          %v2545 = vpop.xlane.xlu0 %2544
          %v2546 = vrot.slane %v2545, 4
          %v2547 = vadd.f32 %v2545, %v2546
          %v2548 = vrot.slane %v2547, 2
          %v2549 = vadd.f32 %v2547, %v2548
          %v2550 = vrot.slane %v2549, 1
          %v2551 = vadd.f32 %v2549, %v2550
          %s2552 = vtos %v2551
          %v2553 = vld [vmem:[#allocation3] sm:$0xff]
          %2554 = vadd.xlane.f32.xlu0 %v2553
          %v2555 = vpop.xlane.xlu0 %2554
          %v2556 = vrot.slane %v2555, 4
          %v2557 = vadd.f32 %v2555, %v2556
          %v2558 = vrot.slane %v2557, 2
          %v2559 = vadd.f32 %v2557, %v2558
          %v2560 = vrot.slane %v2559, 1
          %v2561 = vadd.f32 %v2559, %v2560
          %s2562 = vtos %v2561
          %v2563 = vlaneseq
          %v2564 = vand.u32 %v2563, 127
          %vm2565 = vcmp.eq.s32.totalorder %v2564, 0
          %v2566 = vstv %s2552
          %v2567 = vsel %vm2565, %v2566, 0.0
          %vm2568 = vcmp.eq.s32.totalorder %v2564, 1
          %v2569 = vstv %s2562
          %v2570 = vsel %vm2568, %v2569, 0.0
          %v2571 = vadd.f32 %v2567, %v2570
          %2572 = vst [vmem:[%s302] sm:$0xff] %v2571
        $region60: #{tpu_custom_call.1} parent=35 // pred_fallthru
          _
        %s2573 = sand.u32 %s143, 1
        %s2574 = scalar_lea.sflag [#allocation6], %s2573
        %s2575 = sand.u32 %s143, 1
        %s2576 = smul.addr %s2575, 8
        %s2577 = scalar_lea.vmem [#allocation12], %s2576
        // Predicated region
        $region61: #{tpu_custom_call.1} parent=35 // pred_check
          %p2578 = pneg %p153
        $region62: #{tpu_custom_call.1} parent=35 // pred_check_branch
          %2580 = sbr.rel (%p2578) target = $region64
        $region63: #{tpu_custom_call.1} parent=35 // pred_region
          %s2582 = ssub.s32 128, 128
          %2583 = vsyncadd %s2574, %s2582
          %s2584 = smul.addr %s29, 128
          %s2585 = scalar_lea.hbm %s4, %s2584
          %s2587 = sshll.u32 %s2577, 4
          %s2588 = int_to_ptr.vmem [resolvable:$true] %s2587
          %2590 = dma.vmem_to_hbm [thread:$0]  %s2588, 128, %s2585, %s2574
        $region64: #{tpu_custom_call.1} parent=35 // pred_fallthru
          _
      $region36: #{tpu_custom_call.1} parent=5 // pred_fallthru
        _
      %p2591 = scmp.le.s32.totalorder 2, %s20
      // Predicated region
      $region65: #{tpu_custom_call.1} parent=5 // pred_check
        %p2592 = pneg %p2591
      $region66: #{tpu_custom_call.1} parent=5 // pred_check_branch
        %2594 = sbr.rel (%p2592) target = $region68
      $region67: #{tpu_custom_call.1} parent=5 // pred_region
        %s2595 = ssub.s32 %s20, 2
        // Predicated region
        $region69: #{tpu_custom_call.1} parent=67 // pred_check
          %p2596 = pneg %p159
        $region70: #{tpu_custom_call.1} parent=67 // pred_check_branch
          %2598 = sbr.rel (%p2596) target = $region72
        $region71: #{tpu_custom_call.1} parent=67 // pred_region
          %s2599 = sand.u32 %s144, 1
          %s2600 = scalar_lea.sflag [#allocation6], %s2599
          %s2601 = sand.u32 %s144, 1
          %s2602 = smul.addr %s2601, 8
          %s2603 = scalar_lea.vmem [#allocation12], %s2602
          %2604 = dma.done %s2600, 128
        $region72: #{tpu_custom_call.1} parent=67 // pred_fallthru
          _
      $region68: #{tpu_custom_call.1} parent=5 // pred_fallthru
        _
    $region6: #{tpu_custom_call.1} parent=1 // loop_footer
      %s24 = sadd.s32 1, %s20
    $region7: #{tpu_custom_call.1} parent=1 // loop_footer_branch
      %19 = sbr.rel target = $region3
    $region8: #{tpu_custom_call.1} parent=1 // loop_exit
      _
    %2605 = vsyncpa [#allocation5], 1
    %s2606 = scalar_lea.sflag [#allocation5], 1
    %2607 = vsyncpa %s2606, 1
    %2608 = vsyncpa [#allocation8], 1
    %s2609 = scalar_lea.sflag [#allocation8], 1
    %2610 = vsyncpa %s2609, 1
    %2611 = vsyncpa [#allocation11], 1
    %2612 = vsyncpa [#allocation6], 1
    %s2613 = scalar_lea.sflag [#allocation6], 1
    %2614 = vsyncpa %s2613, 1

</llo_original>
